<compile_context>
chip_gen: v7x
topology: tpu7x:2x2x1
jax: 0.10.0
libtpu: 0.0.40
codegen_flags: <defaults>
</compile_context>

<pallas_src>
import jax
import jax.numpy as jnp
from jax.experimental import pallas as pl
from jax.experimental.pallas import tpu as pltpu


def _relu_matmul_kernel(x_ref, w_ref, o_ref):
    # x_ref: (Cin, M_pad) f32  -- all input channels, all (padded) pixels
    # w_ref: (tco, Cin)   bf16 -- output-channel row tile
    # o_ref: (tco, M_pad) f32
    x = jnp.maximum(x_ref[...], 0.0).astype(jnp.bfloat16)  # fused ReLU + bf16 cast
    o_ref[...] = jnp.dot(
        w_ref[...], x, preferred_element_type=jnp.float32
    ).astype(o_ref.dtype)


def relu_conv1x1(x_nchw, weight_oihw, *, tco=1024):
    """relu -> 1x1 conv (stride 1, no bias), NCHW in / NCHW out."""
    N, Cin, H, W = x_nchw.shape
    Cout = weight_oihw.shape[0]
    assert weight_oihw.shape == (Cout, Cin, 1, 1)
    assert Cout % tco == 0

    # NCHW-native: for N == 1 this reshape is a free view (no transpose).
    if N == 1:
        x_cm = x_nchw.reshape(Cin, H * W)
    else:
        x_cm = jnp.moveaxis(x_nchw, 1, 0).reshape(Cin, N * H * W)

    # Pad pixel count to a multiple of 128 so output stores are lane-dense.
    M = N * H * W
    M_pad = ((M + 127) // 128) * 128
    if M_pad != M:
        x_cm = jnp.pad(x_cm, ((0, 0), (0, M_pad - M)))

    # (Cout, Cin, 1, 1) -> (Cout, Cin) in bf16 (one-time cast in a real model).
    w_oc = weight_oihw[:, :, 0, 0].astype(jnp.bfloat16)

    grid = (Cout // tco,)
    flops = 2 * M_pad * Cin * Cout
    bytes_accessed = (
        Cout * Cin * 2            # bf16 weight stream (dominant)
        + Cin * M_pad * 4         # f32 activations
        + Cout * M_pad * 4        # f32 output
    )

    out = pl.pallas_call(
        _relu_matmul_kernel,
        out_shape=jax.ShapeDtypeStruct((Cout, M_pad), jnp.float32),
        grid_spec=pltpu.PrefetchScalarGridSpec(
            num_scalar_prefetch=0,
            grid=grid,
            in_specs=[
                pl.BlockSpec((Cin, M_pad), lambda j: (0, 0)),  # x: whole array
                pl.BlockSpec((tco, Cin), lambda j: (j, 0)),    # weight row tile
            ],
            out_specs=pl.BlockSpec((tco, M_pad), lambda j: (j, 0)),
        ),
        compiler_params=pltpu.CompilerParams(
            dimension_semantics=("parallel",),  # v7x: Cout tiles shard across TCs
        ),
        cost_estimate=pl.CostEstimate(
            flops=flops, transcendentals=0, bytes_accessed=bytes_accessed
        ),
    )(x_cm, w_oc)

    # (Cout, M_pad) -> (N, Cout, H, W); for N == 1 this is a free view.
    out = out[:, :M]
    if N == 1:
        return out.reshape(1, Cout, H, W)
    return jnp.moveaxis(out.reshape(Cout, N, H, W), 1, 0)


if __name__ == "__main__":
    key = jax.random.PRNGKey(0)
    kx, kw = jax.random.split(key)

    # Shapes implied by the module: x [1, 1024, 7, 7], weight [2048, 1024, 1, 1]
    N, Cin, H, W = 1, 1024, 7, 7
    Cout = 2048

    x = jax.random.normal(kx, (N, Cin, H, W), dtype=jnp.float32)
    # Deterministic "kaiming-ish" init for the conv weight.
    weight = jax.random.normal(kw, (Cout, Cin, 1, 1), dtype=jnp.float32) * (1.0 / (Cin ** 0.5))

    out = relu_conv1x1(x, weight)
    out = jax.block_until_ready(out)
    assert out.shape == (N, Cout, H, W)

    # Reference: relu + 1x1 conv as a plain f32 matmul (module semantics).
    # Tolerance loosened for the bf16 weight/activation cast inside the kernel
    # (errors ~1e-2 level; accumulation stays f32).
    x_rows = jnp.maximum(x, 0.0).reshape(Cin, H * W)
    ref = jnp.dot(weight[:, :, 0, 0], x_rows).reshape(1, Cout, H, W)
    assert jnp.allclose(out, ref, atol=5e-2, rtol=5e-2), (
        float(jnp.max(jnp.abs(out - ref)))
    )

    print("KERNEL_OK")
</pallas_src>

<mosaic_0001>
module attributes {stable_mosaic.version = 11 : i64} {
  func.func @_relu_matmul_kernel(%arg0: i32, %arg1: memref<1024x128xf32, #tpu.memory_space<vmem>>, %arg2: memref<1024x1024xbf16, #tpu.memory_space<vmem>>, %arg3: memref<1024x128xf32, #tpu.memory_space<vmem>>) attributes {dimension_semantics = [#tpu.dimension_semantics<parallel>], iteration_bounds = array<i64: 2>, scalar_prefetch = 0 : i64, scratch_operands = 0 : i64, tpu.core_type = #tpu.core_type<tc>, window_params = [{pipeline_mode = #tpu.pipeline_mode<synchronous>, transform_indices = @transform_0, window_bounds = array<i64: 1024, 128>}, {transform_indices = @transform_1, window_bounds = array<i64: 1024, 1024>}, {transform_indices = @transform_2, window_bounds = array<i64: 1024, 128>}]} {
    %c0 = arith.constant 0 : index
    %c0_0 = arith.constant 0 : index
    %0 = vector.load %arg1[%c0, %c0_0] : memref<1024x128xf32, #tpu.memory_space<vmem>>, vector<1024x128xf32>
    %cst = arith.constant 0.000000e+00 : f32
    %1 = vector.broadcast %cst : f32 to vector<1024x128xf32>
    %2 = arith.maximumf %0, %1 : vector<1024x128xf32>
    %3 = arith.truncf %2 : vector<1024x128xf32> to vector<1024x128xbf16>
    %c0_1 = arith.constant 0 : index
    %c0_2 = arith.constant 0 : index
    %4 = vector.load %arg2[%c0_1, %c0_2] : memref<1024x1024xbf16, #tpu.memory_space<vmem>>, vector<1024x1024xbf16>
    %cst_3 = arith.constant dense<0.000000e+00> : vector<1024x128xf32>
    %5 = tpu.matmul %4, %3, %cst_3 {dimension_numbers = #tpu.dot_dimension_numbers<[1], [0], [0], [1], [0, 0, 1, 1], [], []>} : vector<1024x1024xbf16>, vector<1024x128xbf16>, vector<1024x128xf32> -> vector<1024x128xf32>
    %c0_4 = arith.constant 0 : index
    %c0_5 = arith.constant 0 : index
    %6 = vector.load %arg3[%c0_4, %c0_5] : memref<1024x128xf32, #tpu.memory_space<vmem>>, vector<1024x128xf32>
    tpu.vector_store %arg3[%c0_4, %c0_5], %5 {strides = array<i32>} : memref<1024x128xf32, #tpu.memory_space<vmem>>, vector<1024x128xf32>,
    return
  }
  func.func @transform_0(%arg0: i32) -> (i32, i32) {
    %c0_i32 = arith.constant 0 : i32
    %c0_i32_0 = arith.constant 0 : i32
    %c0_i32_1 = arith.constant 0 : i32
    return %c0_i32, %c0_i32_0 : i32, i32
  }
  func.func @transform_1(%arg0: i32) -> (i32, i32) {
    %c0_i32 = arith.constant 0 : i32
    %c0_i32_0 = arith.constant 0 : i32
    return %arg0, %c0_i32 : i32, i32
  }
  func.func @transform_2(%arg0: i32) -> (i32, i32) {
    %c0_i32 = arith.constant 0 : i32
    %c0_i32_0 = arith.constant 0 : i32
    return %arg0, %c0_i32 : i32, i32
  }
}

</mosaic_0001>

<llo_original>
// kernel: tpu_custom_call.1
$region0: #{tpu_custom_call.1}
  #allocation0 [shape = 'u32[]', space=smem, size = 0x4, offset = 0x4, fixed_abs, tag = 'smem constant byte address 0x4 - core index']
  #allocation1 [shape = 'u32[144,128]{1,0:T(1,128)}', space=vmem, size = 0x12000, scoped, tag = 'internal scratch']
  %s0 = inlined_call_operand.hbm [shape: f32[1024,128], index: 0, kind: input, shape index: {}]
  %s1 = inlined_call_operand.hbm [shape: bf16[2048,1024], index: 1, kind: input, shape index: {}]
  %s2 = inlined_call_operand.hbm [shape: f32[2048,128], index: 2, kind: output, shape index: {}]
  %s3 = sld [smem:[#allocation0]]
  $region49: #{tpu_custom_call.1} parent=0
    _
  %s5 = ssub.s32 1, %s3
  %s6 = scalar_select 0, %s5, %s3
  $region1: #{tpu_custom_call.1} parent=0
    #allocation2 [shape = 'u8[524288]{0}', space=vmem, size = 0x80000, scoped, tag = 'input window, operand 0, single buffered']
    #allocation3 [shape = 's32[2]{0}', space=sflag, size = 0x8, scoped, tag = 'scoped memory for tpu_custom_call.1']
    #allocation4 [shape = 's32[2]{0}', space=sflag, size = 0x8, scoped, tag = 'scoped memory for tpu_custom_call.1']
    #allocation5 [shape = 'u8[4194304]{0}', space=vmem, size = 0x400000, scoped, tag = 'input window, operand 1']
    #allocation6 [shape = 's32[2]{0}', space=sflag, size = 0x8, scoped, tag = 'scoped memory for tpu_custom_call.1']
    #allocation7 [shape = 'u8[1048576]{0}', space=vmem, size = 0x100000, scoped, tag = 'output window, operand 0']
    %7 = vsyncpa [#allocation3], 0
    %8 = vsyncpa [#allocation6], 0
    %s9 = scalar_lea.sflag [#allocation6], 1
    %10 = vsyncpa %s9, 0
    %11 = vsyncpa [#allocation4], 0
    %s12 = scalar_lea.sflag [#allocation4], 1
    %13 = vsyncpa %s12, 0
    loop: start=0, step=1, limit=4
    $region2: #{tpu_custom_call.1} parent=1 // loop_pre_header
      _
    $region3: #{tpu_custom_call.1} parent=1 // loop_header
      %s15 = sphi 0, %s19
      %p16 = scmp.ge.s32.totalorder %s15, 4
      %s23 = sphi 0, %s23
      %s25 = sphi 0, %s23
      %s26 = sphi 0, %s25
      %s40 = sphi 0, %s26
      %s46 = sphi 0, %s48
      %s49 = sphi 0, %s46
      %s50 = sphi 0, %s49
      %s66 = sphi 0, %s50
      %s72 = sphi 0, %s74
      %s75 = sphi 0, %s72
      %s76 = sphi 0, %s75
      %s92 = sphi 0, %s76
    $region4: #{tpu_custom_call.1} parent=1 // loop_header_branch
      %18 = sbr.rel (%p16) target = $region8
    $region5: #{tpu_custom_call.1} parent=1 // loop_body
      %s20 = ssub.s32 %s15, 1
      %s21 = ssub.s32 %s15, 2
      %s22 = sadd.s32 %s15, 1
      %s24 = sadd.s32 %s23, 1
      %p27 = scmp.eq.s32.totalorder %s15, 1
      %p28 = scmp.ne.s32.totalorder %s23, %s25
      %p29 = scmp.eq.s32.totalorder %s15, 0
      %p30 = por %p28, %p29
      %p31 = scmp.ne.s32.totalorder %s23, %s25
      %p32 = scmp.eq.s32.totalorder %s20, 1
      %p33 = por %p31, %p32
      %p34 = scmp.ne.s32.totalorder %s25, %s26
      %p35 = scmp.eq.s32.totalorder %s20, 0
      %p36 = por %p34, %p35
      %p37 = scmp.ne.s32.totalorder %s25, %s26
      %p38 = scmp.eq.s32.totalorder %s21, 1
      %p39 = por %p37, %p38
      %p41 = scmp.ne.s32.totalorder %s26, %s40
      %p42 = scmp.eq.s32.totalorder %s21, 0
      %p43 = por %p41, %p42
      %s44 = ssub.s32 %s15, %s22
      %p45 = scmp.eq.s32.totalorder %s44, 0
      %s47 = sadd.s32 %s46, 1
      %s48 = scalar_select %p45, %s46, %s47
      %p51 = pneg %p45
      %p52 = scmp.eq.s32.totalorder %s15, 1
      %p53 = por %p51, %p52
      %p54 = scmp.ne.s32.totalorder %s46, %s49
      %p55 = scmp.eq.s32.totalorder %s15, 0
      %p56 = por %p54, %p55
      %p57 = scmp.ne.s32.totalorder %s46, %s49
      %p58 = scmp.eq.s32.totalorder %s20, 1
      %p59 = por %p57, %p58
      %p60 = scmp.ne.s32.totalorder %s49, %s50
      %p61 = scmp.eq.s32.totalorder %s20, 0
      %p62 = por %p60, %p61
      %p63 = scmp.ne.s32.totalorder %s49, %s50
      %p64 = scmp.eq.s32.totalorder %s21, 1
      %p65 = por %p63, %p64
      %p67 = scmp.ne.s32.totalorder %s50, %s66
      %p68 = scmp.eq.s32.totalorder %s21, 0
      %p69 = por %p67, %p68
      %s70 = ssub.s32 %s15, %s22
      %p71 = scmp.eq.s32.totalorder %s70, 0
      %s73 = sadd.s32 %s72, 1
      %s74 = scalar_select %p71, %s72, %s73
      %p77 = pneg %p71
      %p78 = scmp.eq.s32.totalorder %s15, 1
      %p79 = por %p77, %p78
      %p80 = scmp.ne.s32.totalorder %s72, %s75
      %p81 = scmp.eq.s32.totalorder %s15, 0
      %p82 = por %p80, %p81
      %p83 = scmp.ne.s32.totalorder %s72, %s75
      %p84 = scmp.eq.s32.totalorder %s20, 1
      %p85 = por %p83, %p84
      %p86 = scmp.ne.s32.totalorder %s75, %s76
      %p87 = scmp.eq.s32.totalorder %s20, 0
      %p88 = por %p86, %p87
      %p89 = scmp.ne.s32.totalorder %s75, %s76
      %p90 = scmp.eq.s32.totalorder %s21, 1
      %p91 = por %p89, %p90
      %p93 = scmp.ne.s32.totalorder %s76, %s92
      %p94 = scmp.eq.s32.totalorder %s21, 0
      %p95 = por %p93, %p94
      %p96 = scmp.le.s32.totalorder 1, %s15
      %p97 = scmp.lt.s32.totalorder %s15, 3
      %p98 = pnand %p96, %p97
      %p99 = pneg %p98
      // Predicated region
      $region9: #{tpu_custom_call.1} parent=5 // pred_check
        _
      $region10: #{tpu_custom_call.1} parent=5 // pred_check_branch
        %101 = sbr.rel (%p98) target = $region12
      $region11: #{tpu_custom_call.1} parent=5 // pred_region
        %s102 = ssub.s32 %s15, 1
        // Predicated region
        $region13: #{tpu_custom_call.1} parent=11 // pred_check
          %p103 = pneg %p36
        $region14: #{tpu_custom_call.1} parent=11 // pred_check_branch
          %105 = sbr.rel (%p103) target = $region16
        $region15: #{tpu_custom_call.1} parent=11 // pred_region
          %s107 = ssub.s32 16384, 16384
          %108 = vsyncadd [#allocation3], %s107
          %s109 = sshll.u32 [#allocation2], 4
          %s110 = int_to_ptr.vmem [resolvable:$true] %s109
          %115 = dma.hbm_to_vmem [thread:$0]  %s0, 16384, %s110, [#allocation3], 128, 128, 8
        $region16: #{tpu_custom_call.1} parent=11 // pred_fallthru
          _
      $region12: #{tpu_custom_call.1} parent=5 // pred_fallthru
        _
      %p116 = scmp.lt.s32.totalorder %s15, 2
      // Predicated region
      $region17: #{tpu_custom_call.1} parent=5 // pred_check
        %p117 = pneg %p116
      $region18: #{tpu_custom_call.1} parent=5 // pred_check_branch
        %119 = sbr.rel (%p117) target = $region20
      $region19: #{tpu_custom_call.1} parent=5 // pred_region
        // Predicated region
        $region21: #{tpu_custom_call.1} parent=19 // pred_check
          %p120 = pneg %p56
        $region22: #{tpu_custom_call.1} parent=19 // pred_check_branch
          %122 = sbr.rel (%p120) target = $region24
        $region23: #{tpu_custom_call.1} parent=19 // pred_region
          %s123 = sand.u32 %s46, 1
          %s124 = scalar_lea.sflag [#allocation6], %s123
          %s125 = sand.u32 %s46, 1
          %s126 = smul.addr %s125, 4096
          %s127 = scalar_lea.vmem [#allocation5], %s126
          %s128 = smul.u32 128, %s15
          %s130 = ssub.s32 65536, 65536
          %131 = vsyncadd %s124, %s130
          %s132 = smul.addr %s128, 8
          %s133 = smul.addr %s132, 64
          %s134 = scalar_lea.hbm %s1, %s133
          %s135 = sshll.u32 %s127, 4
          %s136 = int_to_ptr.vmem [resolvable:$true] %s135
          %141 = dma.hbm_to_vmem [thread:$0]  %s134, 65536, %s136, %s124, 512, 512, 32
        $region24: #{tpu_custom_call.1} parent=19 // pred_fallthru
          _
      $region20: #{tpu_custom_call.1} parent=5 // pred_fallthru
        _
      %p142 = scmp.le.s32.totalorder 1, %s15
      %p143 = scmp.lt.s32.totalorder %s15, 3
      %p144 = pnand %p142, %p143
      %p145 = pneg %p144
      // Predicated region
      $region25: #{tpu_custom_call.1} parent=5 // pred_check
        _
      $region26: #{tpu_custom_call.1} parent=5 // pred_check_branch
        %147 = sbr.rel (%p144) target = $region28
      $region27: #{tpu_custom_call.1} parent=5 // pred_region
        %s148 = ssub.s32 %s15, 1
        // Predicated region
        $region29: #{tpu_custom_call.1} parent=27 // pred_check
          %p149 = pneg %p36
        $region30: #{tpu_custom_call.1} parent=27 // pred_check_branch
          %151 = sbr.rel (%p149) target = $region32
        $region31: #{tpu_custom_call.1} parent=27 // pred_region
          %152 = dma.done [#allocation3], 16384
        $region32: #{tpu_custom_call.1} parent=27 // pred_fallthru
          _
        %s153 = sand.u32 %s49, 1
        %s154 = scalar_lea.sflag [#allocation6], %s153
        %s155 = sand.u32 %s49, 1
        %s156 = smul.addr %s155, 4096
        %s157 = scalar_lea.vmem [#allocation5], %s156
        // Predicated region
        $region33: #{tpu_custom_call.1} parent=27 // pred_check
          %p158 = pneg %p62
        $region34: #{tpu_custom_call.1} parent=27 // pred_check_branch
          %160 = sbr.rel (%p158) target = $region36
        $region35: #{tpu_custom_call.1} parent=27 // pred_region
          %161 = dma.done %s154, 65536
        $region36: #{tpu_custom_call.1} parent=27 // pred_fallthru
          _
        %p162 = pneg %p36
        %p163 = pneg %p33
        %s164 = sand.u32 %s49, 1
        %s165 = scalar_lea.sflag [#allocation6], %s164
        %s166 = sand.u32 %s49, 1
        %s167 = smul.addr %s166, 4096
        %s168 = scalar_lea.vmem [#allocation5], %s167
        %p169 = pneg %p62
        %p170 = pneg %p59
        %p171 = pneg %p88
        %p172 = pneg %p85
        %s173 = sand.u32 %s75, 1
        %s174 = scalar_lea.sflag [#allocation4], %s173
        %s175 = sand.u32 %s75, 1
        %s176 = smul.addr %s175, 1024
        %s177 = scalar_lea.vmem [#allocation7], %s176
        %s178 = smul.u32 128, %s20
        %s179 = smul.u32 128, %s20
        %v181 = vld [vmem:[#allocation2] sm:$0xff]
        %v182 = vld [vmem:[#allocation2 + $0x8] sm:$0xff]
        %v183 = vld [vmem:[#allocation2 + $0x10] sm:$0xff]
        %v184 = vld [vmem:[#allocation2 + $0x18] sm:$0xff]
        %v185 = vld [vmem:[#allocation2 + $0x20] sm:$0xff]
        %v186 = vld [vmem:[#allocation2 + $0x28] sm:$0xff]
        %v187 = vld [vmem:[#allocation2 + $0x30] sm:$0xff]
        %v188 = vld [vmem:[#allocation2 + $0x38] sm:$0xff]
        %v189 = vld [vmem:[#allocation2 + $0x40] sm:$0xff]
        %v190 = vld [vmem:[#allocation2 + $0x48] sm:$0xff]
        %v191 = vld [vmem:[#allocation2 + $0x50] sm:$0xff]
        %v192 = vld [vmem:[#allocation2 + $0x58] sm:$0xff]
        %v193 = vld [vmem:[#allocation2 + $0x60] sm:$0xff]
        %v194 = vld [vmem:[#allocation2 + $0x68] sm:$0xff]
        %v195 = vld [vmem:[#allocation2 + $0x70] sm:$0xff]
        %v196 = vld [vmem:[#allocation2 + $0x78] sm:$0xff]
        %v197 = vld [vmem:[#allocation2 + $0x80] sm:$0xff]
        %v198 = vld [vmem:[#allocation2 + $0x88] sm:$0xff]
        %v199 = vld [vmem:[#allocation2 + $0x90] sm:$0xff]
        %v200 = vld [vmem:[#allocation2 + $0x98] sm:$0xff]
        %v201 = vld [vmem:[#allocation2 + $0xa0] sm:$0xff]
        %v202 = vld [vmem:[#allocation2 + $0xa8] sm:$0xff]
        %v203 = vld [vmem:[#allocation2 + $0xb0] sm:$0xff]
        %v204 = vld [vmem:[#allocation2 + $0xb8] sm:$0xff]
        %v205 = vld [vmem:[#allocation2 + $0xc0] sm:$0xff]
        %v206 = vld [vmem:[#allocation2 + $0xc8] sm:$0xff]
        %v207 = vld [vmem:[#allocation2 + $0xd0] sm:$0xff]
        %v208 = vld [vmem:[#allocation2 + $0xd8] sm:$0xff]
        %v209 = vld [vmem:[#allocation2 + $0xe0] sm:$0xff]
        %v210 = vld [vmem:[#allocation2 + $0xe8] sm:$0xff]
        %v211 = vld [vmem:[#allocation2 + $0xf0] sm:$0xff]
        %v212 = vld [vmem:[#allocation2 + $0xf8] sm:$0xff]
        %v213 = vld [vmem:[#allocation2 + $0x100] sm:$0xff]
        %v214 = vld [vmem:[#allocation2 + $0x108] sm:$0xff]
        %v215 = vld [vmem:[#allocation2 + $0x110] sm:$0xff]
        %v216 = vld [vmem:[#allocation2 + $0x118] sm:$0xff]
        %v217 = vld [vmem:[#allocation2 + $0x120] sm:$0xff]
        %v218 = vld [vmem:[#allocation2 + $0x128] sm:$0xff]
        %v219 = vld [vmem:[#allocation2 + $0x130] sm:$0xff]
        %v220 = vld [vmem:[#allocation2 + $0x138] sm:$0xff]
        %v221 = vld [vmem:[#allocation2 + $0x140] sm:$0xff]
        %v222 = vld [vmem:[#allocation2 + $0x148] sm:$0xff]
        %v223 = vld [vmem:[#allocation2 + $0x150] sm:$0xff]
        %v224 = vld [vmem:[#allocation2 + $0x158] sm:$0xff]
        %v225 = vld [vmem:[#allocation2 + $0x160] sm:$0xff]
        %v226 = vld [vmem:[#allocation2 + $0x168] sm:$0xff]
        %v227 = vld [vmem:[#allocation2 + $0x170] sm:$0xff]
        %v228 = vld [vmem:[#allocation2 + $0x178] sm:$0xff]
        %v229 = vld [vmem:[#allocation2 + $0x180] sm:$0xff]
        %v230 = vld [vmem:[#allocation2 + $0x188] sm:$0xff]
        %v231 = vld [vmem:[#allocation2 + $0x190] sm:$0xff]
        %v232 = vld [vmem:[#allocation2 + $0x198] sm:$0xff]
        %v233 = vld [vmem:[#allocation2 + $0x1a0] sm:$0xff]
        %v234 = vld [vmem:[#allocation2 + $0x1a8] sm:$0xff]
        %v235 = vld [vmem:[#allocation2 + $0x1b0] sm:$0xff]
        %v236 = vld [vmem:[#allocation2 + $0x1b8] sm:$0xff]
        %v237 = vld [vmem:[#allocation2 + $0x1c0] sm:$0xff]
        %v238 = vld [vmem:[#allocation2 + $0x1c8] sm:$0xff]
        %v239 = vld [vmem:[#allocation2 + $0x1d0] sm:$0xff]
        %v240 = vld [vmem:[#allocation2 + $0x1d8] sm:$0xff]
        %v241 = vld [vmem:[#allocation2 + $0x1e0] sm:$0xff]
        %v242 = vld [vmem:[#allocation2 + $0x1e8] sm:$0xff]
        %v243 = vld [vmem:[#allocation2 + $0x1f0] sm:$0xff]
        %v244 = vld [vmem:[#allocation2 + $0x1f8] sm:$0xff]
        %v245 = vld [vmem:[#allocation2 + $0x200] sm:$0xff]
        %v246 = vld [vmem:[#allocation2 + $0x208] sm:$0xff]
        %v247 = vld [vmem:[#allocation2 + $0x210] sm:$0xff]
        %v248 = vld [vmem:[#allocation2 + $0x218] sm:$0xff]
        %v249 = vld [vmem:[#allocation2 + $0x220] sm:$0xff]
        %v250 = vld [vmem:[#allocation2 + $0x228] sm:$0xff]
        %v251 = vld [vmem:[#allocation2 + $0x230] sm:$0xff]
        %v252 = vld [vmem:[#allocation2 + $0x238] sm:$0xff]
        %v253 = vld [vmem:[#allocation2 + $0x240] sm:$0xff]
        %v254 = vld [vmem:[#allocation2 + $0x248] sm:$0xff]
        %v255 = vld [vmem:[#allocation2 + $0x250] sm:$0xff]
        %v256 = vld [vmem:[#allocation2 + $0x258] sm:$0xff]
        %v257 = vld [vmem:[#allocation2 + $0x260] sm:$0xff]
        %v258 = vld [vmem:[#allocation2 + $0x268] sm:$0xff]
        %v259 = vld [vmem:[#allocation2 + $0x270] sm:$0xff]
        %v260 = vld [vmem:[#allocation2 + $0x278] sm:$0xff]
        %v261 = vld [vmem:[#allocation2 + $0x280] sm:$0xff]
        %v262 = vld [vmem:[#allocation2 + $0x288] sm:$0xff]
        %v263 = vld [vmem:[#allocation2 + $0x290] sm:$0xff]
        %v264 = vld [vmem:[#allocation2 + $0x298] sm:$0xff]
        %v265 = vld [vmem:[#allocation2 + $0x2a0] sm:$0xff]
        %v266 = vld [vmem:[#allocation2 + $0x2a8] sm:$0xff]
        %v267 = vld [vmem:[#allocation2 + $0x2b0] sm:$0xff]
        %v268 = vld [vmem:[#allocation2 + $0x2b8] sm:$0xff]
        %v269 = vld [vmem:[#allocation2 + $0x2c0] sm:$0xff]
        %v270 = vld [vmem:[#allocation2 + $0x2c8] sm:$0xff]
        %v271 = vld [vmem:[#allocation2 + $0x2d0] sm:$0xff]
        %v272 = vld [vmem:[#allocation2 + $0x2d8] sm:$0xff]
        %v273 = vld [vmem:[#allocation2 + $0x2e0] sm:$0xff]
        %v274 = vld [vmem:[#allocation2 + $0x2e8] sm:$0xff]
        %v275 = vld [vmem:[#allocation2 + $0x2f0] sm:$0xff]
        %v276 = vld [vmem:[#allocation2 + $0x2f8] sm:$0xff]
        %v277 = vld [vmem:[#allocation2 + $0x300] sm:$0xff]
        %v278 = vld [vmem:[#allocation2 + $0x308] sm:$0xff]
        %v279 = vld [vmem:[#allocation2 + $0x310] sm:$0xff]
        %v280 = vld [vmem:[#allocation2 + $0x318] sm:$0xff]
        %v281 = vld [vmem:[#allocation2 + $0x320] sm:$0xff]
        %v282 = vld [vmem:[#allocation2 + $0x328] sm:$0xff]
        %v283 = vld [vmem:[#allocation2 + $0x330] sm:$0xff]
        %v284 = vld [vmem:[#allocation2 + $0x338] sm:$0xff]
        %v285 = vld [vmem:[#allocation2 + $0x340] sm:$0xff]
        %v286 = vld [vmem:[#allocation2 + $0x348] sm:$0xff]
        %v287 = vld [vmem:[#allocation2 + $0x350] sm:$0xff]
        %v288 = vld [vmem:[#allocation2 + $0x358] sm:$0xff]
        %v289 = vld [vmem:[#allocation2 + $0x360] sm:$0xff]
        %v290 = vld [vmem:[#allocation2 + $0x368] sm:$0xff]
        %v291 = vld [vmem:[#allocation2 + $0x370] sm:$0xff]
        %v292 = vld [vmem:[#allocation2 + $0x378] sm:$0xff]
        %v293 = vld [vmem:[#allocation2 + $0x380] sm:$0xff]
        %v294 = vld [vmem:[#allocation2 + $0x388] sm:$0xff]
        %v295 = vld [vmem:[#allocation2 + $0x390] sm:$0xff]
        %v296 = vld [vmem:[#allocation2 + $0x398] sm:$0xff]
        %v297 = vld [vmem:[#allocation2 + $0x3a0] sm:$0xff]
        %v298 = vld [vmem:[#allocation2 + $0x3a8] sm:$0xff]
        %v299 = vld [vmem:[#allocation2 + $0x3b0] sm:$0xff]
        %v300 = vld [vmem:[#allocation2 + $0x3b8] sm:$0xff]
        %v301 = vld [vmem:[#allocation2 + $0x3c0] sm:$0xff]
        %v302 = vld [vmem:[#allocation2 + $0x3c8] sm:$0xff]
        %v303 = vld [vmem:[#allocation2 + $0x3d0] sm:$0xff]
        %v304 = vld [vmem:[#allocation2 + $0x3d8] sm:$0xff]
        %v305 = vld [vmem:[#allocation2 + $0x3e0] sm:$0xff]
        %v306 = vld [vmem:[#allocation2 + $0x3e8] sm:$0xff]
        %v307 = vld [vmem:[#allocation2 + $0x3f0] sm:$0xff]
        %v308 = vld [vmem:[#allocation2 + $0x3f8] sm:$0xff]
        %v309 = vmax.f32 %v181, 0.0
        %v310 = vmax.f32 %v182, 0.0
        %v311 = vmax.f32 %v183, 0.0
        %v312 = vmax.f32 %v184, 0.0
        %v313 = vmax.f32 %v185, 0.0
        %v314 = vmax.f32 %v186, 0.0
        %v315 = vmax.f32 %v187, 0.0
        %v316 = vmax.f32 %v188, 0.0
        %v317 = vmax.f32 %v189, 0.0
        %v318 = vmax.f32 %v190, 0.0
        %v319 = vmax.f32 %v191, 0.0
        %v320 = vmax.f32 %v192, 0.0
        %v321 = vmax.f32 %v193, 0.0
        %v322 = vmax.f32 %v194, 0.0
        %v323 = vmax.f32 %v195, 0.0
        %v324 = vmax.f32 %v196, 0.0
        %v325 = vmax.f32 %v197, 0.0
        %v326 = vmax.f32 %v198, 0.0
        %v327 = vmax.f32 %v199, 0.0
        %v328 = vmax.f32 %v200, 0.0
        %v329 = vmax.f32 %v201, 0.0
        %v330 = vmax.f32 %v202, 0.0
        %v331 = vmax.f32 %v203, 0.0
        %v332 = vmax.f32 %v204, 0.0
        %v333 = vmax.f32 %v205, 0.0
        %v334 = vmax.f32 %v206, 0.0
        %v335 = vmax.f32 %v207, 0.0
        %v336 = vmax.f32 %v208, 0.0
        %v337 = vmax.f32 %v209, 0.0
        %v338 = vmax.f32 %v210, 0.0
        %v339 = vmax.f32 %v211, 0.0
        %v340 = vmax.f32 %v212, 0.0
        %v341 = vmax.f32 %v213, 0.0
        %v342 = vmax.f32 %v214, 0.0
        %v343 = vmax.f32 %v215, 0.0
        %v344 = vmax.f32 %v216, 0.0
        %v345 = vmax.f32 %v217, 0.0
        %v346 = vmax.f32 %v218, 0.0
        %v347 = vmax.f32 %v219, 0.0
        %v348 = vmax.f32 %v220, 0.0
        %v349 = vmax.f32 %v221, 0.0
        %v350 = vmax.f32 %v222, 0.0
        %v351 = vmax.f32 %v223, 0.0
        %v352 = vmax.f32 %v224, 0.0
        %v353 = vmax.f32 %v225, 0.0
        %v354 = vmax.f32 %v226, 0.0
        %v355 = vmax.f32 %v227, 0.0
        %v356 = vmax.f32 %v228, 0.0
        %v357 = vmax.f32 %v229, 0.0
        %v358 = vmax.f32 %v230, 0.0
        %v359 = vmax.f32 %v231, 0.0
        %v360 = vmax.f32 %v232, 0.0
        %v361 = vmax.f32 %v233, 0.0
        %v362 = vmax.f32 %v234, 0.0
        %v363 = vmax.f32 %v235, 0.0
        %v364 = vmax.f32 %v236, 0.0
        %v365 = vmax.f32 %v237, 0.0
        %v366 = vmax.f32 %v238, 0.0
        %v367 = vmax.f32 %v239, 0.0
        %v368 = vmax.f32 %v240, 0.0
        %v369 = vmax.f32 %v241, 0.0
        %v370 = vmax.f32 %v242, 0.0
        %v371 = vmax.f32 %v243, 0.0
        %v372 = vmax.f32 %v244, 0.0
        %v373 = vmax.f32 %v245, 0.0
        %v374 = vmax.f32 %v246, 0.0
        %v375 = vmax.f32 %v247, 0.0
        %v376 = vmax.f32 %v248, 0.0
        %v377 = vmax.f32 %v249, 0.0
        %v378 = vmax.f32 %v250, 0.0
        %v379 = vmax.f32 %v251, 0.0
        %v380 = vmax.f32 %v252, 0.0
        %v381 = vmax.f32 %v253, 0.0
        %v382 = vmax.f32 %v254, 0.0
        %v383 = vmax.f32 %v255, 0.0
        %v384 = vmax.f32 %v256, 0.0
        %v385 = vmax.f32 %v257, 0.0
        %v386 = vmax.f32 %v258, 0.0
        %v387 = vmax.f32 %v259, 0.0
        %v388 = vmax.f32 %v260, 0.0
        %v389 = vmax.f32 %v261, 0.0
        %v390 = vmax.f32 %v262, 0.0
        %v391 = vmax.f32 %v263, 0.0
        %v392 = vmax.f32 %v264, 0.0
        %v393 = vmax.f32 %v265, 0.0
        %v394 = vmax.f32 %v266, 0.0
        %v395 = vmax.f32 %v267, 0.0
        %v396 = vmax.f32 %v268, 0.0
        %v397 = vmax.f32 %v269, 0.0
        %v398 = vmax.f32 %v270, 0.0
        %v399 = vmax.f32 %v271, 0.0
        %v400 = vmax.f32 %v272, 0.0
        %v401 = vmax.f32 %v273, 0.0
        %v402 = vmax.f32 %v274, 0.0
        %v403 = vmax.f32 %v275, 0.0
        %v404 = vmax.f32 %v276, 0.0
        %v405 = vmax.f32 %v277, 0.0
        %v406 = vmax.f32 %v278, 0.0
        %v407 = vmax.f32 %v279, 0.0
        %v408 = vmax.f32 %v280, 0.0
        %v409 = vmax.f32 %v281, 0.0
        %v410 = vmax.f32 %v282, 0.0
        %v411 = vmax.f32 %v283, 0.0
        %v412 = vmax.f32 %v284, 0.0
        %v413 = vmax.f32 %v285, 0.0
        %v414 = vmax.f32 %v286, 0.0
        %v415 = vmax.f32 %v287, 0.0
        %v416 = vmax.f32 %v288, 0.0
        %v417 = vmax.f32 %v289, 0.0
        %v418 = vmax.f32 %v290, 0.0
        %v419 = vmax.f32 %v291, 0.0
        %v420 = vmax.f32 %v292, 0.0
        %v421 = vmax.f32 %v293, 0.0
        %v422 = vmax.f32 %v294, 0.0
        %v423 = vmax.f32 %v295, 0.0
        %v424 = vmax.f32 %v296, 0.0
        %v425 = vmax.f32 %v297, 0.0
        %v426 = vmax.f32 %v298, 0.0
        %v427 = vmax.f32 %v299, 0.0
        %v428 = vmax.f32 %v300, 0.0
        %v429 = vmax.f32 %v301, 0.0
        %v430 = vmax.f32 %v302, 0.0
        %v431 = vmax.f32 %v303, 0.0
        %v432 = vmax.f32 %v304, 0.0
        %v433 = vmax.f32 %v305, 0.0
        %v434 = vmax.f32 %v306, 0.0
        %v435 = vmax.f32 %v307, 0.0
        %v436 = vmax.f32 %v308, 0.0
        %v437 = vpack.c.bf16 %v310, %v309
        %v438 = vpack.c.bf16 %v312, %v311
        %v439 = vpack.c.bf16 %v314, %v313
        %v440 = vpack.c.bf16 %v316, %v315
        %v441 = vpack.c.bf16 %v318, %v317
        %v442 = vpack.c.bf16 %v320, %v319
        %v443 = vpack.c.bf16 %v322, %v321
        %v444 = vpack.c.bf16 %v324, %v323
        %v445 = vpack.c.bf16 %v326, %v325
        %v446 = vpack.c.bf16 %v328, %v327
        %v447 = vpack.c.bf16 %v330, %v329
        %v448 = vpack.c.bf16 %v332, %v331
        %v449 = vpack.c.bf16 %v334, %v333
        %v450 = vpack.c.bf16 %v336, %v335
        %v451 = vpack.c.bf16 %v338, %v337
        %v452 = vpack.c.bf16 %v340, %v339
        %v453 = vpack.c.bf16 %v342, %v341
        %v454 = vpack.c.bf16 %v344, %v343
        %v455 = vpack.c.bf16 %v346, %v345
        %v456 = vpack.c.bf16 %v348, %v347
        %v457 = vpack.c.bf16 %v350, %v349
        %v458 = vpack.c.bf16 %v352, %v351
        %v459 = vpack.c.bf16 %v354, %v353
        %v460 = vpack.c.bf16 %v356, %v355
        %v461 = vpack.c.bf16 %v358, %v357
        %v462 = vpack.c.bf16 %v360, %v359
        %v463 = vpack.c.bf16 %v362, %v361
        %v464 = vpack.c.bf16 %v364, %v363
        %v465 = vpack.c.bf16 %v366, %v365
        %v466 = vpack.c.bf16 %v368, %v367
        %v467 = vpack.c.bf16 %v370, %v369
        %v468 = vpack.c.bf16 %v372, %v371
        %v469 = vpack.c.bf16 %v374, %v373
        %v470 = vpack.c.bf16 %v376, %v375
        %v471 = vpack.c.bf16 %v378, %v377
        %v472 = vpack.c.bf16 %v380, %v379
        %v473 = vpack.c.bf16 %v382, %v381
        %v474 = vpack.c.bf16 %v384, %v383
        %v475 = vpack.c.bf16 %v386, %v385
        %v476 = vpack.c.bf16 %v388, %v387
        %v477 = vpack.c.bf16 %v390, %v389
        %v478 = vpack.c.bf16 %v392, %v391
        %v479 = vpack.c.bf16 %v394, %v393
        %v480 = vpack.c.bf16 %v396, %v395
        %v481 = vpack.c.bf16 %v398, %v397
        %v482 = vpack.c.bf16 %v400, %v399
        %v483 = vpack.c.bf16 %v402, %v401
        %v484 = vpack.c.bf16 %v404, %v403
        %v485 = vpack.c.bf16 %v406, %v405
        %v486 = vpack.c.bf16 %v408, %v407
        %v487 = vpack.c.bf16 %v410, %v409
        %v488 = vpack.c.bf16 %v412, %v411
        %v489 = vpack.c.bf16 %v414, %v413
        %v490 = vpack.c.bf16 %v416, %v415
        %v491 = vpack.c.bf16 %v418, %v417
        %v492 = vpack.c.bf16 %v420, %v419
        %v493 = vpack.c.bf16 %v422, %v421
        %v494 = vpack.c.bf16 %v424, %v423
        %v495 = vpack.c.bf16 %v426, %v425
        %v496 = vpack.c.bf16 %v428, %v427
        %v497 = vpack.c.bf16 %v430, %v429
        %v498 = vpack.c.bf16 %v432, %v431
        %v499 = vpack.c.bf16 %v434, %v433
        %v500 = vpack.c.bf16 %v436, %v435
        %v501 = vld [vmem:[%s157] sm:$0xff]
        %v502 = vld [vmem:[%s157 + $0x8] sm:$0xff]
        %v503 = vld [vmem:[%s157 + $0x10] sm:$0xff]
        %v504 = vld [vmem:[%s157 + $0x18] sm:$0xff]
        %v505 = vld [vmem:[%s157 + $0x20] sm:$0xff]
        %v506 = vld [vmem:[%s157 + $0x28] sm:$0xff]
        %v507 = vld [vmem:[%s157 + $0x30] sm:$0xff]
        %v508 = vld [vmem:[%s157 + $0x38] sm:$0xff]
        %v509 = vld [vmem:[%s157 + $0x40] sm:$0xff]
        %v510 = vld [vmem:[%s157 + $0x48] sm:$0xff]
        %v511 = vld [vmem:[%s157 + $0x50] sm:$0xff]
        %v512 = vld [vmem:[%s157 + $0x58] sm:$0xff]
        %v513 = vld [vmem:[%s157 + $0x60] sm:$0xff]
        %v514 = vld [vmem:[%s157 + $0x68] sm:$0xff]
        %v515 = vld [vmem:[%s157 + $0x70] sm:$0xff]
        %v516 = vld [vmem:[%s157 + $0x78] sm:$0xff]
        %v517 = vld [vmem:[%s157 + $0x80] sm:$0xff]
        %v518 = vld [vmem:[%s157 + $0x88] sm:$0xff]
        %v519 = vld [vmem:[%s157 + $0x90] sm:$0xff]
        %v520 = vld [vmem:[%s157 + $0x98] sm:$0xff]
        %v521 = vld [vmem:[%s157 + $0xa0] sm:$0xff]
        %v522 = vld [vmem:[%s157 + $0xa8] sm:$0xff]
        %v523 = vld [vmem:[%s157 + $0xb0] sm:$0xff]
        %v524 = vld [vmem:[%s157 + $0xb8] sm:$0xff]
        %v525 = vld [vmem:[%s157 + $0xc0] sm:$0xff]
        %v526 = vld [vmem:[%s157 + $0xc8] sm:$0xff]
        %v527 = vld [vmem:[%s157 + $0xd0] sm:$0xff]
        %v528 = vld [vmem:[%s157 + $0xd8] sm:$0xff]
        %v529 = vld [vmem:[%s157 + $0xe0] sm:$0xff]
        %v530 = vld [vmem:[%s157 + $0xe8] sm:$0xff]
        %v531 = vld [vmem:[%s157 + $0xf0] sm:$0xff]
        %v532 = vld [vmem:[%s157 + $0xf8] sm:$0xff]
        %v533 = vld [vmem:[%s157 + $0x100] sm:$0xff]
        %v534 = vld [vmem:[%s157 + $0x108] sm:$0xff]
        %v535 = vld [vmem:[%s157 + $0x110] sm:$0xff]
        %v536 = vld [vmem:[%s157 + $0x118] sm:$0xff]
        %v537 = vld [vmem:[%s157 + $0x120] sm:$0xff]
        %v538 = vld [vmem:[%s157 + $0x128] sm:$0xff]
        %v539 = vld [vmem:[%s157 + $0x130] sm:$0xff]
        %v540 = vld [vmem:[%s157 + $0x138] sm:$0xff]
        %v541 = vld [vmem:[%s157 + $0x140] sm:$0xff]
        %v542 = vld [vmem:[%s157 + $0x148] sm:$0xff]
        %v543 = vld [vmem:[%s157 + $0x150] sm:$0xff]
        %v544 = vld [vmem:[%s157 + $0x158] sm:$0xff]
        %v545 = vld [vmem:[%s157 + $0x160] sm:$0xff]
        %v546 = vld [vmem:[%s157 + $0x168] sm:$0xff]
        %v547 = vld [vmem:[%s157 + $0x170] sm:$0xff]
        %v548 = vld [vmem:[%s157 + $0x178] sm:$0xff]
        %v549 = vld [vmem:[%s157 + $0x180] sm:$0xff]
        %v550 = vld [vmem:[%s157 + $0x188] sm:$0xff]
        %v551 = vld [vmem:[%s157 + $0x190] sm:$0xff]
        %v552 = vld [vmem:[%s157 + $0x198] sm:$0xff]
        %v553 = vld [vmem:[%s157 + $0x1a0] sm:$0xff]
        %v554 = vld [vmem:[%s157 + $0x1a8] sm:$0xff]
        %v555 = vld [vmem:[%s157 + $0x1b0] sm:$0xff]
        %v556 = vld [vmem:[%s157 + $0x1b8] sm:$0xff]
        %v557 = vld [vmem:[%s157 + $0x1c0] sm:$0xff]
        %v558 = vld [vmem:[%s157 + $0x1c8] sm:$0xff]
        %v559 = vld [vmem:[%s157 + $0x1d0] sm:$0xff]
        %v560 = vld [vmem:[%s157 + $0x1d8] sm:$0xff]
        %v561 = vld [vmem:[%s157 + $0x1e0] sm:$0xff]
        %v562 = vld [vmem:[%s157 + $0x1e8] sm:$0xff]
        %v563 = vld [vmem:[%s157 + $0x1f0] sm:$0xff]
        %v564 = vld [vmem:[%s157 + $0x1f8] sm:$0xff]
        %v565 = vld [vmem:[%s157 + $0x200] sm:$0xff]
        %v566 = vld [vmem:[%s157 + $0x208] sm:$0xff]
        %v567 = vld [vmem:[%s157 + $0x210] sm:$0xff]
        %v568 = vld [vmem:[%s157 + $0x218] sm:$0xff]
        %v569 = vld [vmem:[%s157 + $0x220] sm:$0xff]
        %v570 = vld [vmem:[%s157 + $0x228] sm:$0xff]
        %v571 = vld [vmem:[%s157 + $0x230] sm:$0xff]
        %v572 = vld [vmem:[%s157 + $0x238] sm:$0xff]
        %v573 = vld [vmem:[%s157 + $0x240] sm:$0xff]
        %v574 = vld [vmem:[%s157 + $0x248] sm:$0xff]
        %v575 = vld [vmem:[%s157 + $0x250] sm:$0xff]
        %v576 = vld [vmem:[%s157 + $0x258] sm:$0xff]
        %v577 = vld [vmem:[%s157 + $0x260] sm:$0xff]
        %v578 = vld [vmem:[%s157 + $0x268] sm:$0xff]
        %v579 = vld [vmem:[%s157 + $0x270] sm:$0xff]
        %v580 = vld [vmem:[%s157 + $0x278] sm:$0xff]
        %v581 = vld [vmem:[%s157 + $0x280] sm:$0xff]
        %v582 = vld [vmem:[%s157 + $0x288] sm:$0xff]
        %v583 = vld [vmem:[%s157 + $0x290] sm:$0xff]
        %v584 = vld [vmem:[%s157 + $0x298] sm:$0xff]
        %v585 = vld [vmem:[%s157 + $0x2a0] sm:$0xff]
        %v586 = vld [vmem:[%s157 + $0x2a8] sm:$0xff]
        %v587 = vld [vmem:[%s157 + $0x2b0] sm:$0xff]
        %v588 = vld [vmem:[%s157 + $0x2b8] sm:$0xff]
        %v589 = vld [vmem:[%s157 + $0x2c0] sm:$0xff]
        %v590 = vld [vmem:[%s157 + $0x2c8] sm:$0xff]
        %v591 = vld [vmem:[%s157 + $0x2d0] sm:$0xff]
        %v592 = vld [vmem:[%s157 + $0x2d8] sm:$0xff]
        %v593 = vld [vmem:[%s157 + $0x2e0] sm:$0xff]
        %v594 = vld [vmem:[%s157 + $0x2e8] sm:$0xff]
        %v595 = vld [vmem:[%s157 + $0x2f0] sm:$0xff]
        %v596 = vld [vmem:[%s157 + $0x2f8] sm:$0xff]
        %v597 = vld [vmem:[%s157 + $0x300] sm:$0xff]
        %v598 = vld [vmem:[%s157 + $0x308] sm:$0xff]
        %v599 = vld [vmem:[%s157 + $0x310] sm:$0xff]
        %v600 = vld [vmem:[%s157 + $0x318] sm:$0xff]
        %v601 = vld [vmem:[%s157 + $0x320] sm:$0xff]
        %v602 = vld [vmem:[%s157 + $0x328] sm:$0xff]
        %v603 = vld [vmem:[%s157 + $0x330] sm:$0xff]
        %v604 = vld [vmem:[%s157 + $0x338] sm:$0xff]
        %v605 = vld [vmem:[%s157 + $0x340] sm:$0xff]
        %v606 = vld [vmem:[%s157 + $0x348] sm:$0xff]
        %v607 = vld [vmem:[%s157 + $0x350] sm:$0xff]
        %v608 = vld [vmem:[%s157 + $0x358] sm:$0xff]
        %v609 = vld [vmem:[%s157 + $0x360] sm:$0xff]
        %v610 = vld [vmem:[%s157 + $0x368] sm:$0xff]
        %v611 = vld [vmem:[%s157 + $0x370] sm:$0xff]
        %v612 = vld [vmem:[%s157 + $0x378] sm:$0xff]
        %v613 = vld [vmem:[%s157 + $0x380] sm:$0xff]
        %v614 = vld [vmem:[%s157 + $0x388] sm:$0xff]
        %v615 = vld [vmem:[%s157 + $0x390] sm:$0xff]
        %v616 = vld [vmem:[%s157 + $0x398] sm:$0xff]
        %v617 = vld [vmem:[%s157 + $0x3a0] sm:$0xff]
        %v618 = vld [vmem:[%s157 + $0x3a8] sm:$0xff]
        %v619 = vld [vmem:[%s157 + $0x3b0] sm:$0xff]
        %v620 = vld [vmem:[%s157 + $0x3b8] sm:$0xff]
        %v621 = vld [vmem:[%s157 + $0x3c0] sm:$0xff]
        %v622 = vld [vmem:[%s157 + $0x3c8] sm:$0xff]
        %v623 = vld [vmem:[%s157 + $0x3d0] sm:$0xff]
        %v624 = vld [vmem:[%s157 + $0x3d8] sm:$0xff]
        %v625 = vld [vmem:[%s157 + $0x3e0] sm:$0xff]
        %v626 = vld [vmem:[%s157 + $0x3e8] sm:$0xff]
        %v627 = vld [vmem:[%s157 + $0x3f0] sm:$0xff]
        %v628 = vld [vmem:[%s157 + $0x3f8] sm:$0xff]
        %v629 = vld [vmem:[%s157 + $0x400] sm:$0xff]
        %v630 = vld [vmem:[%s157 + $0x408] sm:$0xff]
        %v631 = vld [vmem:[%s157 + $0x410] sm:$0xff]
        %v632 = vld [vmem:[%s157 + $0x418] sm:$0xff]
        %v633 = vld [vmem:[%s157 + $0x420] sm:$0xff]
        %v634 = vld [vmem:[%s157 + $0x428] sm:$0xff]
        %v635 = vld [vmem:[%s157 + $0x430] sm:$0xff]
        %v636 = vld [vmem:[%s157 + $0x438] sm:$0xff]
        %v637 = vld [vmem:[%s157 + $0x440] sm:$0xff]
        %v638 = vld [vmem:[%s157 + $0x448] sm:$0xff]
        %v639 = vld [vmem:[%s157 + $0x450] sm:$0xff]
        %v640 = vld [vmem:[%s157 + $0x458] sm:$0xff]
        %v641 = vld [vmem:[%s157 + $0x460] sm:$0xff]
        %v642 = vld [vmem:[%s157 + $0x468] sm:$0xff]
        %v643 = vld [vmem:[%s157 + $0x470] sm:$0xff]
        %v644 = vld [vmem:[%s157 + $0x478] sm:$0xff]
        %v645 = vld [vmem:[%s157 + $0x480] sm:$0xff]
        %v646 = vld [vmem:[%s157 + $0x488] sm:$0xff]
        %v647 = vld [vmem:[%s157 + $0x490] sm:$0xff]
        %v648 = vld [vmem:[%s157 + $0x498] sm:$0xff]
        %v649 = vld [vmem:[%s157 + $0x4a0] sm:$0xff]
        %v650 = vld [vmem:[%s157 + $0x4a8] sm:$0xff]
        %v651 = vld [vmem:[%s157 + $0x4b0] sm:$0xff]
        %v652 = vld [vmem:[%s157 + $0x4b8] sm:$0xff]
        %v653 = vld [vmem:[%s157 + $0x4c0] sm:$0xff]
        %v654 = vld [vmem:[%s157 + $0x4c8] sm:$0xff]
        %v655 = vld [vmem:[%s157 + $0x4d0] sm:$0xff]
        %v656 = vld [vmem:[%s157 + $0x4d8] sm:$0xff]
        %v657 = vld [vmem:[%s157 + $0x4e0] sm:$0xff]
        %v658 = vld [vmem:[%s157 + $0x4e8] sm:$0xff]
        %v659 = vld [vmem:[%s157 + $0x4f0] sm:$0xff]
        %v660 = vld [vmem:[%s157 + $0x4f8] sm:$0xff]
        %v661 = vld [vmem:[%s157 + $0x500] sm:$0xff]
        %v662 = vld [vmem:[%s157 + $0x508] sm:$0xff]
        %v663 = vld [vmem:[%s157 + $0x510] sm:$0xff]
        %v664 = vld [vmem:[%s157 + $0x518] sm:$0xff]
        %v665 = vld [vmem:[%s157 + $0x520] sm:$0xff]
        %v666 = vld [vmem:[%s157 + $0x528] sm:$0xff]
        %v667 = vld [vmem:[%s157 + $0x530] sm:$0xff]
        %v668 = vld [vmem:[%s157 + $0x538] sm:$0xff]
        %v669 = vld [vmem:[%s157 + $0x540] sm:$0xff]
        %v670 = vld [vmem:[%s157 + $0x548] sm:$0xff]
        %v671 = vld [vmem:[%s157 + $0x550] sm:$0xff]
        %v672 = vld [vmem:[%s157 + $0x558] sm:$0xff]
        %v673 = vld [vmem:[%s157 + $0x560] sm:$0xff]
        %v674 = vld [vmem:[%s157 + $0x568] sm:$0xff]
        %v675 = vld [vmem:[%s157 + $0x570] sm:$0xff]
        %v676 = vld [vmem:[%s157 + $0x578] sm:$0xff]
        %v677 = vld [vmem:[%s157 + $0x580] sm:$0xff]
        %v678 = vld [vmem:[%s157 + $0x588] sm:$0xff]
        %v679 = vld [vmem:[%s157 + $0x590] sm:$0xff]
        %v680 = vld [vmem:[%s157 + $0x598] sm:$0xff]
        %v681 = vld [vmem:[%s157 + $0x5a0] sm:$0xff]
        %v682 = vld [vmem:[%s157 + $0x5a8] sm:$0xff]
        %v683 = vld [vmem:[%s157 + $0x5b0] sm:$0xff]
        %v684 = vld [vmem:[%s157 + $0x5b8] sm:$0xff]
        %v685 = vld [vmem:[%s157 + $0x5c0] sm:$0xff]
        %v686 = vld [vmem:[%s157 + $0x5c8] sm:$0xff]
        %v687 = vld [vmem:[%s157 + $0x5d0] sm:$0xff]
        %v688 = vld [vmem:[%s157 + $0x5d8] sm:$0xff]
        %v689 = vld [vmem:[%s157 + $0x5e0] sm:$0xff]
        %v690 = vld [vmem:[%s157 + $0x5e8] sm:$0xff]
        %v691 = vld [vmem:[%s157 + $0x5f0] sm:$0xff]
        %v692 = vld [vmem:[%s157 + $0x5f8] sm:$0xff]
        %v693 = vld [vmem:[%s157 + $0x600] sm:$0xff]
        %v694 = vld [vmem:[%s157 + $0x608] sm:$0xff]
        %v695 = vld [vmem:[%s157 + $0x610] sm:$0xff]
        %v696 = vld [vmem:[%s157 + $0x618] sm:$0xff]
        %v697 = vld [vmem:[%s157 + $0x620] sm:$0xff]
        %v698 = vld [vmem:[%s157 + $0x628] sm:$0xff]
        %v699 = vld [vmem:[%s157 + $0x630] sm:$0xff]
        %v700 = vld [vmem:[%s157 + $0x638] sm:$0xff]
        %v701 = vld [vmem:[%s157 + $0x640] sm:$0xff]
        %v702 = vld [vmem:[%s157 + $0x648] sm:$0xff]
        %v703 = vld [vmem:[%s157 + $0x650] sm:$0xff]
        %v704 = vld [vmem:[%s157 + $0x658] sm:$0xff]
        %v705 = vld [vmem:[%s157 + $0x660] sm:$0xff]
        %v706 = vld [vmem:[%s157 + $0x668] sm:$0xff]
        %v707 = vld [vmem:[%s157 + $0x670] sm:$0xff]
        %v708 = vld [vmem:[%s157 + $0x678] sm:$0xff]
        %v709 = vld [vmem:[%s157 + $0x680] sm:$0xff]
        %v710 = vld [vmem:[%s157 + $0x688] sm:$0xff]
        %v711 = vld [vmem:[%s157 + $0x690] sm:$0xff]
        %v712 = vld [vmem:[%s157 + $0x698] sm:$0xff]
        %v713 = vld [vmem:[%s157 + $0x6a0] sm:$0xff]
        %v714 = vld [vmem:[%s157 + $0x6a8] sm:$0xff]
        %v715 = vld [vmem:[%s157 + $0x6b0] sm:$0xff]
        %v716 = vld [vmem:[%s157 + $0x6b8] sm:$0xff]
        %v717 = vld [vmem:[%s157 + $0x6c0] sm:$0xff]
        %v718 = vld [vmem:[%s157 + $0x6c8] sm:$0xff]
        %v719 = vld [vmem:[%s157 + $0x6d0] sm:$0xff]
        %v720 = vld [vmem:[%s157 + $0x6d8] sm:$0xff]
        %v721 = vld [vmem:[%s157 + $0x6e0] sm:$0xff]
        %v722 = vld [vmem:[%s157 + $0x6e8] sm:$0xff]
        %v723 = vld [vmem:[%s157 + $0x6f0] sm:$0xff]
        %v724 = vld [vmem:[%s157 + $0x6f8] sm:$0xff]
        %v725 = vld [vmem:[%s157 + $0x700] sm:$0xff]
        %v726 = vld [vmem:[%s157 + $0x708] sm:$0xff]
        %v727 = vld [vmem:[%s157 + $0x710] sm:$0xff]
        %v728 = vld [vmem:[%s157 + $0x718] sm:$0xff]
        %v729 = vld [vmem:[%s157 + $0x720] sm:$0xff]
        %v730 = vld [vmem:[%s157 + $0x728] sm:$0xff]
        %v731 = vld [vmem:[%s157 + $0x730] sm:$0xff]
        %v732 = vld [vmem:[%s157 + $0x738] sm:$0xff]
        %v733 = vld [vmem:[%s157 + $0x740] sm:$0xff]
        %v734 = vld [vmem:[%s157 + $0x748] sm:$0xff]
        %v735 = vld [vmem:[%s157 + $0x750] sm:$0xff]
        %v736 = vld [vmem:[%s157 + $0x758] sm:$0xff]
        %v737 = vld [vmem:[%s157 + $0x760] sm:$0xff]
        %v738 = vld [vmem:[%s157 + $0x768] sm:$0xff]
        %v739 = vld [vmem:[%s157 + $0x770] sm:$0xff]
        %v740 = vld [vmem:[%s157 + $0x778] sm:$0xff]
        %v741 = vld [vmem:[%s157 + $0x780] sm:$0xff]
        %v742 = vld [vmem:[%s157 + $0x788] sm:$0xff]
        %v743 = vld [vmem:[%s157 + $0x790] sm:$0xff]
        %v744 = vld [vmem:[%s157 + $0x798] sm:$0xff]
        %v745 = vld [vmem:[%s157 + $0x7a0] sm:$0xff]
        %v746 = vld [vmem:[%s157 + $0x7a8] sm:$0xff]
        %v747 = vld [vmem:[%s157 + $0x7b0] sm:$0xff]
        %v748 = vld [vmem:[%s157 + $0x7b8] sm:$0xff]
        %v749 = vld [vmem:[%s157 + $0x7c0] sm:$0xff]
        %v750 = vld [vmem:[%s157 + $0x7c8] sm:$0xff]
        %v751 = vld [vmem:[%s157 + $0x7d0] sm:$0xff]
        %v752 = vld [vmem:[%s157 + $0x7d8] sm:$0xff]
        %v753 = vld [vmem:[%s157 + $0x7e0] sm:$0xff]
        %v754 = vld [vmem:[%s157 + $0x7e8] sm:$0xff]
        %v755 = vld [vmem:[%s157 + $0x7f0] sm:$0xff]
        %v756 = vld [vmem:[%s157 + $0x7f8] sm:$0xff]
        %v757 = vld [vmem:[%s157 + $0x800] sm:$0xff]
        %v758 = vld [vmem:[%s157 + $0x808] sm:$0xff]
        %v759 = vld [vmem:[%s157 + $0x810] sm:$0xff]
        %v760 = vld [vmem:[%s157 + $0x818] sm:$0xff]
        %v761 = vld [vmem:[%s157 + $0x820] sm:$0xff]
        %v762 = vld [vmem:[%s157 + $0x828] sm:$0xff]
        %v763 = vld [vmem:[%s157 + $0x830] sm:$0xff]
        %v764 = vld [vmem:[%s157 + $0x838] sm:$0xff]
        %v765 = vld [vmem:[%s157 + $0x840] sm:$0xff]
        %v766 = vld [vmem:[%s157 + $0x848] sm:$0xff]
        %v767 = vld [vmem:[%s157 + $0x850] sm:$0xff]
        %v768 = vld [vmem:[%s157 + $0x858] sm:$0xff]
        %v769 = vld [vmem:[%s157 + $0x860] sm:$0xff]
        %v770 = vld [vmem:[%s157 + $0x868] sm:$0xff]
        %v771 = vld [vmem:[%s157 + $0x870] sm:$0xff]
        %v772 = vld [vmem:[%s157 + $0x878] sm:$0xff]
        %v773 = vld [vmem:[%s157 + $0x880] sm:$0xff]
        %v774 = vld [vmem:[%s157 + $0x888] sm:$0xff]
        %v775 = vld [vmem:[%s157 + $0x890] sm:$0xff]
        %v776 = vld [vmem:[%s157 + $0x898] sm:$0xff]
        %v777 = vld [vmem:[%s157 + $0x8a0] sm:$0xff]
        %v778 = vld [vmem:[%s157 + $0x8a8] sm:$0xff]
        %v779 = vld [vmem:[%s157 + $0x8b0] sm:$0xff]
        %v780 = vld [vmem:[%s157 + $0x8b8] sm:$0xff]
        %v781 = vld [vmem:[%s157 + $0x8c0] sm:$0xff]
        %v782 = vld [vmem:[%s157 + $0x8c8] sm:$0xff]
        %v783 = vld [vmem:[%s157 + $0x8d0] sm:$0xff]
        %v784 = vld [vmem:[%s157 + $0x8d8] sm:$0xff]
        %v785 = vld [vmem:[%s157 + $0x8e0] sm:$0xff]
        %v786 = vld [vmem:[%s157 + $0x8e8] sm:$0xff]
        %v787 = vld [vmem:[%s157 + $0x8f0] sm:$0xff]
        %v788 = vld [vmem:[%s157 + $0x8f8] sm:$0xff]
        %v789 = vld [vmem:[%s157 + $0x900] sm:$0xff]
        %v790 = vld [vmem:[%s157 + $0x908] sm:$0xff]
        %v791 = vld [vmem:[%s157 + $0x910] sm:$0xff]
        %v792 = vld [vmem:[%s157 + $0x918] sm:$0xff]
        %v793 = vld [vmem:[%s157 + $0x920] sm:$0xff]
        %v794 = vld [vmem:[%s157 + $0x928] sm:$0xff]
        %v795 = vld [vmem:[%s157 + $0x930] sm:$0xff]
        %v796 = vld [vmem:[%s157 + $0x938] sm:$0xff]
        %v797 = vld [vmem:[%s157 + $0x940] sm:$0xff]
        %v798 = vld [vmem:[%s157 + $0x948] sm:$0xff]
        %v799 = vld [vmem:[%s157 + $0x950] sm:$0xff]
        %v800 = vld [vmem:[%s157 + $0x958] sm:$0xff]
        %v801 = vld [vmem:[%s157 + $0x960] sm:$0xff]
        %v802 = vld [vmem:[%s157 + $0x968] sm:$0xff]
        %v803 = vld [vmem:[%s157 + $0x970] sm:$0xff]
        %v804 = vld [vmem:[%s157 + $0x978] sm:$0xff]
        %v805 = vld [vmem:[%s157 + $0x980] sm:$0xff]
        %v806 = vld [vmem:[%s157 + $0x988] sm:$0xff]
        %v807 = vld [vmem:[%s157 + $0x990] sm:$0xff]
        %v808 = vld [vmem:[%s157 + $0x998] sm:$0xff]
        %v809 = vld [vmem:[%s157 + $0x9a0] sm:$0xff]
        %v810 = vld [vmem:[%s157 + $0x9a8] sm:$0xff]
        %v811 = vld [vmem:[%s157 + $0x9b0] sm:$0xff]
        %v812 = vld [vmem:[%s157 + $0x9b8] sm:$0xff]
        %v813 = vld [vmem:[%s157 + $0x9c0] sm:$0xff]
        %v814 = vld [vmem:[%s157 + $0x9c8] sm:$0xff]
        %v815 = vld [vmem:[%s157 + $0x9d0] sm:$0xff]
        %v816 = vld [vmem:[%s157 + $0x9d8] sm:$0xff]
        %v817 = vld [vmem:[%s157 + $0x9e0] sm:$0xff]
        %v818 = vld [vmem:[%s157 + $0x9e8] sm:$0xff]
        %v819 = vld [vmem:[%s157 + $0x9f0] sm:$0xff]
        %v820 = vld [vmem:[%s157 + $0x9f8] sm:$0xff]
        %v821 = vld [vmem:[%s157 + $0xa00] sm:$0xff]
        %v822 = vld [vmem:[%s157 + $0xa08] sm:$0xff]
        %v823 = vld [vmem:[%s157 + $0xa10] sm:$0xff]
        %v824 = vld [vmem:[%s157 + $0xa18] sm:$0xff]
        %v825 = vld [vmem:[%s157 + $0xa20] sm:$0xff]
        %v826 = vld [vmem:[%s157 + $0xa28] sm:$0xff]
        %v827 = vld [vmem:[%s157 + $0xa30] sm:$0xff]
        %v828 = vld [vmem:[%s157 + $0xa38] sm:$0xff]
        %v829 = vld [vmem:[%s157 + $0xa40] sm:$0xff]
        %v830 = vld [vmem:[%s157 + $0xa48] sm:$0xff]
        %v831 = vld [vmem:[%s157 + $0xa50] sm:$0xff]
        %v832 = vld [vmem:[%s157 + $0xa58] sm:$0xff]
        %v833 = vld [vmem:[%s157 + $0xa60] sm:$0xff]
        %v834 = vld [vmem:[%s157 + $0xa68] sm:$0xff]
        %v835 = vld [vmem:[%s157 + $0xa70] sm:$0xff]
        %v836 = vld [vmem:[%s157 + $0xa78] sm:$0xff]
        %v837 = vld [vmem:[%s157 + $0xa80] sm:$0xff]
        %v838 = vld [vmem:[%s157 + $0xa88] sm:$0xff]
        %v839 = vld [vmem:[%s157 + $0xa90] sm:$0xff]
        %v840 = vld [vmem:[%s157 + $0xa98] sm:$0xff]
        %v841 = vld [vmem:[%s157 + $0xaa0] sm:$0xff]
        %v842 = vld [vmem:[%s157 + $0xaa8] sm:$0xff]
        %v843 = vld [vmem:[%s157 + $0xab0] sm:$0xff]
        %v844 = vld [vmem:[%s157 + $0xab8] sm:$0xff]
        %v845 = vld [vmem:[%s157 + $0xac0] sm:$0xff]
        %v846 = vld [vmem:[%s157 + $0xac8] sm:$0xff]
        %v847 = vld [vmem:[%s157 + $0xad0] sm:$0xff]
        %v848 = vld [vmem:[%s157 + $0xad8] sm:$0xff]
        %v849 = vld [vmem:[%s157 + $0xae0] sm:$0xff]
        %v850 = vld [vmem:[%s157 + $0xae8] sm:$0xff]
        %v851 = vld [vmem:[%s157 + $0xaf0] sm:$0xff]
        %v852 = vld [vmem:[%s157 + $0xaf8] sm:$0xff]
        %v853 = vld [vmem:[%s157 + $0xb00] sm:$0xff]
        %v854 = vld [vmem:[%s157 + $0xb08] sm:$0xff]
        %v855 = vld [vmem:[%s157 + $0xb10] sm:$0xff]
        %v856 = vld [vmem:[%s157 + $0xb18] sm:$0xff]
        %v857 = vld [vmem:[%s157 + $0xb20] sm:$0xff]
        %v858 = vld [vmem:[%s157 + $0xb28] sm:$0xff]
        %v859 = vld [vmem:[%s157 + $0xb30] sm:$0xff]
        %v860 = vld [vmem:[%s157 + $0xb38] sm:$0xff]
        %v861 = vld [vmem:[%s157 + $0xb40] sm:$0xff]
        %v862 = vld [vmem:[%s157 + $0xb48] sm:$0xff]
        %v863 = vld [vmem:[%s157 + $0xb50] sm:$0xff]
        %v864 = vld [vmem:[%s157 + $0xb58] sm:$0xff]
        %v865 = vld [vmem:[%s157 + $0xb60] sm:$0xff]
        %v866 = vld [vmem:[%s157 + $0xb68] sm:$0xff]
        %v867 = vld [vmem:[%s157 + $0xb70] sm:$0xff]
        %v868 = vld [vmem:[%s157 + $0xb78] sm:$0xff]
        %v869 = vld [vmem:[%s157 + $0xb80] sm:$0xff]
        %v870 = vld [vmem:[%s157 + $0xb88] sm:$0xff]
        %v871 = vld [vmem:[%s157 + $0xb90] sm:$0xff]
        %v872 = vld [vmem:[%s157 + $0xb98] sm:$0xff]
        %v873 = vld [vmem:[%s157 + $0xba0] sm:$0xff]
        %v874 = vld [vmem:[%s157 + $0xba8] sm:$0xff]
        %v875 = vld [vmem:[%s157 + $0xbb0] sm:$0xff]
        %v876 = vld [vmem:[%s157 + $0xbb8] sm:$0xff]
        %v877 = vld [vmem:[%s157 + $0xbc0] sm:$0xff]
        %v878 = vld [vmem:[%s157 + $0xbc8] sm:$0xff]
        %v879 = vld [vmem:[%s157 + $0xbd0] sm:$0xff]
        %v880 = vld [vmem:[%s157 + $0xbd8] sm:$0xff]
        %v881 = vld [vmem:[%s157 + $0xbe0] sm:$0xff]
        %v882 = vld [vmem:[%s157 + $0xbe8] sm:$0xff]
        %v883 = vld [vmem:[%s157 + $0xbf0] sm:$0xff]
        %v884 = vld [vmem:[%s157 + $0xbf8] sm:$0xff]
        %v885 = vld [vmem:[%s157 + $0xc00] sm:$0xff]
        %v886 = vld [vmem:[%s157 + $0xc08] sm:$0xff]
        %v887 = vld [vmem:[%s157 + $0xc10] sm:$0xff]
        %v888 = vld [vmem:[%s157 + $0xc18] sm:$0xff]
        %v889 = vld [vmem:[%s157 + $0xc20] sm:$0xff]
        %v890 = vld [vmem:[%s157 + $0xc28] sm:$0xff]
        %v891 = vld [vmem:[%s157 + $0xc30] sm:$0xff]
        %v892 = vld [vmem:[%s157 + $0xc38] sm:$0xff]
        %v893 = vld [vmem:[%s157 + $0xc40] sm:$0xff]
        %v894 = vld [vmem:[%s157 + $0xc48] sm:$0xff]
        %v895 = vld [vmem:[%s157 + $0xc50] sm:$0xff]
        %v896 = vld [vmem:[%s157 + $0xc58] sm:$0xff]
        %v897 = vld [vmem:[%s157 + $0xc60] sm:$0xff]
        %v898 = vld [vmem:[%s157 + $0xc68] sm:$0xff]
        %v899 = vld [vmem:[%s157 + $0xc70] sm:$0xff]
        %v900 = vld [vmem:[%s157 + $0xc78] sm:$0xff]
        %v901 = vld [vmem:[%s157 + $0xc80] sm:$0xff]
        %v902 = vld [vmem:[%s157 + $0xc88] sm:$0xff]
        %v903 = vld [vmem:[%s157 + $0xc90] sm:$0xff]
        %v904 = vld [vmem:[%s157 + $0xc98] sm:$0xff]
        %v905 = vld [vmem:[%s157 + $0xca0] sm:$0xff]
        %v906 = vld [vmem:[%s157 + $0xca8] sm:$0xff]
        %v907 = vld [vmem:[%s157 + $0xcb0] sm:$0xff]
        %v908 = vld [vmem:[%s157 + $0xcb8] sm:$0xff]
        %v909 = vld [vmem:[%s157 + $0xcc0] sm:$0xff]
        %v910 = vld [vmem:[%s157 + $0xcc8] sm:$0xff]
        %v911 = vld [vmem:[%s157 + $0xcd0] sm:$0xff]
        %v912 = vld [vmem:[%s157 + $0xcd8] sm:$0xff]
        %v913 = vld [vmem:[%s157 + $0xce0] sm:$0xff]
        %v914 = vld [vmem:[%s157 + $0xce8] sm:$0xff]
        %v915 = vld [vmem:[%s157 + $0xcf0] sm:$0xff]
        %v916 = vld [vmem:[%s157 + $0xcf8] sm:$0xff]
        %v917 = vld [vmem:[%s157 + $0xd00] sm:$0xff]
        %v918 = vld [vmem:[%s157 + $0xd08] sm:$0xff]
        %v919 = vld [vmem:[%s157 + $0xd10] sm:$0xff]
        %v920 = vld [vmem:[%s157 + $0xd18] sm:$0xff]
        %v921 = vld [vmem:[%s157 + $0xd20] sm:$0xff]
        %v922 = vld [vmem:[%s157 + $0xd28] sm:$0xff]
        %v923 = vld [vmem:[%s157 + $0xd30] sm:$0xff]
        %v924 = vld [vmem:[%s157 + $0xd38] sm:$0xff]
        %v925 = vld [vmem:[%s157 + $0xd40] sm:$0xff]
        %v926 = vld [vmem:[%s157 + $0xd48] sm:$0xff]
        %v927 = vld [vmem:[%s157 + $0xd50] sm:$0xff]
        %v928 = vld [vmem:[%s157 + $0xd58] sm:$0xff]
        %v929 = vld [vmem:[%s157 + $0xd60] sm:$0xff]
        %v930 = vld [vmem:[%s157 + $0xd68] sm:$0xff]
        %v931 = vld [vmem:[%s157 + $0xd70] sm:$0xff]
        %v932 = vld [vmem:[%s157 + $0xd78] sm:$0xff]
        %v933 = vld [vmem:[%s157 + $0xd80] sm:$0xff]
        %v934 = vld [vmem:[%s157 + $0xd88] sm:$0xff]
        %v935 = vld [vmem:[%s157 + $0xd90] sm:$0xff]
        %v936 = vld [vmem:[%s157 + $0xd98] sm:$0xff]
        %v937 = vld [vmem:[%s157 + $0xda0] sm:$0xff]
        %v938 = vld [vmem:[%s157 + $0xda8] sm:$0xff]
        %v939 = vld [vmem:[%s157 + $0xdb0] sm:$0xff]
        %v940 = vld [vmem:[%s157 + $0xdb8] sm:$0xff]
        %v941 = vld [vmem:[%s157 + $0xdc0] sm:$0xff]
        %v942 = vld [vmem:[%s157 + $0xdc8] sm:$0xff]
        %v943 = vld [vmem:[%s157 + $0xdd0] sm:$0xff]
        %v944 = vld [vmem:[%s157 + $0xdd8] sm:$0xff]
        %v945 = vld [vmem:[%s157 + $0xde0] sm:$0xff]
        %v946 = vld [vmem:[%s157 + $0xde8] sm:$0xff]
        %v947 = vld [vmem:[%s157 + $0xdf0] sm:$0xff]
        %v948 = vld [vmem:[%s157 + $0xdf8] sm:$0xff]
        %v949 = vld [vmem:[%s157 + $0xe00] sm:$0xff]
        %v950 = vld [vmem:[%s157 + $0xe08] sm:$0xff]
        %v951 = vld [vmem:[%s157 + $0xe10] sm:$0xff]
        %v952 = vld [vmem:[%s157 + $0xe18] sm:$0xff]
        %v953 = vld [vmem:[%s157 + $0xe20] sm:$0xff]
        %v954 = vld [vmem:[%s157 + $0xe28] sm:$0xff]
        %v955 = vld [vmem:[%s157 + $0xe30] sm:$0xff]
        %v956 = vld [vmem:[%s157 + $0xe38] sm:$0xff]
        %v957 = vld [vmem:[%s157 + $0xe40] sm:$0xff]
        %v958 = vld [vmem:[%s157 + $0xe48] sm:$0xff]
        %v959 = vld [vmem:[%s157 + $0xe50] sm:$0xff]
        %v960 = vld [vmem:[%s157 + $0xe58] sm:$0xff]
        %v961 = vld [vmem:[%s157 + $0xe60] sm:$0xff]
        %v962 = vld [vmem:[%s157 + $0xe68] sm:$0xff]
        %v963 = vld [vmem:[%s157 + $0xe70] sm:$0xff]
        %v964 = vld [vmem:[%s157 + $0xe78] sm:$0xff]
        %v965 = vld [vmem:[%s157 + $0xe80] sm:$0xff]
        %v966 = vld [vmem:[%s157 + $0xe88] sm:$0xff]
        %v967 = vld [vmem:[%s157 + $0xe90] sm:$0xff]
        %v968 = vld [vmem:[%s157 + $0xe98] sm:$0xff]
        %v969 = vld [vmem:[%s157 + $0xea0] sm:$0xff]
        %v970 = vld [vmem:[%s157 + $0xea8] sm:$0xff]
        %v971 = vld [vmem:[%s157 + $0xeb0] sm:$0xff]
        %v972 = vld [vmem:[%s157 + $0xeb8] sm:$0xff]
        %v973 = vld [vmem:[%s157 + $0xec0] sm:$0xff]
        %v974 = vld [vmem:[%s157 + $0xec8] sm:$0xff]
        %v975 = vld [vmem:[%s157 + $0xed0] sm:$0xff]
        %v976 = vld [vmem:[%s157 + $0xed8] sm:$0xff]
        %v977 = vld [vmem:[%s157 + $0xee0] sm:$0xff]
        %v978 = vld [vmem:[%s157 + $0xee8] sm:$0xff]
        %v979 = vld [vmem:[%s157 + $0xef0] sm:$0xff]
        %v980 = vld [vmem:[%s157 + $0xef8] sm:$0xff]
        %v981 = vld [vmem:[%s157 + $0xf00] sm:$0xff]
        %v982 = vld [vmem:[%s157 + $0xf08] sm:$0xff]
        %v983 = vld [vmem:[%s157 + $0xf10] sm:$0xff]
        %v984 = vld [vmem:[%s157 + $0xf18] sm:$0xff]
        %v985 = vld [vmem:[%s157 + $0xf20] sm:$0xff]
        %v986 = vld [vmem:[%s157 + $0xf28] sm:$0xff]
        %v987 = vld [vmem:[%s157 + $0xf30] sm:$0xff]
        %v988 = vld [vmem:[%s157 + $0xf38] sm:$0xff]
        %v989 = vld [vmem:[%s157 + $0xf40] sm:$0xff]
        %v990 = vld [vmem:[%s157 + $0xf48] sm:$0xff]
        %v991 = vld [vmem:[%s157 + $0xf50] sm:$0xff]
        %v992 = vld [vmem:[%s157 + $0xf58] sm:$0xff]
        %v993 = vld [vmem:[%s157 + $0xf60] sm:$0xff]
        %v994 = vld [vmem:[%s157 + $0xf68] sm:$0xff]
        %v995 = vld [vmem:[%s157 + $0xf70] sm:$0xff]
        %v996 = vld [vmem:[%s157 + $0xf78] sm:$0xff]
        %v997 = vld [vmem:[%s157 + $0xf80] sm:$0xff]
        %v998 = vld [vmem:[%s157 + $0xf88] sm:$0xff]
        %v999 = vld [vmem:[%s157 + $0xf90] sm:$0xff]
        %v1000 = vld [vmem:[%s157 + $0xf98] sm:$0xff]
        %v1001 = vld [vmem:[%s157 + $0xfa0] sm:$0xff]
        %v1002 = vld [vmem:[%s157 + $0xfa8] sm:$0xff]
        %v1003 = vld [vmem:[%s157 + $0xfb0] sm:$0xff]
        %v1004 = vld [vmem:[%s157 + $0xfb8] sm:$0xff]
        %v1005 = vld [vmem:[%s157 + $0xfc0] sm:$0xff]
        %v1006 = vld [vmem:[%s157 + $0xfc8] sm:$0xff]
        %v1007 = vld [vmem:[%s157 + $0xfd0] sm:$0xff]
        %v1008 = vld [vmem:[%s157 + $0xfd8] sm:$0xff]
        %v1009 = vld [vmem:[%s157 + $0xfe0] sm:$0xff]
        %v1010 = vld [vmem:[%s157 + $0xfe8] sm:$0xff]
        %v1011 = vld [vmem:[%s157 + $0xff0] sm:$0xff]
        %v1012 = vld [vmem:[%s157 + $0xff8] sm:$0xff]
        %v1525 = vunpack.c.l.b16 %v501
        %v1526 = vunpack.c.h.b16 %v501
        %v1527 = vunpack.c.l.b16 %v502
        %v1528 = vunpack.c.h.b16 %v502
        %v1529 = vunpack.c.l.b16 %v503
        %v1530 = vunpack.c.h.b16 %v503
        %v1531 = vunpack.c.l.b16 %v504
        %v1532 = vunpack.c.h.b16 %v504
        %v1533 = vunpack.c.l.b16 %v505
        %v1534 = vunpack.c.h.b16 %v505
        %v1535 = vunpack.c.l.b16 %v506
        %v1536 = vunpack.c.h.b16 %v506
        %v1537 = vunpack.c.l.b16 %v507
        %v1538 = vunpack.c.h.b16 %v507
        %v1539 = vunpack.c.l.b16 %v508
        %v1540 = vunpack.c.h.b16 %v508
        %v1541 = vunpack.c.l.b16 %v509
        %v1542 = vunpack.c.h.b16 %v509
        %v1543 = vunpack.c.l.b16 %v510
        %v1544 = vunpack.c.h.b16 %v510
        %v1545 = vunpack.c.l.b16 %v511
        %v1546 = vunpack.c.h.b16 %v511
        %v1547 = vunpack.c.l.b16 %v512
        %v1548 = vunpack.c.h.b16 %v512
        %v1549 = vunpack.c.l.b16 %v513
        %v1550 = vunpack.c.h.b16 %v513
        %v1551 = vunpack.c.l.b16 %v514
        %v1552 = vunpack.c.h.b16 %v514
        %v1553 = vunpack.c.l.b16 %v515
        %v1554 = vunpack.c.h.b16 %v515
        %v1555 = vunpack.c.l.b16 %v516
        %v1556 = vunpack.c.h.b16 %v516
        %v1557 = vunpack.c.l.b16 %v517
        %v1558 = vunpack.c.h.b16 %v517
        %v1559 = vunpack.c.l.b16 %v518
        %v1560 = vunpack.c.h.b16 %v518
        %v1561 = vunpack.c.l.b16 %v519
        %v1562 = vunpack.c.h.b16 %v519
        %v1563 = vunpack.c.l.b16 %v520
        %v1564 = vunpack.c.h.b16 %v520
        %v1565 = vunpack.c.l.b16 %v521
        %v1566 = vunpack.c.h.b16 %v521
        %v1567 = vunpack.c.l.b16 %v522
        %v1568 = vunpack.c.h.b16 %v522
        %v1569 = vunpack.c.l.b16 %v523
        %v1570 = vunpack.c.h.b16 %v523
        %v1571 = vunpack.c.l.b16 %v524
        %v1572 = vunpack.c.h.b16 %v524
        %v1573 = vunpack.c.l.b16 %v525
        %v1574 = vunpack.c.h.b16 %v525
        %v1575 = vunpack.c.l.b16 %v526
        %v1576 = vunpack.c.h.b16 %v526
        %v1577 = vunpack.c.l.b16 %v527
        %v1578 = vunpack.c.h.b16 %v527
        %v1579 = vunpack.c.l.b16 %v528
        %v1580 = vunpack.c.h.b16 %v528
        %v1581 = vunpack.c.l.b16 %v529
        %v1582 = vunpack.c.h.b16 %v529
        %v1583 = vunpack.c.l.b16 %v530
        %v1584 = vunpack.c.h.b16 %v530
        %v1585 = vunpack.c.l.b16 %v531
        %v1586 = vunpack.c.h.b16 %v531
        %v1587 = vunpack.c.l.b16 %v532
        %v1588 = vunpack.c.h.b16 %v532
        %v1589 = vunpack.c.l.b16 %v533
        %v1590 = vunpack.c.h.b16 %v533
        %v1591 = vunpack.c.l.b16 %v534
        %v1592 = vunpack.c.h.b16 %v534
        %v1593 = vunpack.c.l.b16 %v535
        %v1594 = vunpack.c.h.b16 %v535
        %v1595 = vunpack.c.l.b16 %v536
        %v1596 = vunpack.c.h.b16 %v536
        %v1597 = vunpack.c.l.b16 %v537
        %v1598 = vunpack.c.h.b16 %v537
        %v1599 = vunpack.c.l.b16 %v538
        %v1600 = vunpack.c.h.b16 %v538
        %v1601 = vunpack.c.l.b16 %v539
        %v1602 = vunpack.c.h.b16 %v539
        %v1603 = vunpack.c.l.b16 %v540
        %v1604 = vunpack.c.h.b16 %v540
        %v1605 = vunpack.c.l.b16 %v541
        %v1606 = vunpack.c.h.b16 %v541
        %v1607 = vunpack.c.l.b16 %v542
        %v1608 = vunpack.c.h.b16 %v542
        %v1609 = vunpack.c.l.b16 %v543
        %v1610 = vunpack.c.h.b16 %v543
        %v1611 = vunpack.c.l.b16 %v544
        %v1612 = vunpack.c.h.b16 %v544
        %v1613 = vunpack.c.l.b16 %v545
        %v1614 = vunpack.c.h.b16 %v545
        %v1615 = vunpack.c.l.b16 %v546
        %v1616 = vunpack.c.h.b16 %v546
        %v1617 = vunpack.c.l.b16 %v547
        %v1618 = vunpack.c.h.b16 %v547
        %v1619 = vunpack.c.l.b16 %v548
        %v1620 = vunpack.c.h.b16 %v548
        %v1621 = vunpack.c.l.b16 %v549
        %v1622 = vunpack.c.h.b16 %v549
        %v1623 = vunpack.c.l.b16 %v550
        %v1624 = vunpack.c.h.b16 %v550
        %v1625 = vunpack.c.l.b16 %v551
        %v1626 = vunpack.c.h.b16 %v551
        %v1627 = vunpack.c.l.b16 %v552
        %v1628 = vunpack.c.h.b16 %v552
        %v1629 = vunpack.c.l.b16 %v553
        %v1630 = vunpack.c.h.b16 %v553
        %v1631 = vunpack.c.l.b16 %v554
        %v1632 = vunpack.c.h.b16 %v554
        %v1633 = vunpack.c.l.b16 %v555
        %v1634 = vunpack.c.h.b16 %v555
        %v1635 = vunpack.c.l.b16 %v556
        %v1636 = vunpack.c.h.b16 %v556
        %v1637 = vunpack.c.l.b16 %v557
        %v1638 = vunpack.c.h.b16 %v557
        %v1639 = vunpack.c.l.b16 %v558
        %v1640 = vunpack.c.h.b16 %v558
        %v1641 = vunpack.c.l.b16 %v559
        %v1642 = vunpack.c.h.b16 %v559
        %v1643 = vunpack.c.l.b16 %v560
        %v1644 = vunpack.c.h.b16 %v560
        %v1645 = vunpack.c.l.b16 %v561
        %v1646 = vunpack.c.h.b16 %v561
        %v1647 = vunpack.c.l.b16 %v562
        %v1648 = vunpack.c.h.b16 %v562
        %v1649 = vunpack.c.l.b16 %v563
        %v1650 = vunpack.c.h.b16 %v563
        %v1651 = vunpack.c.l.b16 %v564
        %v1652 = vunpack.c.h.b16 %v564
        %v1653 = vunpack.c.l.b16 %v565
        %v1654 = vunpack.c.h.b16 %v565
        %v1655 = vunpack.c.l.b16 %v566
        %v1656 = vunpack.c.h.b16 %v566
        %v1657 = vunpack.c.l.b16 %v567
        %v1658 = vunpack.c.h.b16 %v567
        %v1659 = vunpack.c.l.b16 %v568
        %v1660 = vunpack.c.h.b16 %v568
        %v1661 = vunpack.c.l.b16 %v569
        %v1662 = vunpack.c.h.b16 %v569
        %v1663 = vunpack.c.l.b16 %v570
        %v1664 = vunpack.c.h.b16 %v570
        %v1665 = vunpack.c.l.b16 %v571
        %v1666 = vunpack.c.h.b16 %v571
        %v1667 = vunpack.c.l.b16 %v572
        %v1668 = vunpack.c.h.b16 %v572
        %v1669 = vunpack.c.l.b16 %v573
        %v1670 = vunpack.c.h.b16 %v573
        %v1671 = vunpack.c.l.b16 %v574
        %v1672 = vunpack.c.h.b16 %v574
        %v1673 = vunpack.c.l.b16 %v575
        %v1674 = vunpack.c.h.b16 %v575
        %v1675 = vunpack.c.l.b16 %v576
        %v1676 = vunpack.c.h.b16 %v576
        %v1677 = vunpack.c.l.b16 %v577
        %v1678 = vunpack.c.h.b16 %v577
        %v1679 = vunpack.c.l.b16 %v578
        %v1680 = vunpack.c.h.b16 %v578
        %v1681 = vunpack.c.l.b16 %v579
        %v1682 = vunpack.c.h.b16 %v579
        %v1683 = vunpack.c.l.b16 %v580
        %v1684 = vunpack.c.h.b16 %v580
        %v1685 = vunpack.c.l.b16 %v581
        %v1686 = vunpack.c.h.b16 %v581
        %v1687 = vunpack.c.l.b16 %v582
        %v1688 = vunpack.c.h.b16 %v582
        %v1689 = vunpack.c.l.b16 %v583
        %v1690 = vunpack.c.h.b16 %v583
        %v1691 = vunpack.c.l.b16 %v584
        %v1692 = vunpack.c.h.b16 %v584
        %v1693 = vunpack.c.l.b16 %v585
        %v1694 = vunpack.c.h.b16 %v585
        %v1695 = vunpack.c.l.b16 %v586
        %v1696 = vunpack.c.h.b16 %v586
        %v1697 = vunpack.c.l.b16 %v587
        %v1698 = vunpack.c.h.b16 %v587
        %v1699 = vunpack.c.l.b16 %v588
        %v1700 = vunpack.c.h.b16 %v588
        %v1701 = vunpack.c.l.b16 %v589
        %v1702 = vunpack.c.h.b16 %v589
        %v1703 = vunpack.c.l.b16 %v590
        %v1704 = vunpack.c.h.b16 %v590
        %v1705 = vunpack.c.l.b16 %v591
        %v1706 = vunpack.c.h.b16 %v591
        %v1707 = vunpack.c.l.b16 %v592
        %v1708 = vunpack.c.h.b16 %v592
        %v1709 = vunpack.c.l.b16 %v593
        %v1710 = vunpack.c.h.b16 %v593
        %v1711 = vunpack.c.l.b16 %v594
        %v1712 = vunpack.c.h.b16 %v594
        %v1713 = vunpack.c.l.b16 %v595
        %v1714 = vunpack.c.h.b16 %v595
        %v1715 = vunpack.c.l.b16 %v596
        %v1716 = vunpack.c.h.b16 %v596
        %v1717 = vunpack.c.l.b16 %v597
        %v1718 = vunpack.c.h.b16 %v597
        %v1719 = vunpack.c.l.b16 %v598
        %v1720 = vunpack.c.h.b16 %v598
        %v1721 = vunpack.c.l.b16 %v599
        %v1722 = vunpack.c.h.b16 %v599
        %v1723 = vunpack.c.l.b16 %v600
        %v1724 = vunpack.c.h.b16 %v600
        %v1725 = vunpack.c.l.b16 %v601
        %v1726 = vunpack.c.h.b16 %v601
        %v1727 = vunpack.c.l.b16 %v602
        %v1728 = vunpack.c.h.b16 %v602
        %v1729 = vunpack.c.l.b16 %v603
        %v1730 = vunpack.c.h.b16 %v603
        %v1731 = vunpack.c.l.b16 %v604
        %v1732 = vunpack.c.h.b16 %v604
        %v1733 = vunpack.c.l.b16 %v605
        %v1734 = vunpack.c.h.b16 %v605
        %v1735 = vunpack.c.l.b16 %v606
        %v1736 = vunpack.c.h.b16 %v606
        %v1737 = vunpack.c.l.b16 %v607
        %v1738 = vunpack.c.h.b16 %v607
        %v1739 = vunpack.c.l.b16 %v608
        %v1740 = vunpack.c.h.b16 %v608
        %v1741 = vunpack.c.l.b16 %v609
        %v1742 = vunpack.c.h.b16 %v609
        %v1743 = vunpack.c.l.b16 %v610
        %v1744 = vunpack.c.h.b16 %v610
        %v1745 = vunpack.c.l.b16 %v611
        %v1746 = vunpack.c.h.b16 %v611
        %v1747 = vunpack.c.l.b16 %v612
        %v1748 = vunpack.c.h.b16 %v612
        %v1749 = vunpack.c.l.b16 %v613
        %v1750 = vunpack.c.h.b16 %v613
        %v1751 = vunpack.c.l.b16 %v614
        %v1752 = vunpack.c.h.b16 %v614
        %v1753 = vunpack.c.l.b16 %v615
        %v1754 = vunpack.c.h.b16 %v615
        %v1755 = vunpack.c.l.b16 %v616
        %v1756 = vunpack.c.h.b16 %v616
        %v1757 = vunpack.c.l.b16 %v617
        %v1758 = vunpack.c.h.b16 %v617
        %v1759 = vunpack.c.l.b16 %v618
        %v1760 = vunpack.c.h.b16 %v618
        %v1761 = vunpack.c.l.b16 %v619
        %v1762 = vunpack.c.h.b16 %v619
        %v1763 = vunpack.c.l.b16 %v620
        %v1764 = vunpack.c.h.b16 %v620
        %v1765 = vunpack.c.l.b16 %v621
        %v1766 = vunpack.c.h.b16 %v621
        %v1767 = vunpack.c.l.b16 %v622
        %v1768 = vunpack.c.h.b16 %v622
        %v1769 = vunpack.c.l.b16 %v623
        %v1770 = vunpack.c.h.b16 %v623
        %v1771 = vunpack.c.l.b16 %v624
        %v1772 = vunpack.c.h.b16 %v624
        %v1773 = vunpack.c.l.b16 %v625
        %v1774 = vunpack.c.h.b16 %v625
        %v1775 = vunpack.c.l.b16 %v626
        %v1776 = vunpack.c.h.b16 %v626
        %v1777 = vunpack.c.l.b16 %v627
        %v1778 = vunpack.c.h.b16 %v627
        %v1779 = vunpack.c.l.b16 %v628
        %v1780 = vunpack.c.h.b16 %v628
        %v1781 = vunpack.c.l.b16 %v629
        %v1782 = vunpack.c.h.b16 %v629
        %v1783 = vunpack.c.l.b16 %v630
        %v1784 = vunpack.c.h.b16 %v630
        %v1785 = vunpack.c.l.b16 %v631
        %v1786 = vunpack.c.h.b16 %v631
        %v1787 = vunpack.c.l.b16 %v632
        %v1788 = vunpack.c.h.b16 %v632
        %v1789 = vunpack.c.l.b16 %v633
        %v1790 = vunpack.c.h.b16 %v633
        %v1791 = vunpack.c.l.b16 %v634
        %v1792 = vunpack.c.h.b16 %v634
        %v1793 = vunpack.c.l.b16 %v635
        %v1794 = vunpack.c.h.b16 %v635
        %v1795 = vunpack.c.l.b16 %v636
        %v1796 = vunpack.c.h.b16 %v636
        %v1797 = vunpack.c.l.b16 %v637
        %v1798 = vunpack.c.h.b16 %v637
        %v1799 = vunpack.c.l.b16 %v638
        %v1800 = vunpack.c.h.b16 %v638
        %v1801 = vunpack.c.l.b16 %v639
        %v1802 = vunpack.c.h.b16 %v639
        %v1803 = vunpack.c.l.b16 %v640
        %v1804 = vunpack.c.h.b16 %v640
        %v1805 = vunpack.c.l.b16 %v641
        %v1806 = vunpack.c.h.b16 %v641
        %v1807 = vunpack.c.l.b16 %v642
        %v1808 = vunpack.c.h.b16 %v642
        %v1809 = vunpack.c.l.b16 %v643
        %v1810 = vunpack.c.h.b16 %v643
        %v1811 = vunpack.c.l.b16 %v644
        %v1812 = vunpack.c.h.b16 %v644
        %v1813 = vunpack.c.l.b16 %v645
        %v1814 = vunpack.c.h.b16 %v645
        %v1815 = vunpack.c.l.b16 %v646
        %v1816 = vunpack.c.h.b16 %v646
        %v1817 = vunpack.c.l.b16 %v647
        %v1818 = vunpack.c.h.b16 %v647
        %v1819 = vunpack.c.l.b16 %v648
        %v1820 = vunpack.c.h.b16 %v648
        %v1821 = vunpack.c.l.b16 %v649
        %v1822 = vunpack.c.h.b16 %v649
        %v1823 = vunpack.c.l.b16 %v650
        %v1824 = vunpack.c.h.b16 %v650
        %v1825 = vunpack.c.l.b16 %v651
        %v1826 = vunpack.c.h.b16 %v651
        %v1827 = vunpack.c.l.b16 %v652
        %v1828 = vunpack.c.h.b16 %v652
        %v1829 = vunpack.c.l.b16 %v653
        %v1830 = vunpack.c.h.b16 %v653
        %v1831 = vunpack.c.l.b16 %v654
        %v1832 = vunpack.c.h.b16 %v654
        %v1833 = vunpack.c.l.b16 %v655
        %v1834 = vunpack.c.h.b16 %v655
        %v1835 = vunpack.c.l.b16 %v656
        %v1836 = vunpack.c.h.b16 %v656
        %v1837 = vunpack.c.l.b16 %v657
        %v1838 = vunpack.c.h.b16 %v657
        %v1839 = vunpack.c.l.b16 %v658
        %v1840 = vunpack.c.h.b16 %v658
        %v1841 = vunpack.c.l.b16 %v659
        %v1842 = vunpack.c.h.b16 %v659
        %v1843 = vunpack.c.l.b16 %v660
        %v1844 = vunpack.c.h.b16 %v660
        %v1845 = vunpack.c.l.b16 %v661
        %v1846 = vunpack.c.h.b16 %v661
        %v1847 = vunpack.c.l.b16 %v662
        %v1848 = vunpack.c.h.b16 %v662
        %v1849 = vunpack.c.l.b16 %v663
        %v1850 = vunpack.c.h.b16 %v663
        %v1851 = vunpack.c.l.b16 %v664
        %v1852 = vunpack.c.h.b16 %v664
        %v1853 = vunpack.c.l.b16 %v665
        %v1854 = vunpack.c.h.b16 %v665
        %v1855 = vunpack.c.l.b16 %v666
        %v1856 = vunpack.c.h.b16 %v666
        %v1857 = vunpack.c.l.b16 %v667
        %v1858 = vunpack.c.h.b16 %v667
        %v1859 = vunpack.c.l.b16 %v668
        %v1860 = vunpack.c.h.b16 %v668
        %v1861 = vunpack.c.l.b16 %v669
        %v1862 = vunpack.c.h.b16 %v669
        %v1863 = vunpack.c.l.b16 %v670
        %v1864 = vunpack.c.h.b16 %v670
        %v1865 = vunpack.c.l.b16 %v671
        %v1866 = vunpack.c.h.b16 %v671
        %v1867 = vunpack.c.l.b16 %v672
        %v1868 = vunpack.c.h.b16 %v672
        %v1869 = vunpack.c.l.b16 %v673
        %v1870 = vunpack.c.h.b16 %v673
        %v1871 = vunpack.c.l.b16 %v674
        %v1872 = vunpack.c.h.b16 %v674
        %v1873 = vunpack.c.l.b16 %v675
        %v1874 = vunpack.c.h.b16 %v675
        %v1875 = vunpack.c.l.b16 %v676
        %v1876 = vunpack.c.h.b16 %v676
        %v1877 = vunpack.c.l.b16 %v677
        %v1878 = vunpack.c.h.b16 %v677
        %v1879 = vunpack.c.l.b16 %v678
        %v1880 = vunpack.c.h.b16 %v678
        %v1881 = vunpack.c.l.b16 %v679
        %v1882 = vunpack.c.h.b16 %v679
        %v1883 = vunpack.c.l.b16 %v680
        %v1884 = vunpack.c.h.b16 %v680
        %v1885 = vunpack.c.l.b16 %v681
        %v1886 = vunpack.c.h.b16 %v681
        %v1887 = vunpack.c.l.b16 %v682
        %v1888 = vunpack.c.h.b16 %v682
        %v1889 = vunpack.c.l.b16 %v683
        %v1890 = vunpack.c.h.b16 %v683
        %v1891 = vunpack.c.l.b16 %v684
        %v1892 = vunpack.c.h.b16 %v684
        %v1893 = vunpack.c.l.b16 %v685
        %v1894 = vunpack.c.h.b16 %v685
        %v1895 = vunpack.c.l.b16 %v686
        %v1896 = vunpack.c.h.b16 %v686
        %v1897 = vunpack.c.l.b16 %v687
        %v1898 = vunpack.c.h.b16 %v687
        %v1899 = vunpack.c.l.b16 %v688
        %v1900 = vunpack.c.h.b16 %v688
        %v1901 = vunpack.c.l.b16 %v689
        %v1902 = vunpack.c.h.b16 %v689
        %v1903 = vunpack.c.l.b16 %v690
        %v1904 = vunpack.c.h.b16 %v690
        %v1905 = vunpack.c.l.b16 %v691
        %v1906 = vunpack.c.h.b16 %v691
        %v1907 = vunpack.c.l.b16 %v692
        %v1908 = vunpack.c.h.b16 %v692
        %v1909 = vunpack.c.l.b16 %v693
        %v1910 = vunpack.c.h.b16 %v693
        %v1911 = vunpack.c.l.b16 %v694
        %v1912 = vunpack.c.h.b16 %v694
        %v1913 = vunpack.c.l.b16 %v695
        %v1914 = vunpack.c.h.b16 %v695
        %v1915 = vunpack.c.l.b16 %v696
        %v1916 = vunpack.c.h.b16 %v696
        %v1917 = vunpack.c.l.b16 %v697
        %v1918 = vunpack.c.h.b16 %v697
        %v1919 = vunpack.c.l.b16 %v698
        %v1920 = vunpack.c.h.b16 %v698
        %v1921 = vunpack.c.l.b16 %v699
        %v1922 = vunpack.c.h.b16 %v699
        %v1923 = vunpack.c.l.b16 %v700
        %v1924 = vunpack.c.h.b16 %v700
        %v1925 = vunpack.c.l.b16 %v701
        %v1926 = vunpack.c.h.b16 %v701
        %v1927 = vunpack.c.l.b16 %v702
        %v1928 = vunpack.c.h.b16 %v702
        %v1929 = vunpack.c.l.b16 %v703
        %v1930 = vunpack.c.h.b16 %v703
        %v1931 = vunpack.c.l.b16 %v704
        %v1932 = vunpack.c.h.b16 %v704
        %v1933 = vunpack.c.l.b16 %v705
        %v1934 = vunpack.c.h.b16 %v705
        %v1935 = vunpack.c.l.b16 %v706
        %v1936 = vunpack.c.h.b16 %v706
        %v1937 = vunpack.c.l.b16 %v707
        %v1938 = vunpack.c.h.b16 %v707
        %v1939 = vunpack.c.l.b16 %v708
        %v1940 = vunpack.c.h.b16 %v708
        %v1941 = vunpack.c.l.b16 %v709
        %v1942 = vunpack.c.h.b16 %v709
        %v1943 = vunpack.c.l.b16 %v710
        %v1944 = vunpack.c.h.b16 %v710
        %v1945 = vunpack.c.l.b16 %v711
        %v1946 = vunpack.c.h.b16 %v711
        %v1947 = vunpack.c.l.b16 %v712
        %v1948 = vunpack.c.h.b16 %v712
        %v1949 = vunpack.c.l.b16 %v713
        %v1950 = vunpack.c.h.b16 %v713
        %v1951 = vunpack.c.l.b16 %v714
        %v1952 = vunpack.c.h.b16 %v714
        %v1953 = vunpack.c.l.b16 %v715
        %v1954 = vunpack.c.h.b16 %v715
        %v1955 = vunpack.c.l.b16 %v716
        %v1956 = vunpack.c.h.b16 %v716
        %v1957 = vunpack.c.l.b16 %v717
        %v1958 = vunpack.c.h.b16 %v717
        %v1959 = vunpack.c.l.b16 %v718
        %v1960 = vunpack.c.h.b16 %v718
        %v1961 = vunpack.c.l.b16 %v719
        %v1962 = vunpack.c.h.b16 %v719
        %v1963 = vunpack.c.l.b16 %v720
        %v1964 = vunpack.c.h.b16 %v720
        %v1965 = vunpack.c.l.b16 %v721
        %v1966 = vunpack.c.h.b16 %v721
        %v1967 = vunpack.c.l.b16 %v722
        %v1968 = vunpack.c.h.b16 %v722
        %v1969 = vunpack.c.l.b16 %v723
        %v1970 = vunpack.c.h.b16 %v723
        %v1971 = vunpack.c.l.b16 %v724
        %v1972 = vunpack.c.h.b16 %v724
        %v1973 = vunpack.c.l.b16 %v725
        %v1974 = vunpack.c.h.b16 %v725
        %v1975 = vunpack.c.l.b16 %v726
        %v1976 = vunpack.c.h.b16 %v726
        %v1977 = vunpack.c.l.b16 %v727
        %v1978 = vunpack.c.h.b16 %v727
        %v1979 = vunpack.c.l.b16 %v728
        %v1980 = vunpack.c.h.b16 %v728
        %v1981 = vunpack.c.l.b16 %v729
        %v1982 = vunpack.c.h.b16 %v729
        %v1983 = vunpack.c.l.b16 %v730
        %v1984 = vunpack.c.h.b16 %v730
        %v1985 = vunpack.c.l.b16 %v731
        %v1986 = vunpack.c.h.b16 %v731
        %v1987 = vunpack.c.l.b16 %v732
        %v1988 = vunpack.c.h.b16 %v732
        %v1989 = vunpack.c.l.b16 %v733
        %v1990 = vunpack.c.h.b16 %v733
        %v1991 = vunpack.c.l.b16 %v734
        %v1992 = vunpack.c.h.b16 %v734
        %v1993 = vunpack.c.l.b16 %v735
        %v1994 = vunpack.c.h.b16 %v735
        %v1995 = vunpack.c.l.b16 %v736
        %v1996 = vunpack.c.h.b16 %v736
        %v1997 = vunpack.c.l.b16 %v737
        %v1998 = vunpack.c.h.b16 %v737
        %v1999 = vunpack.c.l.b16 %v738
        %v2000 = vunpack.c.h.b16 %v738
        %v2001 = vunpack.c.l.b16 %v739
        %v2002 = vunpack.c.h.b16 %v739
        %v2003 = vunpack.c.l.b16 %v740
        %v2004 = vunpack.c.h.b16 %v740
        %v2005 = vunpack.c.l.b16 %v741
        %v2006 = vunpack.c.h.b16 %v741
        %v2007 = vunpack.c.l.b16 %v742
        %v2008 = vunpack.c.h.b16 %v742
        %v2009 = vunpack.c.l.b16 %v743
        %v2010 = vunpack.c.h.b16 %v743
        %v2011 = vunpack.c.l.b16 %v744
        %v2012 = vunpack.c.h.b16 %v744
        %v2013 = vunpack.c.l.b16 %v745
        %v2014 = vunpack.c.h.b16 %v745
        %v2015 = vunpack.c.l.b16 %v746
        %v2016 = vunpack.c.h.b16 %v746
        %v2017 = vunpack.c.l.b16 %v747
        %v2018 = vunpack.c.h.b16 %v747
        %v2019 = vunpack.c.l.b16 %v748
        %v2020 = vunpack.c.h.b16 %v748
        %v2021 = vunpack.c.l.b16 %v749
        %v2022 = vunpack.c.h.b16 %v749
        %v2023 = vunpack.c.l.b16 %v750
        %v2024 = vunpack.c.h.b16 %v750
        %v2025 = vunpack.c.l.b16 %v751
        %v2026 = vunpack.c.h.b16 %v751
        %v2027 = vunpack.c.l.b16 %v752
        %v2028 = vunpack.c.h.b16 %v752
        %v2029 = vunpack.c.l.b16 %v753
        %v2030 = vunpack.c.h.b16 %v753
        %v2031 = vunpack.c.l.b16 %v754
        %v2032 = vunpack.c.h.b16 %v754
        %v2033 = vunpack.c.l.b16 %v755
        %v2034 = vunpack.c.h.b16 %v755
        %v2035 = vunpack.c.l.b16 %v756
        %v2036 = vunpack.c.h.b16 %v756
        %v2037 = vunpack.c.l.b16 %v757
        %v2038 = vunpack.c.h.b16 %v757
        %v2039 = vunpack.c.l.b16 %v758
        %v2040 = vunpack.c.h.b16 %v758
        %v2041 = vunpack.c.l.b16 %v759
        %v2042 = vunpack.c.h.b16 %v759
        %v2043 = vunpack.c.l.b16 %v760
        %v2044 = vunpack.c.h.b16 %v760
        %v2045 = vunpack.c.l.b16 %v761
        %v2046 = vunpack.c.h.b16 %v761
        %v2047 = vunpack.c.l.b16 %v762
        %v2048 = vunpack.c.h.b16 %v762
        %v2049 = vunpack.c.l.b16 %v763
        %v2050 = vunpack.c.h.b16 %v763
        %v2051 = vunpack.c.l.b16 %v764
        %v2052 = vunpack.c.h.b16 %v764
        %v2053 = vunpack.c.l.b16 %v765
        %v2054 = vunpack.c.h.b16 %v765
        %v2055 = vunpack.c.l.b16 %v766
        %v2056 = vunpack.c.h.b16 %v766
        %v2057 = vunpack.c.l.b16 %v767
        %v2058 = vunpack.c.h.b16 %v767
        %v2059 = vunpack.c.l.b16 %v768
        %v2060 = vunpack.c.h.b16 %v768
        %v2061 = vunpack.c.l.b16 %v769
        %v2062 = vunpack.c.h.b16 %v769
        %v2063 = vunpack.c.l.b16 %v770
        %v2064 = vunpack.c.h.b16 %v770
        %v2065 = vunpack.c.l.b16 %v771
        %v2066 = vunpack.c.h.b16 %v771
        %v2067 = vunpack.c.l.b16 %v772
        %v2068 = vunpack.c.h.b16 %v772
        %v2069 = vunpack.c.l.b16 %v773
        %v2070 = vunpack.c.h.b16 %v773
        %v2071 = vunpack.c.l.b16 %v774
        %v2072 = vunpack.c.h.b16 %v774
        %v2073 = vunpack.c.l.b16 %v775
        %v2074 = vunpack.c.h.b16 %v775
        %v2075 = vunpack.c.l.b16 %v776
        %v2076 = vunpack.c.h.b16 %v776
        %v2077 = vunpack.c.l.b16 %v777
        %v2078 = vunpack.c.h.b16 %v777
        %v2079 = vunpack.c.l.b16 %v778
        %v2080 = vunpack.c.h.b16 %v778
        %v2081 = vunpack.c.l.b16 %v779
        %v2082 = vunpack.c.h.b16 %v779
        %v2083 = vunpack.c.l.b16 %v780
        %v2084 = vunpack.c.h.b16 %v780
        %v2085 = vunpack.c.l.b16 %v781
        %v2086 = vunpack.c.h.b16 %v781
        %v2087 = vunpack.c.l.b16 %v782
        %v2088 = vunpack.c.h.b16 %v782
        %v2089 = vunpack.c.l.b16 %v783
        %v2090 = vunpack.c.h.b16 %v783
        %v2091 = vunpack.c.l.b16 %v784
        %v2092 = vunpack.c.h.b16 %v784
        %v2093 = vunpack.c.l.b16 %v785
        %v2094 = vunpack.c.h.b16 %v785
        %v2095 = vunpack.c.l.b16 %v786
        %v2096 = vunpack.c.h.b16 %v786
        %v2097 = vunpack.c.l.b16 %v787
        %v2098 = vunpack.c.h.b16 %v787
        %v2099 = vunpack.c.l.b16 %v788
        %v2100 = vunpack.c.h.b16 %v788
        %v2101 = vunpack.c.l.b16 %v789
        %v2102 = vunpack.c.h.b16 %v789
        %v2103 = vunpack.c.l.b16 %v790
        %v2104 = vunpack.c.h.b16 %v790
        %v2105 = vunpack.c.l.b16 %v791
        %v2106 = vunpack.c.h.b16 %v791
        %v2107 = vunpack.c.l.b16 %v792
        %v2108 = vunpack.c.h.b16 %v792
        %v2109 = vunpack.c.l.b16 %v793
        %v2110 = vunpack.c.h.b16 %v793
        %v2111 = vunpack.c.l.b16 %v794
        %v2112 = vunpack.c.h.b16 %v794
        %v2113 = vunpack.c.l.b16 %v795
        %v2114 = vunpack.c.h.b16 %v795
        %v2115 = vunpack.c.l.b16 %v796
        %v2116 = vunpack.c.h.b16 %v796
        %v2117 = vunpack.c.l.b16 %v797
        %v2118 = vunpack.c.h.b16 %v797
        %v2119 = vunpack.c.l.b16 %v798
        %v2120 = vunpack.c.h.b16 %v798
        %v2121 = vunpack.c.l.b16 %v799
        %v2122 = vunpack.c.h.b16 %v799
        %v2123 = vunpack.c.l.b16 %v800
        %v2124 = vunpack.c.h.b16 %v800
        %v2125 = vunpack.c.l.b16 %v801
        %v2126 = vunpack.c.h.b16 %v801
        %v2127 = vunpack.c.l.b16 %v802
        %v2128 = vunpack.c.h.b16 %v802
        %v2129 = vunpack.c.l.b16 %v803
        %v2130 = vunpack.c.h.b16 %v803
        %v2131 = vunpack.c.l.b16 %v804
        %v2132 = vunpack.c.h.b16 %v804
        %v2133 = vunpack.c.l.b16 %v805
        %v2134 = vunpack.c.h.b16 %v805
        %v2135 = vunpack.c.l.b16 %v806
        %v2136 = vunpack.c.h.b16 %v806
        %v2137 = vunpack.c.l.b16 %v807
        %v2138 = vunpack.c.h.b16 %v807
        %v2139 = vunpack.c.l.b16 %v808
        %v2140 = vunpack.c.h.b16 %v808
        %v2141 = vunpack.c.l.b16 %v809
        %v2142 = vunpack.c.h.b16 %v809
        %v2143 = vunpack.c.l.b16 %v810
        %v2144 = vunpack.c.h.b16 %v810
        %v2145 = vunpack.c.l.b16 %v811
        %v2146 = vunpack.c.h.b16 %v811
        %v2147 = vunpack.c.l.b16 %v812
        %v2148 = vunpack.c.h.b16 %v812
        %v2149 = vunpack.c.l.b16 %v813
        %v2150 = vunpack.c.h.b16 %v813
        %v2151 = vunpack.c.l.b16 %v814
        %v2152 = vunpack.c.h.b16 %v814
        %v2153 = vunpack.c.l.b16 %v815
        %v2154 = vunpack.c.h.b16 %v815
        %v2155 = vunpack.c.l.b16 %v816
        %v2156 = vunpack.c.h.b16 %v816
        %v2157 = vunpack.c.l.b16 %v817
        %v2158 = vunpack.c.h.b16 %v817
        %v2159 = vunpack.c.l.b16 %v818
        %v2160 = vunpack.c.h.b16 %v818
        %v2161 = vunpack.c.l.b16 %v819
        %v2162 = vunpack.c.h.b16 %v819
        %v2163 = vunpack.c.l.b16 %v820
        %v2164 = vunpack.c.h.b16 %v820
        %v2165 = vunpack.c.l.b16 %v821
        %v2166 = vunpack.c.h.b16 %v821
        %v2167 = vunpack.c.l.b16 %v822
        %v2168 = vunpack.c.h.b16 %v822
        %v2169 = vunpack.c.l.b16 %v823
        %v2170 = vunpack.c.h.b16 %v823
        %v2171 = vunpack.c.l.b16 %v824
        %v2172 = vunpack.c.h.b16 %v824
        %v2173 = vunpack.c.l.b16 %v825
        %v2174 = vunpack.c.h.b16 %v825
        %v2175 = vunpack.c.l.b16 %v826
        %v2176 = vunpack.c.h.b16 %v826
        %v2177 = vunpack.c.l.b16 %v827
        %v2178 = vunpack.c.h.b16 %v827
        %v2179 = vunpack.c.l.b16 %v828
        %v2180 = vunpack.c.h.b16 %v828
        %v2181 = vunpack.c.l.b16 %v829
        %v2182 = vunpack.c.h.b16 %v829
        %v2183 = vunpack.c.l.b16 %v830
        %v2184 = vunpack.c.h.b16 %v830
        %v2185 = vunpack.c.l.b16 %v831
        %v2186 = vunpack.c.h.b16 %v831
        %v2187 = vunpack.c.l.b16 %v832
        %v2188 = vunpack.c.h.b16 %v832
        %v2189 = vunpack.c.l.b16 %v833
        %v2190 = vunpack.c.h.b16 %v833
        %v2191 = vunpack.c.l.b16 %v834
        %v2192 = vunpack.c.h.b16 %v834
        %v2193 = vunpack.c.l.b16 %v835
        %v2194 = vunpack.c.h.b16 %v835
        %v2195 = vunpack.c.l.b16 %v836
        %v2196 = vunpack.c.h.b16 %v836
        %v2197 = vunpack.c.l.b16 %v837
        %v2198 = vunpack.c.h.b16 %v837
        %v2199 = vunpack.c.l.b16 %v838
        %v2200 = vunpack.c.h.b16 %v838
        %v2201 = vunpack.c.l.b16 %v839
        %v2202 = vunpack.c.h.b16 %v839
        %v2203 = vunpack.c.l.b16 %v840
        %v2204 = vunpack.c.h.b16 %v840
        %v2205 = vunpack.c.l.b16 %v841
        %v2206 = vunpack.c.h.b16 %v841
        %v2207 = vunpack.c.l.b16 %v842
        %v2208 = vunpack.c.h.b16 %v842
        %v2209 = vunpack.c.l.b16 %v843
        %v2210 = vunpack.c.h.b16 %v843
        %v2211 = vunpack.c.l.b16 %v844
        %v2212 = vunpack.c.h.b16 %v844
        %v2213 = vunpack.c.l.b16 %v845
        %v2214 = vunpack.c.h.b16 %v845
        %v2215 = vunpack.c.l.b16 %v846
        %v2216 = vunpack.c.h.b16 %v846
        %v2217 = vunpack.c.l.b16 %v847
        %v2218 = vunpack.c.h.b16 %v847
        %v2219 = vunpack.c.l.b16 %v848
        %v2220 = vunpack.c.h.b16 %v848
        %v2221 = vunpack.c.l.b16 %v849
        %v2222 = vunpack.c.h.b16 %v849
        %v2223 = vunpack.c.l.b16 %v850
        %v2224 = vunpack.c.h.b16 %v850
        %v2225 = vunpack.c.l.b16 %v851
        %v2226 = vunpack.c.h.b16 %v851
        %v2227 = vunpack.c.l.b16 %v852
        %v2228 = vunpack.c.h.b16 %v852
        %v2229 = vunpack.c.l.b16 %v853
        %v2230 = vunpack.c.h.b16 %v853
        %v2231 = vunpack.c.l.b16 %v854
        %v2232 = vunpack.c.h.b16 %v854
        %v2233 = vunpack.c.l.b16 %v855
        %v2234 = vunpack.c.h.b16 %v855
        %v2235 = vunpack.c.l.b16 %v856
        %v2236 = vunpack.c.h.b16 %v856
        %v2237 = vunpack.c.l.b16 %v857
        %v2238 = vunpack.c.h.b16 %v857
        %v2239 = vunpack.c.l.b16 %v858
        %v2240 = vunpack.c.h.b16 %v858
        %v2241 = vunpack.c.l.b16 %v859
        %v2242 = vunpack.c.h.b16 %v859
        %v2243 = vunpack.c.l.b16 %v860
        %v2244 = vunpack.c.h.b16 %v860
        %v2245 = vunpack.c.l.b16 %v861
        %v2246 = vunpack.c.h.b16 %v861
        %v2247 = vunpack.c.l.b16 %v862
        %v2248 = vunpack.c.h.b16 %v862
        %v2249 = vunpack.c.l.b16 %v863
        %v2250 = vunpack.c.h.b16 %v863
        %v2251 = vunpack.c.l.b16 %v864
        %v2252 = vunpack.c.h.b16 %v864
        %v2253 = vunpack.c.l.b16 %v865
        %v2254 = vunpack.c.h.b16 %v865
        %v2255 = vunpack.c.l.b16 %v866
        %v2256 = vunpack.c.h.b16 %v866
        %v2257 = vunpack.c.l.b16 %v867
        %v2258 = vunpack.c.h.b16 %v867
        %v2259 = vunpack.c.l.b16 %v868
        %v2260 = vunpack.c.h.b16 %v868
        %v2261 = vunpack.c.l.b16 %v869
        %v2262 = vunpack.c.h.b16 %v869
        %v2263 = vunpack.c.l.b16 %v870
        %v2264 = vunpack.c.h.b16 %v870
        %v2265 = vunpack.c.l.b16 %v871
        %v2266 = vunpack.c.h.b16 %v871
        %v2267 = vunpack.c.l.b16 %v872
        %v2268 = vunpack.c.h.b16 %v872
        %v2269 = vunpack.c.l.b16 %v873
        %v2270 = vunpack.c.h.b16 %v873
        %v2271 = vunpack.c.l.b16 %v874
        %v2272 = vunpack.c.h.b16 %v874
        %v2273 = vunpack.c.l.b16 %v875
        %v2274 = vunpack.c.h.b16 %v875
        %v2275 = vunpack.c.l.b16 %v876
        %v2276 = vunpack.c.h.b16 %v876
        %v2277 = vunpack.c.l.b16 %v877
        %v2278 = vunpack.c.h.b16 %v877
        %v2279 = vunpack.c.l.b16 %v878
        %v2280 = vunpack.c.h.b16 %v878
        %v2281 = vunpack.c.l.b16 %v879
        %v2282 = vunpack.c.h.b16 %v879
        %v2283 = vunpack.c.l.b16 %v880
        %v2284 = vunpack.c.h.b16 %v880
        %v2285 = vunpack.c.l.b16 %v881
        %v2286 = vunpack.c.h.b16 %v881
        %v2287 = vunpack.c.l.b16 %v882
        %v2288 = vunpack.c.h.b16 %v882
        %v2289 = vunpack.c.l.b16 %v883
        %v2290 = vunpack.c.h.b16 %v883
        %v2291 = vunpack.c.l.b16 %v884
        %v2292 = vunpack.c.h.b16 %v884
        %v2293 = vunpack.c.l.b16 %v885
        %v2294 = vunpack.c.h.b16 %v885
        %v2295 = vunpack.c.l.b16 %v886
        %v2296 = vunpack.c.h.b16 %v886
        %v2297 = vunpack.c.l.b16 %v887
        %v2298 = vunpack.c.h.b16 %v887
        %v2299 = vunpack.c.l.b16 %v888
        %v2300 = vunpack.c.h.b16 %v888
        %v2301 = vunpack.c.l.b16 %v889
        %v2302 = vunpack.c.h.b16 %v889
        %v2303 = vunpack.c.l.b16 %v890
        %v2304 = vunpack.c.h.b16 %v890
        %v2305 = vunpack.c.l.b16 %v891
        %v2306 = vunpack.c.h.b16 %v891
        %v2307 = vunpack.c.l.b16 %v892
        %v2308 = vunpack.c.h.b16 %v892
        %v2309 = vunpack.c.l.b16 %v893
        %v2310 = vunpack.c.h.b16 %v893
        %v2311 = vunpack.c.l.b16 %v894
        %v2312 = vunpack.c.h.b16 %v894
        %v2313 = vunpack.c.l.b16 %v895
        %v2314 = vunpack.c.h.b16 %v895
        %v2315 = vunpack.c.l.b16 %v896
        %v2316 = vunpack.c.h.b16 %v896
        %v2317 = vunpack.c.l.b16 %v897
        %v2318 = vunpack.c.h.b16 %v897
        %v2319 = vunpack.c.l.b16 %v898
        %v2320 = vunpack.c.h.b16 %v898
        %v2321 = vunpack.c.l.b16 %v899
        %v2322 = vunpack.c.h.b16 %v899
        %v2323 = vunpack.c.l.b16 %v900
        %v2324 = vunpack.c.h.b16 %v900
        %v2325 = vunpack.c.l.b16 %v901
        %v2326 = vunpack.c.h.b16 %v901
        %v2327 = vunpack.c.l.b16 %v902
        %v2328 = vunpack.c.h.b16 %v902
        %v2329 = vunpack.c.l.b16 %v903
        %v2330 = vunpack.c.h.b16 %v903
        %v2331 = vunpack.c.l.b16 %v904
        %v2332 = vunpack.c.h.b16 %v904
        %v2333 = vunpack.c.l.b16 %v905
        %v2334 = vunpack.c.h.b16 %v905
        %v2335 = vunpack.c.l.b16 %v906
        %v2336 = vunpack.c.h.b16 %v906
        %v2337 = vunpack.c.l.b16 %v907
        %v2338 = vunpack.c.h.b16 %v907
        %v2339 = vunpack.c.l.b16 %v908
        %v2340 = vunpack.c.h.b16 %v908
        %v2341 = vunpack.c.l.b16 %v909
        %v2342 = vunpack.c.h.b16 %v909
        %v2343 = vunpack.c.l.b16 %v910
        %v2344 = vunpack.c.h.b16 %v910
        %v2345 = vunpack.c.l.b16 %v911
        %v2346 = vunpack.c.h.b16 %v911
        %v2347 = vunpack.c.l.b16 %v912
        %v2348 = vunpack.c.h.b16 %v912
        %v2349 = vunpack.c.l.b16 %v913
        %v2350 = vunpack.c.h.b16 %v913
        %v2351 = vunpack.c.l.b16 %v914
        %v2352 = vunpack.c.h.b16 %v914
        %v2353 = vunpack.c.l.b16 %v915
        %v2354 = vunpack.c.h.b16 %v915
        %v2355 = vunpack.c.l.b16 %v916
        %v2356 = vunpack.c.h.b16 %v916
        %v2357 = vunpack.c.l.b16 %v917
        %v2358 = vunpack.c.h.b16 %v917
        %v2359 = vunpack.c.l.b16 %v918
        %v2360 = vunpack.c.h.b16 %v918
        %v2361 = vunpack.c.l.b16 %v919
        %v2362 = vunpack.c.h.b16 %v919
        %v2363 = vunpack.c.l.b16 %v920
        %v2364 = vunpack.c.h.b16 %v920
        %v2365 = vunpack.c.l.b16 %v921
        %v2366 = vunpack.c.h.b16 %v921
        %v2367 = vunpack.c.l.b16 %v922
        %v2368 = vunpack.c.h.b16 %v922
        %v2369 = vunpack.c.l.b16 %v923
        %v2370 = vunpack.c.h.b16 %v923
        %v2371 = vunpack.c.l.b16 %v924
        %v2372 = vunpack.c.h.b16 %v924
        %v2373 = vunpack.c.l.b16 %v925
        %v2374 = vunpack.c.h.b16 %v925
        %v2375 = vunpack.c.l.b16 %v926
        %v2376 = vunpack.c.h.b16 %v926
        %v2377 = vunpack.c.l.b16 %v927
        %v2378 = vunpack.c.h.b16 %v927
        %v2379 = vunpack.c.l.b16 %v928
        %v2380 = vunpack.c.h.b16 %v928
        %v2381 = vunpack.c.l.b16 %v929
        %v2382 = vunpack.c.h.b16 %v929
        %v2383 = vunpack.c.l.b16 %v930
        %v2384 = vunpack.c.h.b16 %v930
        %v2385 = vunpack.c.l.b16 %v931
        %v2386 = vunpack.c.h.b16 %v931
        %v2387 = vunpack.c.l.b16 %v932
        %v2388 = vunpack.c.h.b16 %v932
        %v2389 = vunpack.c.l.b16 %v933
        %v2390 = vunpack.c.h.b16 %v933
        %v2391 = vunpack.c.l.b16 %v934
        %v2392 = vunpack.c.h.b16 %v934
        %v2393 = vunpack.c.l.b16 %v935
        %v2394 = vunpack.c.h.b16 %v935
        %v2395 = vunpack.c.l.b16 %v936
        %v2396 = vunpack.c.h.b16 %v936
        %v2397 = vunpack.c.l.b16 %v937
        %v2398 = vunpack.c.h.b16 %v937
        %v2399 = vunpack.c.l.b16 %v938
        %v2400 = vunpack.c.h.b16 %v938
        %v2401 = vunpack.c.l.b16 %v939
        %v2402 = vunpack.c.h.b16 %v939
        %v2403 = vunpack.c.l.b16 %v940
        %v2404 = vunpack.c.h.b16 %v940
        %v2405 = vunpack.c.l.b16 %v941
        %v2406 = vunpack.c.h.b16 %v941
        %v2407 = vunpack.c.l.b16 %v942
        %v2408 = vunpack.c.h.b16 %v942
        %v2409 = vunpack.c.l.b16 %v943
        %v2410 = vunpack.c.h.b16 %v943
        %v2411 = vunpack.c.l.b16 %v944
        %v2412 = vunpack.c.h.b16 %v944
        %v2413 = vunpack.c.l.b16 %v945
        %v2414 = vunpack.c.h.b16 %v945
        %v2415 = vunpack.c.l.b16 %v946
        %v2416 = vunpack.c.h.b16 %v946
        %v2417 = vunpack.c.l.b16 %v947
        %v2418 = vunpack.c.h.b16 %v947
        %v2419 = vunpack.c.l.b16 %v948
        %v2420 = vunpack.c.h.b16 %v948
        %v2421 = vunpack.c.l.b16 %v949
        %v2422 = vunpack.c.h.b16 %v949
        %v2423 = vunpack.c.l.b16 %v950
        %v2424 = vunpack.c.h.b16 %v950
        %v2425 = vunpack.c.l.b16 %v951
        %v2426 = vunpack.c.h.b16 %v951
        %v2427 = vunpack.c.l.b16 %v952
        %v2428 = vunpack.c.h.b16 %v952
        %v2429 = vunpack.c.l.b16 %v953
        %v2430 = vunpack.c.h.b16 %v953
        %v2431 = vunpack.c.l.b16 %v954
        %v2432 = vunpack.c.h.b16 %v954
        %v2433 = vunpack.c.l.b16 %v955
        %v2434 = vunpack.c.h.b16 %v955
        %v2435 = vunpack.c.l.b16 %v956
        %v2436 = vunpack.c.h.b16 %v956
        %v2437 = vunpack.c.l.b16 %v957
        %v2438 = vunpack.c.h.b16 %v957
        %v2439 = vunpack.c.l.b16 %v958
        %v2440 = vunpack.c.h.b16 %v958
        %v2441 = vunpack.c.l.b16 %v959
        %v2442 = vunpack.c.h.b16 %v959
        %v2443 = vunpack.c.l.b16 %v960
        %v2444 = vunpack.c.h.b16 %v960
        %v2445 = vunpack.c.l.b16 %v961
        %v2446 = vunpack.c.h.b16 %v961
        %v2447 = vunpack.c.l.b16 %v962
        %v2448 = vunpack.c.h.b16 %v962
        %v2449 = vunpack.c.l.b16 %v963
        %v2450 = vunpack.c.h.b16 %v963
        %v2451 = vunpack.c.l.b16 %v964
        %v2452 = vunpack.c.h.b16 %v964
        %v2453 = vunpack.c.l.b16 %v965
        %v2454 = vunpack.c.h.b16 %v965
        %v2455 = vunpack.c.l.b16 %v966
        %v2456 = vunpack.c.h.b16 %v966
        %v2457 = vunpack.c.l.b16 %v967
        %v2458 = vunpack.c.h.b16 %v967
        %v2459 = vunpack.c.l.b16 %v968
        %v2460 = vunpack.c.h.b16 %v968
        %v2461 = vunpack.c.l.b16 %v969
        %v2462 = vunpack.c.h.b16 %v969
        %v2463 = vunpack.c.l.b16 %v970
        %v2464 = vunpack.c.h.b16 %v970
        %v2465 = vunpack.c.l.b16 %v971
        %v2466 = vunpack.c.h.b16 %v971
        %v2467 = vunpack.c.l.b16 %v972
        %v2468 = vunpack.c.h.b16 %v972
        %v2469 = vunpack.c.l.b16 %v973
        %v2470 = vunpack.c.h.b16 %v973
        %v2471 = vunpack.c.l.b16 %v974
        %v2472 = vunpack.c.h.b16 %v974
        %v2473 = vunpack.c.l.b16 %v975
        %v2474 = vunpack.c.h.b16 %v975
        %v2475 = vunpack.c.l.b16 %v976
        %v2476 = vunpack.c.h.b16 %v976
        %v2477 = vunpack.c.l.b16 %v977
        %v2478 = vunpack.c.h.b16 %v977
        %v2479 = vunpack.c.l.b16 %v978
        %v2480 = vunpack.c.h.b16 %v978
        %v2481 = vunpack.c.l.b16 %v979
        %v2482 = vunpack.c.h.b16 %v979
        %v2483 = vunpack.c.l.b16 %v980
        %v2484 = vunpack.c.h.b16 %v980
        %v2485 = vunpack.c.l.b16 %v981
        %v2486 = vunpack.c.h.b16 %v981
        %v2487 = vunpack.c.l.b16 %v982
        %v2488 = vunpack.c.h.b16 %v982
        %v2489 = vunpack.c.l.b16 %v983
        %v2490 = vunpack.c.h.b16 %v983
        %v2491 = vunpack.c.l.b16 %v984
        %v2492 = vunpack.c.h.b16 %v984
        %v2493 = vunpack.c.l.b16 %v985
        %v2494 = vunpack.c.h.b16 %v985
        %v2495 = vunpack.c.l.b16 %v986
        %v2496 = vunpack.c.h.b16 %v986
        %v2497 = vunpack.c.l.b16 %v987
        %v2498 = vunpack.c.h.b16 %v987
        %v2499 = vunpack.c.l.b16 %v988
        %v2500 = vunpack.c.h.b16 %v988
        %v2501 = vunpack.c.l.b16 %v989
        %v2502 = vunpack.c.h.b16 %v989
        %v2503 = vunpack.c.l.b16 %v990
        %v2504 = vunpack.c.h.b16 %v990
        %v2505 = vunpack.c.l.b16 %v991
        %v2506 = vunpack.c.h.b16 %v991
        %v2507 = vunpack.c.l.b16 %v992
        %v2508 = vunpack.c.h.b16 %v992
        %v2509 = vunpack.c.l.b16 %v993
        %v2510 = vunpack.c.h.b16 %v993
        %v2511 = vunpack.c.l.b16 %v994
        %v2512 = vunpack.c.h.b16 %v994
        %v2513 = vunpack.c.l.b16 %v995
        %v2514 = vunpack.c.h.b16 %v995
        %v2515 = vunpack.c.l.b16 %v996
        %v2516 = vunpack.c.h.b16 %v996
        %v2517 = vunpack.c.l.b16 %v997
        %v2518 = vunpack.c.h.b16 %v997
        %v2519 = vunpack.c.l.b16 %v998
        %v2520 = vunpack.c.h.b16 %v998
        %v2521 = vunpack.c.l.b16 %v999
        %v2522 = vunpack.c.h.b16 %v999
        %v2523 = vunpack.c.l.b16 %v1000
        %v2524 = vunpack.c.h.b16 %v1000
        %v2525 = vunpack.c.l.b16 %v1001
        %v2526 = vunpack.c.h.b16 %v1001
        %v2527 = vunpack.c.l.b16 %v1002
        %v2528 = vunpack.c.h.b16 %v1002
        %v2529 = vunpack.c.l.b16 %v1003
        %v2530 = vunpack.c.h.b16 %v1003
        %v2531 = vunpack.c.l.b16 %v1004
        %v2532 = vunpack.c.h.b16 %v1004
        %v2533 = vunpack.c.l.b16 %v1005
        %v2534 = vunpack.c.h.b16 %v1005
        %v2535 = vunpack.c.l.b16 %v1006
        %v2536 = vunpack.c.h.b16 %v1006
        %v2537 = vunpack.c.l.b16 %v1007
        %v2538 = vunpack.c.h.b16 %v1007
        %v2539 = vunpack.c.l.b16 %v1008
        %v2540 = vunpack.c.h.b16 %v1008
        %v2541 = vunpack.c.l.b16 %v1009
        %v2542 = vunpack.c.h.b16 %v1009
        %v2543 = vunpack.c.l.b16 %v1010
        %v2544 = vunpack.c.h.b16 %v1010
        %v2545 = vunpack.c.l.b16 %v1011
        %v2546 = vunpack.c.h.b16 %v1011
        %v2547 = vunpack.c.l.b16 %v1012
        %v2548 = vunpack.c.h.b16 %v1012
        %v2549 = vpack.c.b16 %v1533, %v1525
        %v2550 = vpack.c.b16 %v1534, %v1526
        %v2551 = vpack.c.b16 %v1535, %v1527
        %v2552 = vpack.c.b16 %v1536, %v1528
        %v2553 = vpack.c.b16 %v1537, %v1529
        %v2554 = vpack.c.b16 %v1538, %v1530
        %v2555 = vpack.c.b16 %v1539, %v1531
        %v2556 = vpack.c.b16 %v1540, %v1532
        %v2557 = vpack.c.b16 %v1549, %v1541
        %v2558 = vpack.c.b16 %v1550, %v1542
        %v2559 = vpack.c.b16 %v1551, %v1543
        %v2560 = vpack.c.b16 %v1552, %v1544
        %v2561 = vpack.c.b16 %v1553, %v1545
        %v2562 = vpack.c.b16 %v1554, %v1546
        %v2563 = vpack.c.b16 %v1555, %v1547
        %v2564 = vpack.c.b16 %v1556, %v1548
        %v2565 = vpack.c.b16 %v1565, %v1557
        %v2566 = vpack.c.b16 %v1566, %v1558
        %v2567 = vpack.c.b16 %v1567, %v1559
        %v2568 = vpack.c.b16 %v1568, %v1560
        %v2569 = vpack.c.b16 %v1569, %v1561
        %v2570 = vpack.c.b16 %v1570, %v1562
        %v2571 = vpack.c.b16 %v1571, %v1563
        %v2572 = vpack.c.b16 %v1572, %v1564
        %v2573 = vpack.c.b16 %v1581, %v1573
        %v2574 = vpack.c.b16 %v1582, %v1574
        %v2575 = vpack.c.b16 %v1583, %v1575
        %v2576 = vpack.c.b16 %v1584, %v1576
        %v2577 = vpack.c.b16 %v1585, %v1577
        %v2578 = vpack.c.b16 %v1586, %v1578
        %v2579 = vpack.c.b16 %v1587, %v1579
        %v2580 = vpack.c.b16 %v1588, %v1580
        %v2581 = vpack.c.b16 %v1597, %v1589
        %v2582 = vpack.c.b16 %v1598, %v1590
        %v2583 = vpack.c.b16 %v1599, %v1591
        %v2584 = vpack.c.b16 %v1600, %v1592
        %v2585 = vpack.c.b16 %v1601, %v1593
        %v2586 = vpack.c.b16 %v1602, %v1594
        %v2587 = vpack.c.b16 %v1603, %v1595
        %v2588 = vpack.c.b16 %v1604, %v1596
        %v2589 = vpack.c.b16 %v1613, %v1605
        %v2590 = vpack.c.b16 %v1614, %v1606
        %v2591 = vpack.c.b16 %v1615, %v1607
        %v2592 = vpack.c.b16 %v1616, %v1608
        %v2593 = vpack.c.b16 %v1617, %v1609
        %v2594 = vpack.c.b16 %v1618, %v1610
        %v2595 = vpack.c.b16 %v1619, %v1611
        %v2596 = vpack.c.b16 %v1620, %v1612
        %v2597 = vpack.c.b16 %v1629, %v1621
        %v2598 = vpack.c.b16 %v1630, %v1622
        %v2599 = vpack.c.b16 %v1631, %v1623
        %v2600 = vpack.c.b16 %v1632, %v1624
        %v2601 = vpack.c.b16 %v1633, %v1625
        %v2602 = vpack.c.b16 %v1634, %v1626
        %v2603 = vpack.c.b16 %v1635, %v1627
        %v2604 = vpack.c.b16 %v1636, %v1628
        %v2605 = vpack.c.b16 %v1645, %v1637
        %v2606 = vpack.c.b16 %v1646, %v1638
        %v2607 = vpack.c.b16 %v1647, %v1639
        %v2608 = vpack.c.b16 %v1648, %v1640
        %v2609 = vpack.c.b16 %v1649, %v1641
        %v2610 = vpack.c.b16 %v1650, %v1642
        %v2611 = vpack.c.b16 %v1651, %v1643
        %v2612 = vpack.c.b16 %v1652, %v1644
        %v2613 = vpack.c.b16 %v1661, %v1653
        %v2614 = vpack.c.b16 %v1662, %v1654
        %v2615 = vpack.c.b16 %v1663, %v1655
        %v2616 = vpack.c.b16 %v1664, %v1656
        %v2617 = vpack.c.b16 %v1665, %v1657
        %v2618 = vpack.c.b16 %v1666, %v1658
        %v2619 = vpack.c.b16 %v1667, %v1659
        %v2620 = vpack.c.b16 %v1668, %v1660
        %v2621 = vpack.c.b16 %v1677, %v1669
        %v2622 = vpack.c.b16 %v1678, %v1670
        %v2623 = vpack.c.b16 %v1679, %v1671
        %v2624 = vpack.c.b16 %v1680, %v1672
        %v2625 = vpack.c.b16 %v1681, %v1673
        %v2626 = vpack.c.b16 %v1682, %v1674
        %v2627 = vpack.c.b16 %v1683, %v1675
        %v2628 = vpack.c.b16 %v1684, %v1676
        %v2629 = vpack.c.b16 %v1693, %v1685
        %v2630 = vpack.c.b16 %v1694, %v1686
        %v2631 = vpack.c.b16 %v1695, %v1687
        %v2632 = vpack.c.b16 %v1696, %v1688
        %v2633 = vpack.c.b16 %v1697, %v1689
        %v2634 = vpack.c.b16 %v1698, %v1690
        %v2635 = vpack.c.b16 %v1699, %v1691
        %v2636 = vpack.c.b16 %v1700, %v1692
        %v2637 = vpack.c.b16 %v1709, %v1701
        %v2638 = vpack.c.b16 %v1710, %v1702
        %v2639 = vpack.c.b16 %v1711, %v1703
        %v2640 = vpack.c.b16 %v1712, %v1704
        %v2641 = vpack.c.b16 %v1713, %v1705
        %v2642 = vpack.c.b16 %v1714, %v1706
        %v2643 = vpack.c.b16 %v1715, %v1707
        %v2644 = vpack.c.b16 %v1716, %v1708
        %v2645 = vpack.c.b16 %v1725, %v1717
        %v2646 = vpack.c.b16 %v1726, %v1718
        %v2647 = vpack.c.b16 %v1727, %v1719
        %v2648 = vpack.c.b16 %v1728, %v1720
        %v2649 = vpack.c.b16 %v1729, %v1721
        %v2650 = vpack.c.b16 %v1730, %v1722
        %v2651 = vpack.c.b16 %v1731, %v1723
        %v2652 = vpack.c.b16 %v1732, %v1724
        %v2653 = vpack.c.b16 %v1741, %v1733
        %v2654 = vpack.c.b16 %v1742, %v1734
        %v2655 = vpack.c.b16 %v1743, %v1735
        %v2656 = vpack.c.b16 %v1744, %v1736
        %v2657 = vpack.c.b16 %v1745, %v1737
        %v2658 = vpack.c.b16 %v1746, %v1738
        %v2659 = vpack.c.b16 %v1747, %v1739
        %v2660 = vpack.c.b16 %v1748, %v1740
        %v2661 = vpack.c.b16 %v1757, %v1749
        %v2662 = vpack.c.b16 %v1758, %v1750
        %v2663 = vpack.c.b16 %v1759, %v1751
        %v2664 = vpack.c.b16 %v1760, %v1752
        %v2665 = vpack.c.b16 %v1761, %v1753
        %v2666 = vpack.c.b16 %v1762, %v1754
        %v2667 = vpack.c.b16 %v1763, %v1755
        %v2668 = vpack.c.b16 %v1764, %v1756
        %v2669 = vpack.c.b16 %v1773, %v1765
        %v2670 = vpack.c.b16 %v1774, %v1766
        %v2671 = vpack.c.b16 %v1775, %v1767
        %v2672 = vpack.c.b16 %v1776, %v1768
        %v2673 = vpack.c.b16 %v1777, %v1769
        %v2674 = vpack.c.b16 %v1778, %v1770
        %v2675 = vpack.c.b16 %v1779, %v1771
        %v2676 = vpack.c.b16 %v1780, %v1772
        %v2677 = vpack.c.b16 %v1789, %v1781
        %v2678 = vpack.c.b16 %v1790, %v1782
        %v2679 = vpack.c.b16 %v1791, %v1783
        %v2680 = vpack.c.b16 %v1792, %v1784
        %v2681 = vpack.c.b16 %v1793, %v1785
        %v2682 = vpack.c.b16 %v1794, %v1786
        %v2683 = vpack.c.b16 %v1795, %v1787
        %v2684 = vpack.c.b16 %v1796, %v1788
        %v2685 = vpack.c.b16 %v1805, %v1797
        %v2686 = vpack.c.b16 %v1806, %v1798
        %v2687 = vpack.c.b16 %v1807, %v1799
        %v2688 = vpack.c.b16 %v1808, %v1800
        %v2689 = vpack.c.b16 %v1809, %v1801
        %v2690 = vpack.c.b16 %v1810, %v1802
        %v2691 = vpack.c.b16 %v1811, %v1803
        %v2692 = vpack.c.b16 %v1812, %v1804
        %v2693 = vpack.c.b16 %v1821, %v1813
        %v2694 = vpack.c.b16 %v1822, %v1814
        %v2695 = vpack.c.b16 %v1823, %v1815
        %v2696 = vpack.c.b16 %v1824, %v1816
        %v2697 = vpack.c.b16 %v1825, %v1817
        %v2698 = vpack.c.b16 %v1826, %v1818
        %v2699 = vpack.c.b16 %v1827, %v1819
        %v2700 = vpack.c.b16 %v1828, %v1820
        %v2701 = vpack.c.b16 %v1837, %v1829
        %v2702 = vpack.c.b16 %v1838, %v1830
        %v2703 = vpack.c.b16 %v1839, %v1831
        %v2704 = vpack.c.b16 %v1840, %v1832
        %v2705 = vpack.c.b16 %v1841, %v1833
        %v2706 = vpack.c.b16 %v1842, %v1834
        %v2707 = vpack.c.b16 %v1843, %v1835
        %v2708 = vpack.c.b16 %v1844, %v1836
        %v2709 = vpack.c.b16 %v1853, %v1845
        %v2710 = vpack.c.b16 %v1854, %v1846
        %v2711 = vpack.c.b16 %v1855, %v1847
        %v2712 = vpack.c.b16 %v1856, %v1848
        %v2713 = vpack.c.b16 %v1857, %v1849
        %v2714 = vpack.c.b16 %v1858, %v1850
        %v2715 = vpack.c.b16 %v1859, %v1851
        %v2716 = vpack.c.b16 %v1860, %v1852
        %v2717 = vpack.c.b16 %v1869, %v1861
        %v2718 = vpack.c.b16 %v1870, %v1862
        %v2719 = vpack.c.b16 %v1871, %v1863
        %v2720 = vpack.c.b16 %v1872, %v1864
        %v2721 = vpack.c.b16 %v1873, %v1865
        %v2722 = vpack.c.b16 %v1874, %v1866
        %v2723 = vpack.c.b16 %v1875, %v1867
        %v2724 = vpack.c.b16 %v1876, %v1868
        %v2725 = vpack.c.b16 %v1885, %v1877
        %v2726 = vpack.c.b16 %v1886, %v1878
        %v2727 = vpack.c.b16 %v1887, %v1879
        %v2728 = vpack.c.b16 %v1888, %v1880
        %v2729 = vpack.c.b16 %v1889, %v1881
        %v2730 = vpack.c.b16 %v1890, %v1882
        %v2731 = vpack.c.b16 %v1891, %v1883
        %v2732 = vpack.c.b16 %v1892, %v1884
        %v2733 = vpack.c.b16 %v1901, %v1893
        %v2734 = vpack.c.b16 %v1902, %v1894
        %v2735 = vpack.c.b16 %v1903, %v1895
        %v2736 = vpack.c.b16 %v1904, %v1896
        %v2737 = vpack.c.b16 %v1905, %v1897
        %v2738 = vpack.c.b16 %v1906, %v1898
        %v2739 = vpack.c.b16 %v1907, %v1899
        %v2740 = vpack.c.b16 %v1908, %v1900
        %v2741 = vpack.c.b16 %v1917, %v1909
        %v2742 = vpack.c.b16 %v1918, %v1910
        %v2743 = vpack.c.b16 %v1919, %v1911
        %v2744 = vpack.c.b16 %v1920, %v1912
        %v2745 = vpack.c.b16 %v1921, %v1913
        %v2746 = vpack.c.b16 %v1922, %v1914
        %v2747 = vpack.c.b16 %v1923, %v1915
        %v2748 = vpack.c.b16 %v1924, %v1916
        %v2749 = vpack.c.b16 %v1933, %v1925
        %v2750 = vpack.c.b16 %v1934, %v1926
        %v2751 = vpack.c.b16 %v1935, %v1927
        %v2752 = vpack.c.b16 %v1936, %v1928
        %v2753 = vpack.c.b16 %v1937, %v1929
        %v2754 = vpack.c.b16 %v1938, %v1930
        %v2755 = vpack.c.b16 %v1939, %v1931
        %v2756 = vpack.c.b16 %v1940, %v1932
        %v2757 = vpack.c.b16 %v1949, %v1941
        %v2758 = vpack.c.b16 %v1950, %v1942
        %v2759 = vpack.c.b16 %v1951, %v1943
        %v2760 = vpack.c.b16 %v1952, %v1944
        %v2761 = vpack.c.b16 %v1953, %v1945
        %v2762 = vpack.c.b16 %v1954, %v1946
        %v2763 = vpack.c.b16 %v1955, %v1947
        %v2764 = vpack.c.b16 %v1956, %v1948
        %v2765 = vpack.c.b16 %v1965, %v1957
        %v2766 = vpack.c.b16 %v1966, %v1958
        %v2767 = vpack.c.b16 %v1967, %v1959
        %v2768 = vpack.c.b16 %v1968, %v1960
        %v2769 = vpack.c.b16 %v1969, %v1961
        %v2770 = vpack.c.b16 %v1970, %v1962
        %v2771 = vpack.c.b16 %v1971, %v1963
        %v2772 = vpack.c.b16 %v1972, %v1964
        %v2773 = vpack.c.b16 %v1981, %v1973
        %v2774 = vpack.c.b16 %v1982, %v1974
        %v2775 = vpack.c.b16 %v1983, %v1975
        %v2776 = vpack.c.b16 %v1984, %v1976
        %v2777 = vpack.c.b16 %v1985, %v1977
        %v2778 = vpack.c.b16 %v1986, %v1978
        %v2779 = vpack.c.b16 %v1987, %v1979
        %v2780 = vpack.c.b16 %v1988, %v1980
        %v2781 = vpack.c.b16 %v1997, %v1989
        %v2782 = vpack.c.b16 %v1998, %v1990
        %v2783 = vpack.c.b16 %v1999, %v1991
        %v2784 = vpack.c.b16 %v2000, %v1992
        %v2785 = vpack.c.b16 %v2001, %v1993
        %v2786 = vpack.c.b16 %v2002, %v1994
        %v2787 = vpack.c.b16 %v2003, %v1995
        %v2788 = vpack.c.b16 %v2004, %v1996
        %v2789 = vpack.c.b16 %v2013, %v2005
        %v2790 = vpack.c.b16 %v2014, %v2006
        %v2791 = vpack.c.b16 %v2015, %v2007
        %v2792 = vpack.c.b16 %v2016, %v2008
        %v2793 = vpack.c.b16 %v2017, %v2009
        %v2794 = vpack.c.b16 %v2018, %v2010
        %v2795 = vpack.c.b16 %v2019, %v2011
        %v2796 = vpack.c.b16 %v2020, %v2012
        %v2797 = vpack.c.b16 %v2029, %v2021
        %v2798 = vpack.c.b16 %v2030, %v2022
        %v2799 = vpack.c.b16 %v2031, %v2023
        %v2800 = vpack.c.b16 %v2032, %v2024
        %v2801 = vpack.c.b16 %v2033, %v2025
        %v2802 = vpack.c.b16 %v2034, %v2026
        %v2803 = vpack.c.b16 %v2035, %v2027
        %v2804 = vpack.c.b16 %v2036, %v2028
        %v2805 = vpack.c.b16 %v2045, %v2037
        %v2806 = vpack.c.b16 %v2046, %v2038
        %v2807 = vpack.c.b16 %v2047, %v2039
        %v2808 = vpack.c.b16 %v2048, %v2040
        %v2809 = vpack.c.b16 %v2049, %v2041
        %v2810 = vpack.c.b16 %v2050, %v2042
        %v2811 = vpack.c.b16 %v2051, %v2043
        %v2812 = vpack.c.b16 %v2052, %v2044
        %v2813 = vpack.c.b16 %v2061, %v2053
        %v2814 = vpack.c.b16 %v2062, %v2054
        %v2815 = vpack.c.b16 %v2063, %v2055
        %v2816 = vpack.c.b16 %v2064, %v2056
        %v2817 = vpack.c.b16 %v2065, %v2057
        %v2818 = vpack.c.b16 %v2066, %v2058
        %v2819 = vpack.c.b16 %v2067, %v2059
        %v2820 = vpack.c.b16 %v2068, %v2060
        %v2821 = vpack.c.b16 %v2077, %v2069
        %v2822 = vpack.c.b16 %v2078, %v2070
        %v2823 = vpack.c.b16 %v2079, %v2071
        %v2824 = vpack.c.b16 %v2080, %v2072
        %v2825 = vpack.c.b16 %v2081, %v2073
        %v2826 = vpack.c.b16 %v2082, %v2074
        %v2827 = vpack.c.b16 %v2083, %v2075
        %v2828 = vpack.c.b16 %v2084, %v2076
        %v2829 = vpack.c.b16 %v2093, %v2085
        %v2830 = vpack.c.b16 %v2094, %v2086
        %v2831 = vpack.c.b16 %v2095, %v2087
        %v2832 = vpack.c.b16 %v2096, %v2088
        %v2833 = vpack.c.b16 %v2097, %v2089
        %v2834 = vpack.c.b16 %v2098, %v2090
        %v2835 = vpack.c.b16 %v2099, %v2091
        %v2836 = vpack.c.b16 %v2100, %v2092
        %v2837 = vpack.c.b16 %v2109, %v2101
        %v2838 = vpack.c.b16 %v2110, %v2102
        %v2839 = vpack.c.b16 %v2111, %v2103
        %v2840 = vpack.c.b16 %v2112, %v2104
        %v2841 = vpack.c.b16 %v2113, %v2105
        %v2842 = vpack.c.b16 %v2114, %v2106
        %v2843 = vpack.c.b16 %v2115, %v2107
        %v2844 = vpack.c.b16 %v2116, %v2108
        %v2845 = vpack.c.b16 %v2125, %v2117
        %v2846 = vpack.c.b16 %v2126, %v2118
        %v2847 = vpack.c.b16 %v2127, %v2119
        %v2848 = vpack.c.b16 %v2128, %v2120
        %v2849 = vpack.c.b16 %v2129, %v2121
        %v2850 = vpack.c.b16 %v2130, %v2122
        %v2851 = vpack.c.b16 %v2131, %v2123
        %v2852 = vpack.c.b16 %v2132, %v2124
        %v2853 = vpack.c.b16 %v2141, %v2133
        %v2854 = vpack.c.b16 %v2142, %v2134
        %v2855 = vpack.c.b16 %v2143, %v2135
        %v2856 = vpack.c.b16 %v2144, %v2136
        %v2857 = vpack.c.b16 %v2145, %v2137
        %v2858 = vpack.c.b16 %v2146, %v2138
        %v2859 = vpack.c.b16 %v2147, %v2139
        %v2860 = vpack.c.b16 %v2148, %v2140
        %v2861 = vpack.c.b16 %v2157, %v2149
        %v2862 = vpack.c.b16 %v2158, %v2150
        %v2863 = vpack.c.b16 %v2159, %v2151
        %v2864 = vpack.c.b16 %v2160, %v2152
        %v2865 = vpack.c.b16 %v2161, %v2153
        %v2866 = vpack.c.b16 %v2162, %v2154
        %v2867 = vpack.c.b16 %v2163, %v2155
        %v2868 = vpack.c.b16 %v2164, %v2156
        %v2869 = vpack.c.b16 %v2173, %v2165
        %v2870 = vpack.c.b16 %v2174, %v2166
        %v2871 = vpack.c.b16 %v2175, %v2167
        %v2872 = vpack.c.b16 %v2176, %v2168
        %v2873 = vpack.c.b16 %v2177, %v2169
        %v2874 = vpack.c.b16 %v2178, %v2170
        %v2875 = vpack.c.b16 %v2179, %v2171
        %v2876 = vpack.c.b16 %v2180, %v2172
        %v2877 = vpack.c.b16 %v2189, %v2181
        %v2878 = vpack.c.b16 %v2190, %v2182
        %v2879 = vpack.c.b16 %v2191, %v2183
        %v2880 = vpack.c.b16 %v2192, %v2184
        %v2881 = vpack.c.b16 %v2193, %v2185
        %v2882 = vpack.c.b16 %v2194, %v2186
        %v2883 = vpack.c.b16 %v2195, %v2187
        %v2884 = vpack.c.b16 %v2196, %v2188
        %v2885 = vpack.c.b16 %v2205, %v2197
        %v2886 = vpack.c.b16 %v2206, %v2198
        %v2887 = vpack.c.b16 %v2207, %v2199
        %v2888 = vpack.c.b16 %v2208, %v2200
        %v2889 = vpack.c.b16 %v2209, %v2201
        %v2890 = vpack.c.b16 %v2210, %v2202
        %v2891 = vpack.c.b16 %v2211, %v2203
        %v2892 = vpack.c.b16 %v2212, %v2204
        %v2893 = vpack.c.b16 %v2221, %v2213
        %v2894 = vpack.c.b16 %v2222, %v2214
        %v2895 = vpack.c.b16 %v2223, %v2215
        %v2896 = vpack.c.b16 %v2224, %v2216
        %v2897 = vpack.c.b16 %v2225, %v2217
        %v2898 = vpack.c.b16 %v2226, %v2218
        %v2899 = vpack.c.b16 %v2227, %v2219
        %v2900 = vpack.c.b16 %v2228, %v2220
        %v2901 = vpack.c.b16 %v2237, %v2229
        %v2902 = vpack.c.b16 %v2238, %v2230
        %v2903 = vpack.c.b16 %v2239, %v2231
        %v2904 = vpack.c.b16 %v2240, %v2232
        %v2905 = vpack.c.b16 %v2241, %v2233
        %v2906 = vpack.c.b16 %v2242, %v2234
        %v2907 = vpack.c.b16 %v2243, %v2235
        %v2908 = vpack.c.b16 %v2244, %v2236
        %v2909 = vpack.c.b16 %v2253, %v2245
        %v2910 = vpack.c.b16 %v2254, %v2246
        %v2911 = vpack.c.b16 %v2255, %v2247
        %v2912 = vpack.c.b16 %v2256, %v2248
        %v2913 = vpack.c.b16 %v2257, %v2249
        %v2914 = vpack.c.b16 %v2258, %v2250
        %v2915 = vpack.c.b16 %v2259, %v2251
        %v2916 = vpack.c.b16 %v2260, %v2252
        %v2917 = vpack.c.b16 %v2269, %v2261
        %v2918 = vpack.c.b16 %v2270, %v2262
        %v2919 = vpack.c.b16 %v2271, %v2263
        %v2920 = vpack.c.b16 %v2272, %v2264
        %v2921 = vpack.c.b16 %v2273, %v2265
        %v2922 = vpack.c.b16 %v2274, %v2266
        %v2923 = vpack.c.b16 %v2275, %v2267
        %v2924 = vpack.c.b16 %v2276, %v2268
        %v2925 = vpack.c.b16 %v2285, %v2277
        %v2926 = vpack.c.b16 %v2286, %v2278
        %v2927 = vpack.c.b16 %v2287, %v2279
        %v2928 = vpack.c.b16 %v2288, %v2280
        %v2929 = vpack.c.b16 %v2289, %v2281
        %v2930 = vpack.c.b16 %v2290, %v2282
        %v2931 = vpack.c.b16 %v2291, %v2283
        %v2932 = vpack.c.b16 %v2292, %v2284
        %v2933 = vpack.c.b16 %v2301, %v2293
        %v2934 = vpack.c.b16 %v2302, %v2294
        %v2935 = vpack.c.b16 %v2303, %v2295
        %v2936 = vpack.c.b16 %v2304, %v2296
        %v2937 = vpack.c.b16 %v2305, %v2297
        %v2938 = vpack.c.b16 %v2306, %v2298
        %v2939 = vpack.c.b16 %v2307, %v2299
        %v2940 = vpack.c.b16 %v2308, %v2300
        %v2941 = vpack.c.b16 %v2317, %v2309
        %v2942 = vpack.c.b16 %v2318, %v2310
        %v2943 = vpack.c.b16 %v2319, %v2311
        %v2944 = vpack.c.b16 %v2320, %v2312
        %v2945 = vpack.c.b16 %v2321, %v2313
        %v2946 = vpack.c.b16 %v2322, %v2314
        %v2947 = vpack.c.b16 %v2323, %v2315
        %v2948 = vpack.c.b16 %v2324, %v2316
        %v2949 = vpack.c.b16 %v2333, %v2325
        %v2950 = vpack.c.b16 %v2334, %v2326
        %v2951 = vpack.c.b16 %v2335, %v2327
        %v2952 = vpack.c.b16 %v2336, %v2328
        %v2953 = vpack.c.b16 %v2337, %v2329
        %v2954 = vpack.c.b16 %v2338, %v2330
        %v2955 = vpack.c.b16 %v2339, %v2331
        %v2956 = vpack.c.b16 %v2340, %v2332
        %v2957 = vpack.c.b16 %v2349, %v2341
        %v2958 = vpack.c.b16 %v2350, %v2342
        %v2959 = vpack.c.b16 %v2351, %v2343
        %v2960 = vpack.c.b16 %v2352, %v2344
        %v2961 = vpack.c.b16 %v2353, %v2345
        %v2962 = vpack.c.b16 %v2354, %v2346
        %v2963 = vpack.c.b16 %v2355, %v2347
        %v2964 = vpack.c.b16 %v2356, %v2348
        %v2965 = vpack.c.b16 %v2365, %v2357
        %v2966 = vpack.c.b16 %v2366, %v2358
        %v2967 = vpack.c.b16 %v2367, %v2359
        %v2968 = vpack.c.b16 %v2368, %v2360
        %v2969 = vpack.c.b16 %v2369, %v2361
        %v2970 = vpack.c.b16 %v2370, %v2362
        %v2971 = vpack.c.b16 %v2371, %v2363
        %v2972 = vpack.c.b16 %v2372, %v2364
        %v2973 = vpack.c.b16 %v2381, %v2373
        %v2974 = vpack.c.b16 %v2382, %v2374
        %v2975 = vpack.c.b16 %v2383, %v2375
        %v2976 = vpack.c.b16 %v2384, %v2376
        %v2977 = vpack.c.b16 %v2385, %v2377
        %v2978 = vpack.c.b16 %v2386, %v2378
        %v2979 = vpack.c.b16 %v2387, %v2379
        %v2980 = vpack.c.b16 %v2388, %v2380
        %v2981 = vpack.c.b16 %v2397, %v2389
        %v2982 = vpack.c.b16 %v2398, %v2390
        %v2983 = vpack.c.b16 %v2399, %v2391
        %v2984 = vpack.c.b16 %v2400, %v2392
        %v2985 = vpack.c.b16 %v2401, %v2393
        %v2986 = vpack.c.b16 %v2402, %v2394
        %v2987 = vpack.c.b16 %v2403, %v2395
        %v2988 = vpack.c.b16 %v2404, %v2396
        %v2989 = vpack.c.b16 %v2413, %v2405
        %v2990 = vpack.c.b16 %v2414, %v2406
        %v2991 = vpack.c.b16 %v2415, %v2407
        %v2992 = vpack.c.b16 %v2416, %v2408
        %v2993 = vpack.c.b16 %v2417, %v2409
        %v2994 = vpack.c.b16 %v2418, %v2410
        %v2995 = vpack.c.b16 %v2419, %v2411
        %v2996 = vpack.c.b16 %v2420, %v2412
        %v2997 = vpack.c.b16 %v2429, %v2421
        %v2998 = vpack.c.b16 %v2430, %v2422
        %v2999 = vpack.c.b16 %v2431, %v2423
        %v3000 = vpack.c.b16 %v2432, %v2424
        %v3001 = vpack.c.b16 %v2433, %v2425
        %v3002 = vpack.c.b16 %v2434, %v2426
        %v3003 = vpack.c.b16 %v2435, %v2427
        %v3004 = vpack.c.b16 %v2436, %v2428
        %v3005 = vpack.c.b16 %v2445, %v2437
        %v3006 = vpack.c.b16 %v2446, %v2438
        %v3007 = vpack.c.b16 %v2447, %v2439
        %v3008 = vpack.c.b16 %v2448, %v2440
        %v3009 = vpack.c.b16 %v2449, %v2441
        %v3010 = vpack.c.b16 %v2450, %v2442
        %v3011 = vpack.c.b16 %v2451, %v2443
        %v3012 = vpack.c.b16 %v2452, %v2444
        %v3013 = vpack.c.b16 %v2461, %v2453
        %v3014 = vpack.c.b16 %v2462, %v2454
        %v3015 = vpack.c.b16 %v2463, %v2455
        %v3016 = vpack.c.b16 %v2464, %v2456
        %v3017 = vpack.c.b16 %v2465, %v2457
        %v3018 = vpack.c.b16 %v2466, %v2458
        %v3019 = vpack.c.b16 %v2467, %v2459
        %v3020 = vpack.c.b16 %v2468, %v2460
        %v3021 = vpack.c.b16 %v2477, %v2469
        %v3022 = vpack.c.b16 %v2478, %v2470
        %v3023 = vpack.c.b16 %v2479, %v2471
        %v3024 = vpack.c.b16 %v2480, %v2472
        %v3025 = vpack.c.b16 %v2481, %v2473
        %v3026 = vpack.c.b16 %v2482, %v2474
        %v3027 = vpack.c.b16 %v2483, %v2475
        %v3028 = vpack.c.b16 %v2484, %v2476
        %v3029 = vpack.c.b16 %v2493, %v2485
        %v3030 = vpack.c.b16 %v2494, %v2486
        %v3031 = vpack.c.b16 %v2495, %v2487
        %v3032 = vpack.c.b16 %v2496, %v2488
        %v3033 = vpack.c.b16 %v2497, %v2489
        %v3034 = vpack.c.b16 %v2498, %v2490
        %v3035 = vpack.c.b16 %v2499, %v2491
        %v3036 = vpack.c.b16 %v2500, %v2492
        %v3037 = vpack.c.b16 %v2509, %v2501
        %v3038 = vpack.c.b16 %v2510, %v2502
        %v3039 = vpack.c.b16 %v2511, %v2503
        %v3040 = vpack.c.b16 %v2512, %v2504
        %v3041 = vpack.c.b16 %v2513, %v2505
        %v3042 = vpack.c.b16 %v2514, %v2506
        %v3043 = vpack.c.b16 %v2515, %v2507
        %v3044 = vpack.c.b16 %v2516, %v2508
        %v3045 = vpack.c.b16 %v2525, %v2517
        %v3046 = vpack.c.b16 %v2526, %v2518
        %v3047 = vpack.c.b16 %v2527, %v2519
        %v3048 = vpack.c.b16 %v2528, %v2520
        %v3049 = vpack.c.b16 %v2529, %v2521
        %v3050 = vpack.c.b16 %v2530, %v2522
        %v3051 = vpack.c.b16 %v2531, %v2523
        %v3052 = vpack.c.b16 %v2532, %v2524
        %v3053 = vpack.c.b16 %v2541, %v2533
        %v3054 = vpack.c.b16 %v2542, %v2534
        %v3055 = vpack.c.b16 %v2543, %v2535
        %v3056 = vpack.c.b16 %v2544, %v2536
        %v3057 = vpack.c.b16 %v2545, %v2537
        %v3058 = vpack.c.b16 %v2546, %v2538
        %v3059 = vpack.c.b16 %v2547, %v2539
        %v3060 = vpack.c.b16 %v2548, %v2540
        %3573 = vmatprep.subr.bf16.mxu0 0
        %3574 = vmatpush1.bf16.msra.mxu0 %v437
        %3575 = vmatprep.subr.bf16.mxu0 0
        %3576 = vmatpush1.bf16.msra.mxu0 %v438
        %3577 = vmatprep.subr.bf16.mxu0 0
        %3578 = vmatpush1.bf16.msra.mxu0 %v439
        %3579 = vmatprep.subr.bf16.mxu0 0
        %3580 = vmatpush1.bf16.msra.mxu0 %v440
        %3581 = vmatprep.subr.bf16.mxu0 0
        %3582 = vmatpush1.bf16.msra.mxu0 %v441
        %3583 = vmatprep.subr.bf16.mxu0 0
        %3584 = vmatpush1.bf16.msra.mxu0 %v442
        %3585 = vmatprep.subr.bf16.mxu0 0
        %3586 = vmatpush1.bf16.msra.mxu0 %v443
        %3587 = vmatprep.subr.bf16.mxu0 0
        %3588 = vmatpush1.bf16.msra.mxu0 %v444
        %3589 = vmatprep.subr.bf16.mxu0 0
        %3590 = vmatpush1.bf16.msra.mxu0 %v445
        %3591 = vmatprep.subr.bf16.mxu0 0
        %3592 = vmatpush1.bf16.msra.mxu0 %v446
        %3593 = vmatprep.subr.bf16.mxu0 0
        %3594 = vmatpush1.bf16.msra.mxu0 %v447
        %3595 = vmatprep.subr.bf16.mxu0 0
        %3596 = vmatpush1.bf16.msra.mxu0 %v448
        %3597 = vmatprep.subr.bf16.mxu0 0
        %3598 = vmatpush1.bf16.msra.mxu0 %v449
        %3599 = vmatprep.subr.bf16.mxu0 0
        %3600 = vmatpush1.bf16.msra.mxu0 %v450
        %3601 = vmatprep.subr.bf16.mxu0 0
        %3602 = vmatpush1.bf16.msra.mxu0 %v451
        %3603 = vmatprep.subr.bf16.mxu0 0
        %3604 = vmatpush1.bf16.msra.mxu0 %v452
        %3605 = vmatprep.mubr.bf16.mxu0 %v2550
        %3606 = vmatmul.mubr.bf16.gmra.mrb[0].mxu0 %v2549
        %v3607 = vpop.f32.mrb[0].mxu0
        %v3608 = vadd.f32 0.0, %v3607
        %v3609 = vpop.f32.mrb[0].mxu0
        %v3610 = vpop.f32.mrb[0].mxu0
        %v3611 = vadd.f32 0.0, %v3610
        %v3612 = vpop.f32.mrb[0].mxu0
        %3613 = vmatprep.mubr.bf16.mxu0 %v2558
        %3614 = vmatmul.mubr.bf16.gmra.mrb[0].mxu0 %v2557
        %v3615 = vpop.f32.mrb[0].mxu0
        %v3616 = vadd.f32 0.0, %v3615
        %v3617 = vpop.f32.mrb[0].mxu0
        %v3618 = vpop.f32.mrb[0].mxu0
        %v3619 = vadd.f32 0.0, %v3618
        %v3620 = vpop.f32.mrb[0].mxu0
        %3621 = vmatprep.mubr.bf16.mxu0 %v2566
        %3622 = vmatmul.mubr.bf16.gmra.mrb[0].mxu0 %v2565
        %v3623 = vpop.f32.mrb[0].mxu0
        %v3624 = vadd.f32 0.0, %v3623
        %v3625 = vpop.f32.mrb[0].mxu0
        %v3626 = vpop.f32.mrb[0].mxu0
        %v3627 = vadd.f32 0.0, %v3626
        %v3628 = vpop.f32.mrb[0].mxu0
        %3629 = vmatprep.mubr.bf16.mxu0 %v2574
        %3630 = vmatmul.mubr.bf16.gmra.mrb[0].mxu0 %v2573
        %v3631 = vpop.f32.mrb[0].mxu0
        %v3632 = vadd.f32 0.0, %v3631
        %v3633 = vpop.f32.mrb[0].mxu0
        %v3634 = vpop.f32.mrb[0].mxu0
        %v3635 = vadd.f32 0.0, %v3634
        %v3636 = vpop.f32.mrb[0].mxu0
        %3637 = vmatprep.mubr.bf16.mxu0 %v2582
        %3638 = vmatmul.mubr.bf16.gmra.mrb[0].mxu0 %v2581
        %v3639 = vpop.f32.mrb[0].mxu0
        %v3640 = vadd.f32 0.0, %v3639
        %v3641 = vpop.f32.mrb[0].mxu0
        %v3642 = vpop.f32.mrb[0].mxu0
        %v3643 = vadd.f32 0.0, %v3642
        %v3644 = vpop.f32.mrb[0].mxu0
        %3645 = vmatprep.mubr.bf16.mxu0 %v2590
        %3646 = vmatmul.mubr.bf16.gmra.mrb[0].mxu0 %v2589
        %v3647 = vpop.f32.mrb[0].mxu0
        %v3648 = vadd.f32 0.0, %v3647
        %v3649 = vpop.f32.mrb[0].mxu0
        %v3650 = vpop.f32.mrb[0].mxu0
        %v3651 = vadd.f32 0.0, %v3650
        %v3652 = vpop.f32.mrb[0].mxu0
        %3653 = vmatprep.mubr.bf16.mxu0 %v2598
        %3654 = vmatmul.mubr.bf16.gmra.mrb[0].mxu0 %v2597
        %v3655 = vpop.f32.mrb[0].mxu0
        %v3656 = vadd.f32 0.0, %v3655
        %v3657 = vpop.f32.mrb[0].mxu0
        %v3658 = vpop.f32.mrb[0].mxu0
        %v3659 = vadd.f32 0.0, %v3658
        %v3660 = vpop.f32.mrb[0].mxu0
        %3661 = vmatprep.mubr.bf16.mxu0 %v2606
        %3662 = vmatmul.mubr.bf16.gmra.mrb[0].mxu0 %v2605
        %v3663 = vpop.f32.mrb[0].mxu0
        %v3664 = vadd.f32 0.0, %v3663
        %v3665 = vpop.f32.mrb[0].mxu0
        %v3666 = vpop.f32.mrb[0].mxu0
        %v3667 = vadd.f32 0.0, %v3666
        %v3668 = vpop.f32.mrb[0].mxu0
        %3669 = vmatprep.mubr.bf16.mxu0 %v2614
        %3670 = vmatmul.mubr.bf16.gmra.mrb[0].mxu0 %v2613
        %v3671 = vpop.f32.mrb[0].mxu0
        %v3672 = vadd.f32 0.0, %v3671
        %v3673 = vpop.f32.mrb[0].mxu0
        %v3674 = vpop.f32.mrb[0].mxu0
        %v3675 = vadd.f32 0.0, %v3674
        %v3676 = vpop.f32.mrb[0].mxu0
        %3677 = vmatprep.mubr.bf16.mxu0 %v2622
        %3678 = vmatmul.mubr.bf16.gmra.mrb[0].mxu0 %v2621
        %v3679 = vpop.f32.mrb[0].mxu0
        %v3680 = vadd.f32 0.0, %v3679
        %v3681 = vpop.f32.mrb[0].mxu0
        %v3682 = vpop.f32.mrb[0].mxu0
        %v3683 = vadd.f32 0.0, %v3682
        %v3684 = vpop.f32.mrb[0].mxu0
        %3685 = vmatprep.mubr.bf16.mxu0 %v2630
        %3686 = vmatmul.mubr.bf16.gmra.mrb[0].mxu0 %v2629
        %v3687 = vpop.f32.mrb[0].mxu0
        %v3688 = vadd.f32 0.0, %v3687
        %v3689 = vpop.f32.mrb[0].mxu0
        %v3690 = vpop.f32.mrb[0].mxu0
        %v3691 = vadd.f32 0.0, %v3690
        %v3692 = vpop.f32.mrb[0].mxu0
        %3693 = vmatprep.mubr.bf16.mxu0 %v2638
        %3694 = vmatmul.mubr.bf16.gmra.mrb[0].mxu0 %v2637
        %v3695 = vpop.f32.mrb[0].mxu0
        %v3696 = vadd.f32 0.0, %v3695
        %v3697 = vpop.f32.mrb[0].mxu0
        %v3698 = vpop.f32.mrb[0].mxu0
        %v3699 = vadd.f32 0.0, %v3698
        %v3700 = vpop.f32.mrb[0].mxu0
        %3701 = vmatprep.mubr.bf16.mxu0 %v2646
        %3702 = vmatmul.mubr.bf16.gmra.mrb[0].mxu0 %v2645
        %v3703 = vpop.f32.mrb[0].mxu0
        %v3704 = vadd.f32 0.0, %v3703
        %v3705 = vpop.f32.mrb[0].mxu0
        %v3706 = vpop.f32.mrb[0].mxu0
        %v3707 = vadd.f32 0.0, %v3706
        %v3708 = vpop.f32.mrb[0].mxu0
        %3709 = vmatprep.mubr.bf16.mxu0 %v2654
        %3710 = vmatmul.mubr.bf16.gmra.mrb[0].mxu0 %v2653
        %v3711 = vpop.f32.mrb[0].mxu0
        %v3712 = vadd.f32 0.0, %v3711
        %v3713 = vpop.f32.mrb[0].mxu0
        %v3714 = vpop.f32.mrb[0].mxu0
        %v3715 = vadd.f32 0.0, %v3714
        %v3716 = vpop.f32.mrb[0].mxu0
        %3717 = vmatprep.mubr.bf16.mxu0 %v2662
        %3718 = vmatmul.mubr.bf16.gmra.mrb[0].mxu0 %v2661
        %v3719 = vpop.f32.mrb[0].mxu0
        %v3720 = vadd.f32 0.0, %v3719
        %v3721 = vpop.f32.mrb[0].mxu0
        %v3722 = vpop.f32.mrb[0].mxu0
        %v3723 = vadd.f32 0.0, %v3722
        %v3724 = vpop.f32.mrb[0].mxu0
        %3725 = vmatprep.mubr.bf16.mxu0 %v2670
        %3726 = vmatmul.mubr.bf16.gmra.mrb[0].mxu0 %v2669
        %v3727 = vpop.f32.mrb[0].mxu0
        %v3728 = vadd.f32 0.0, %v3727
        %v3729 = vpop.f32.mrb[0].mxu0
        %v3730 = vpop.f32.mrb[0].mxu0
        %v3731 = vadd.f32 0.0, %v3730
        %v3732 = vpop.f32.mrb[0].mxu0
        %3733 = vmatprep.mubr.bf16.mxu0 %v2678
        %3734 = vmatmul.mubr.bf16.gmra.mrb[0].mxu0 %v2677
        %v3735 = vpop.f32.mrb[0].mxu0
        %v3736 = vadd.f32 0.0, %v3735
        %v3737 = vpop.f32.mrb[0].mxu0
        %v3738 = vpop.f32.mrb[0].mxu0
        %v3739 = vadd.f32 0.0, %v3738
        %v3740 = vpop.f32.mrb[0].mxu0
        %3741 = vmatprep.mubr.bf16.mxu0 %v2686
        %3742 = vmatmul.mubr.bf16.gmra.mrb[0].mxu0 %v2685
        %v3743 = vpop.f32.mrb[0].mxu0
        %v3744 = vadd.f32 0.0, %v3743
        %v3745 = vpop.f32.mrb[0].mxu0
        %v3746 = vpop.f32.mrb[0].mxu0
        %v3747 = vadd.f32 0.0, %v3746
        %v3748 = vpop.f32.mrb[0].mxu0
        %3749 = vmatprep.mubr.bf16.mxu0 %v2694
        %3750 = vmatmul.mubr.bf16.gmra.mrb[0].mxu0 %v2693
        %v3751 = vpop.f32.mrb[0].mxu0
        %v3752 = vadd.f32 0.0, %v3751
        %v3753 = vpop.f32.mrb[0].mxu0
        %v3754 = vpop.f32.mrb[0].mxu0
        %v3755 = vadd.f32 0.0, %v3754
        %v3756 = vpop.f32.mrb[0].mxu0
        %3757 = vmatprep.mubr.bf16.mxu0 %v2702
        %3758 = vmatmul.mubr.bf16.gmra.mrb[0].mxu0 %v2701
        %v3759 = vpop.f32.mrb[0].mxu0
        %v3760 = vadd.f32 0.0, %v3759
        %v3761 = vpop.f32.mrb[0].mxu0
        %v3762 = vpop.f32.mrb[0].mxu0
        %v3763 = vadd.f32 0.0, %v3762
        %v3764 = vpop.f32.mrb[0].mxu0
        %3765 = vmatprep.mubr.bf16.mxu0 %v2710
        %3766 = vmatmul.mubr.bf16.gmra.mrb[0].mxu0 %v2709
        %v3767 = vpop.f32.mrb[0].mxu0
        %v3768 = vadd.f32 0.0, %v3767
        %v3769 = vpop.f32.mrb[0].mxu0
        %v3770 = vpop.f32.mrb[0].mxu0
        %v3771 = vadd.f32 0.0, %v3770
        %v3772 = vpop.f32.mrb[0].mxu0
        %3773 = vmatprep.mubr.bf16.mxu0 %v2718
        %3774 = vmatmul.mubr.bf16.gmra.mrb[0].mxu0 %v2717
        %v3775 = vpop.f32.mrb[0].mxu0
        %v3776 = vadd.f32 0.0, %v3775
        %v3777 = vpop.f32.mrb[0].mxu0
        %v3778 = vpop.f32.mrb[0].mxu0
        %v3779 = vadd.f32 0.0, %v3778
        %v3780 = vpop.f32.mrb[0].mxu0
        %3781 = vmatprep.mubr.bf16.mxu0 %v2726
        %3782 = vmatmul.mubr.bf16.gmra.mrb[0].mxu0 %v2725
        %v3783 = vpop.f32.mrb[0].mxu0
        %v3784 = vadd.f32 0.0, %v3783
        %v3785 = vpop.f32.mrb[0].mxu0
        %v3786 = vpop.f32.mrb[0].mxu0
        %v3787 = vadd.f32 0.0, %v3786
        %v3788 = vpop.f32.mrb[0].mxu0
        %3789 = vmatprep.mubr.bf16.mxu0 %v2734
        %3790 = vmatmul.mubr.bf16.gmra.mrb[0].mxu0 %v2733
        %v3791 = vpop.f32.mrb[0].mxu0
        %v3792 = vadd.f32 0.0, %v3791
        %v3793 = vpop.f32.mrb[0].mxu0
        %v3794 = vpop.f32.mrb[0].mxu0
        %v3795 = vadd.f32 0.0, %v3794
        %v3796 = vpop.f32.mrb[0].mxu0
        %3797 = vmatprep.mubr.bf16.mxu0 %v2742
        %3798 = vmatmul.mubr.bf16.gmra.mrb[0].mxu0 %v2741
        %v3799 = vpop.f32.mrb[0].mxu0
        %v3800 = vadd.f32 0.0, %v3799
        %v3801 = vpop.f32.mrb[0].mxu0
        %v3802 = vpop.f32.mrb[0].mxu0
        %v3803 = vadd.f32 0.0, %v3802
        %v3804 = vpop.f32.mrb[0].mxu0
        %3805 = vmatprep.mubr.bf16.mxu0 %v2750
        %3806 = vmatmul.mubr.bf16.gmra.mrb[0].mxu0 %v2749
        %v3807 = vpop.f32.mrb[0].mxu0
        %v3808 = vadd.f32 0.0, %v3807
        %v3809 = vpop.f32.mrb[0].mxu0
        %v3810 = vpop.f32.mrb[0].mxu0
        %v3811 = vadd.f32 0.0, %v3810
        %v3812 = vpop.f32.mrb[0].mxu0
        %3813 = vmatprep.mubr.bf16.mxu0 %v2758
        %3814 = vmatmul.mubr.bf16.gmra.mrb[0].mxu0 %v2757
        %v3815 = vpop.f32.mrb[0].mxu0
        %v3816 = vadd.f32 0.0, %v3815
        %v3817 = vpop.f32.mrb[0].mxu0
        %v3818 = vpop.f32.mrb[0].mxu0
        %v3819 = vadd.f32 0.0, %v3818
        %v3820 = vpop.f32.mrb[0].mxu0
        %3821 = vmatprep.mubr.bf16.mxu0 %v2766
        %3822 = vmatmul.mubr.bf16.gmra.mrb[0].mxu0 %v2765
        %v3823 = vpop.f32.mrb[0].mxu0
        %v3824 = vadd.f32 0.0, %v3823
        %v3825 = vpop.f32.mrb[0].mxu0
        %v3826 = vpop.f32.mrb[0].mxu0
        %v3827 = vadd.f32 0.0, %v3826
        %v3828 = vpop.f32.mrb[0].mxu0
        %3829 = vmatprep.mubr.bf16.mxu0 %v2774
        %3830 = vmatmul.mubr.bf16.gmra.mrb[0].mxu0 %v2773
        %v3831 = vpop.f32.mrb[0].mxu0
        %v3832 = vadd.f32 0.0, %v3831
        %v3833 = vpop.f32.mrb[0].mxu0
        %v3834 = vpop.f32.mrb[0].mxu0
        %v3835 = vadd.f32 0.0, %v3834
        %v3836 = vpop.f32.mrb[0].mxu0
        %3837 = vmatprep.mubr.bf16.mxu0 %v2782
        %3838 = vmatmul.mubr.bf16.gmra.mrb[0].mxu0 %v2781
        %v3839 = vpop.f32.mrb[0].mxu0
        %v3840 = vadd.f32 0.0, %v3839
        %v3841 = vpop.f32.mrb[0].mxu0
        %v3842 = vpop.f32.mrb[0].mxu0
        %v3843 = vadd.f32 0.0, %v3842
        %v3844 = vpop.f32.mrb[0].mxu0
        %3845 = vmatprep.mubr.bf16.mxu0 %v2790
        %3846 = vmatmul.mubr.bf16.gmra.mrb[0].mxu0 %v2789
        %v3847 = vpop.f32.mrb[0].mxu0
        %v3848 = vadd.f32 0.0, %v3847
        %v3849 = vpop.f32.mrb[0].mxu0
        %v3850 = vpop.f32.mrb[0].mxu0
        %v3851 = vadd.f32 0.0, %v3850
        %v3852 = vpop.f32.mrb[0].mxu0
        %3853 = vmatprep.mubr.bf16.mxu0 %v2798
        %3854 = vmatmul.mubr.bf16.gmra.mrb[0].mxu0 %v2797
        %v3855 = vpop.f32.mrb[0].mxu0
        %v3856 = vadd.f32 0.0, %v3855
        %v3857 = vpop.f32.mrb[0].mxu0
        %v3858 = vpop.f32.mrb[0].mxu0
        %v3859 = vadd.f32 0.0, %v3858
        %v3860 = vpop.f32.mrb[0].mxu0
        %3861 = vmatprep.mubr.bf16.mxu0 %v2806
        %3862 = vmatmul.mubr.bf16.gmra.mrb[0].mxu0 %v2805
        %v3863 = vpop.f32.mrb[0].mxu0
        %v3864 = vadd.f32 0.0, %v3863
        %v3865 = vpop.f32.mrb[0].mxu0
        %v3866 = vpop.f32.mrb[0].mxu0
        %v3867 = vadd.f32 0.0, %v3866
        %v3868 = vpop.f32.mrb[0].mxu0
        %3869 = vmatprep.mubr.bf16.mxu0 %v2814
        %3870 = vmatmul.mubr.bf16.gmra.mrb[0].mxu0 %v2813
        %v3871 = vpop.f32.mrb[0].mxu0
        %v3872 = vadd.f32 0.0, %v3871
        %v3873 = vpop.f32.mrb[0].mxu0
        %v3874 = vpop.f32.mrb[0].mxu0
        %v3875 = vadd.f32 0.0, %v3874
        %v3876 = vpop.f32.mrb[0].mxu0
        %3877 = vmatprep.mubr.bf16.mxu0 %v2822
        %3878 = vmatmul.mubr.bf16.gmra.mrb[0].mxu0 %v2821
        %v3879 = vpop.f32.mrb[0].mxu0
        %v3880 = vadd.f32 0.0, %v3879
        %v3881 = vpop.f32.mrb[0].mxu0
        %v3882 = vpop.f32.mrb[0].mxu0
        %v3883 = vadd.f32 0.0, %v3882
        %v3884 = vpop.f32.mrb[0].mxu0
        %3885 = vmatprep.mubr.bf16.mxu0 %v2830
        %3886 = vmatmul.mubr.bf16.gmra.mrb[0].mxu0 %v2829
        %v3887 = vpop.f32.mrb[0].mxu0
        %v3888 = vadd.f32 0.0, %v3887
        %v3889 = vpop.f32.mrb[0].mxu0
        %v3890 = vpop.f32.mrb[0].mxu0
        %v3891 = vadd.f32 0.0, %v3890
        %v3892 = vpop.f32.mrb[0].mxu0
        %3893 = vmatprep.mubr.bf16.mxu0 %v2838
        %3894 = vmatmul.mubr.bf16.gmra.mrb[0].mxu0 %v2837
        %v3895 = vpop.f32.mrb[0].mxu0
        %v3896 = vadd.f32 0.0, %v3895
        %v3897 = vpop.f32.mrb[0].mxu0
        %v3898 = vpop.f32.mrb[0].mxu0
        %v3899 = vadd.f32 0.0, %v3898
        %v3900 = vpop.f32.mrb[0].mxu0
        %3901 = vmatprep.mubr.bf16.mxu0 %v2846
        %3902 = vmatmul.mubr.bf16.gmra.mrb[0].mxu0 %v2845
        %v3903 = vpop.f32.mrb[0].mxu0
        %v3904 = vadd.f32 0.0, %v3903
        %v3905 = vpop.f32.mrb[0].mxu0
        %v3906 = vpop.f32.mrb[0].mxu0
        %v3907 = vadd.f32 0.0, %v3906
        %v3908 = vpop.f32.mrb[0].mxu0
        %3909 = vmatprep.mubr.bf16.mxu0 %v2854
        %3910 = vmatmul.mubr.bf16.gmra.mrb[0].mxu0 %v2853
        %v3911 = vpop.f32.mrb[0].mxu0
        %v3912 = vadd.f32 0.0, %v3911
        %v3913 = vpop.f32.mrb[0].mxu0
        %v3914 = vpop.f32.mrb[0].mxu0
        %v3915 = vadd.f32 0.0, %v3914
        %v3916 = vpop.f32.mrb[0].mxu0
        %3917 = vmatprep.mubr.bf16.mxu0 %v2862
        %3918 = vmatmul.mubr.bf16.gmra.mrb[0].mxu0 %v2861
        %v3919 = vpop.f32.mrb[0].mxu0
        %v3920 = vadd.f32 0.0, %v3919
        %v3921 = vpop.f32.mrb[0].mxu0
        %v3922 = vpop.f32.mrb[0].mxu0
        %v3923 = vadd.f32 0.0, %v3922
        %v3924 = vpop.f32.mrb[0].mxu0
        %3925 = vmatprep.mubr.bf16.mxu0 %v2870
        %3926 = vmatmul.mubr.bf16.gmra.mrb[0].mxu0 %v2869
        %v3927 = vpop.f32.mrb[0].mxu0
        %v3928 = vadd.f32 0.0, %v3927
        %v3929 = vpop.f32.mrb[0].mxu0
        %v3930 = vpop.f32.mrb[0].mxu0
        %v3931 = vadd.f32 0.0, %v3930
        %v3932 = vpop.f32.mrb[0].mxu0
        %3933 = vmatprep.mubr.bf16.mxu0 %v2878
        %3934 = vmatmul.mubr.bf16.gmra.mrb[0].mxu0 %v2877
        %v3935 = vpop.f32.mrb[0].mxu0
        %v3936 = vadd.f32 0.0, %v3935
        %v3937 = vpop.f32.mrb[0].mxu0
        %v3938 = vpop.f32.mrb[0].mxu0
        %v3939 = vadd.f32 0.0, %v3938
        %v3940 = vpop.f32.mrb[0].mxu0
        %3941 = vmatprep.mubr.bf16.mxu0 %v2886
        %3942 = vmatmul.mubr.bf16.gmra.mrb[0].mxu0 %v2885
        %v3943 = vpop.f32.mrb[0].mxu0
        %v3944 = vadd.f32 0.0, %v3943
        %v3945 = vpop.f32.mrb[0].mxu0
        %v3946 = vpop.f32.mrb[0].mxu0
        %v3947 = vadd.f32 0.0, %v3946
        %v3948 = vpop.f32.mrb[0].mxu0
        %3949 = vmatprep.mubr.bf16.mxu0 %v2894
        %3950 = vmatmul.mubr.bf16.gmra.mrb[0].mxu0 %v2893
        %v3951 = vpop.f32.mrb[0].mxu0
        %v3952 = vadd.f32 0.0, %v3951
        %v3953 = vpop.f32.mrb[0].mxu0
        %v3954 = vpop.f32.mrb[0].mxu0
        %v3955 = vadd.f32 0.0, %v3954
        %v3956 = vpop.f32.mrb[0].mxu0
        %3957 = vmatprep.mubr.bf16.mxu0 %v2902
        %3958 = vmatmul.mubr.bf16.gmra.mrb[0].mxu0 %v2901
        %v3959 = vpop.f32.mrb[0].mxu0
        %v3960 = vadd.f32 0.0, %v3959
        %v3961 = vpop.f32.mrb[0].mxu0
        %v3962 = vpop.f32.mrb[0].mxu0
        %v3963 = vadd.f32 0.0, %v3962
        %v3964 = vpop.f32.mrb[0].mxu0
        %3965 = vmatprep.mubr.bf16.mxu0 %v2910
        %3966 = vmatmul.mubr.bf16.gmra.mrb[0].mxu0 %v2909
        %v3967 = vpop.f32.mrb[0].mxu0
        %v3968 = vadd.f32 0.0, %v3967
        %v3969 = vpop.f32.mrb[0].mxu0
        %v3970 = vpop.f32.mrb[0].mxu0
        %v3971 = vadd.f32 0.0, %v3970
        %v3972 = vpop.f32.mrb[0].mxu0
        %3973 = vmatprep.mubr.bf16.mxu0 %v2918
        %3974 = vmatmul.mubr.bf16.gmra.mrb[0].mxu0 %v2917
        %v3975 = vpop.f32.mrb[0].mxu0
        %v3976 = vadd.f32 0.0, %v3975
        %v3977 = vpop.f32.mrb[0].mxu0
        %v3978 = vpop.f32.mrb[0].mxu0
        %v3979 = vadd.f32 0.0, %v3978
        %v3980 = vpop.f32.mrb[0].mxu0
        %3981 = vmatprep.mubr.bf16.mxu0 %v2926
        %3982 = vmatmul.mubr.bf16.gmra.mrb[0].mxu0 %v2925
        %v3983 = vpop.f32.mrb[0].mxu0
        %v3984 = vadd.f32 0.0, %v3983
        %v3985 = vpop.f32.mrb[0].mxu0
        %v3986 = vpop.f32.mrb[0].mxu0
        %v3987 = vadd.f32 0.0, %v3986
        %v3988 = vpop.f32.mrb[0].mxu0
        %3989 = vmatprep.mubr.bf16.mxu0 %v2934
        %3990 = vmatmul.mubr.bf16.gmra.mrb[0].mxu0 %v2933
        %v3991 = vpop.f32.mrb[0].mxu0
        %v3992 = vadd.f32 0.0, %v3991
        %v3993 = vpop.f32.mrb[0].mxu0
        %v3994 = vpop.f32.mrb[0].mxu0
        %v3995 = vadd.f32 0.0, %v3994
        %v3996 = vpop.f32.mrb[0].mxu0
        %3997 = vmatprep.mubr.bf16.mxu0 %v2942
        %3998 = vmatmul.mubr.bf16.gmra.mrb[0].mxu0 %v2941
        %v3999 = vpop.f32.mrb[0].mxu0
        %v4000 = vadd.f32 0.0, %v3999
        %v4001 = vpop.f32.mrb[0].mxu0
        %v4002 = vpop.f32.mrb[0].mxu0
        %v4003 = vadd.f32 0.0, %v4002
        %v4004 = vpop.f32.mrb[0].mxu0
        %4005 = vmatprep.mubr.bf16.mxu0 %v2950
        %4006 = vmatmul.mubr.bf16.gmra.mrb[0].mxu0 %v2949
        %v4007 = vpop.f32.mrb[0].mxu0
        %v4008 = vadd.f32 0.0, %v4007
        %v4009 = vpop.f32.mrb[0].mxu0
        %v4010 = vpop.f32.mrb[0].mxu0
        %v4011 = vadd.f32 0.0, %v4010
        %v4012 = vpop.f32.mrb[0].mxu0
        %4013 = vmatprep.mubr.bf16.mxu0 %v2958
        %4014 = vmatmul.mubr.bf16.gmra.mrb[0].mxu0 %v2957
        %v4015 = vpop.f32.mrb[0].mxu0
        %v4016 = vadd.f32 0.0, %v4015
        %v4017 = vpop.f32.mrb[0].mxu0
        %v4018 = vpop.f32.mrb[0].mxu0
        %v4019 = vadd.f32 0.0, %v4018
        %v4020 = vpop.f32.mrb[0].mxu0
        %4021 = vmatprep.mubr.bf16.mxu0 %v2966
        %4022 = vmatmul.mubr.bf16.gmra.mrb[0].mxu0 %v2965
        %v4023 = vpop.f32.mrb[0].mxu0
        %v4024 = vadd.f32 0.0, %v4023
        %v4025 = vpop.f32.mrb[0].mxu0
        %v4026 = vpop.f32.mrb[0].mxu0
        %v4027 = vadd.f32 0.0, %v4026
        %v4028 = vpop.f32.mrb[0].mxu0
        %4029 = vmatprep.mubr.bf16.mxu0 %v2974
        %4030 = vmatmul.mubr.bf16.gmra.mrb[0].mxu0 %v2973
        %v4031 = vpop.f32.mrb[0].mxu0
        %v4032 = vadd.f32 0.0, %v4031
        %v4033 = vpop.f32.mrb[0].mxu0
        %v4034 = vpop.f32.mrb[0].mxu0
        %v4035 = vadd.f32 0.0, %v4034
        %v4036 = vpop.f32.mrb[0].mxu0
        %4037 = vmatprep.mubr.bf16.mxu0 %v2982
        %4038 = vmatmul.mubr.bf16.gmra.mrb[0].mxu0 %v2981
        %v4039 = vpop.f32.mrb[0].mxu0
        %v4040 = vadd.f32 0.0, %v4039
        %v4041 = vpop.f32.mrb[0].mxu0
        %v4042 = vpop.f32.mrb[0].mxu0
        %v4043 = vadd.f32 0.0, %v4042
        %v4044 = vpop.f32.mrb[0].mxu0
        %4045 = vmatprep.mubr.bf16.mxu0 %v2990
        %4046 = vmatmul.mubr.bf16.gmra.mrb[0].mxu0 %v2989
        %v4047 = vpop.f32.mrb[0].mxu0
        %v4048 = vadd.f32 0.0, %v4047
        %v4049 = vpop.f32.mrb[0].mxu0
        %v4050 = vpop.f32.mrb[0].mxu0
        %v4051 = vadd.f32 0.0, %v4050
        %v4052 = vpop.f32.mrb[0].mxu0
        %4053 = vmatprep.mubr.bf16.mxu0 %v2998
        %4054 = vmatmul.mubr.bf16.gmra.mrb[0].mxu0 %v2997
        %v4055 = vpop.f32.mrb[0].mxu0
        %v4056 = vadd.f32 0.0, %v4055
        %v4057 = vpop.f32.mrb[0].mxu0
        %v4058 = vpop.f32.mrb[0].mxu0
        %v4059 = vadd.f32 0.0, %v4058
        %v4060 = vpop.f32.mrb[0].mxu0
        %4061 = vmatprep.mubr.bf16.mxu0 %v3006
        %4062 = vmatmul.mubr.bf16.gmra.mrb[0].mxu0 %v3005
        %v4063 = vpop.f32.mrb[0].mxu0
        %v4064 = vadd.f32 0.0, %v4063
        %v4065 = vpop.f32.mrb[0].mxu0
        %v4066 = vpop.f32.mrb[0].mxu0
        %v4067 = vadd.f32 0.0, %v4066
        %v4068 = vpop.f32.mrb[0].mxu0
        %4069 = vmatprep.mubr.bf16.mxu0 %v3014
        %4070 = vmatmul.mubr.bf16.gmra.mrb[0].mxu0 %v3013
        %v4071 = vpop.f32.mrb[0].mxu0
        %v4072 = vadd.f32 0.0, %v4071
        %v4073 = vpop.f32.mrb[0].mxu0
        %v4074 = vpop.f32.mrb[0].mxu0
        %v4075 = vadd.f32 0.0, %v4074
        %v4076 = vpop.f32.mrb[0].mxu0
        %4077 = vmatprep.mubr.bf16.mxu0 %v3022
        %4078 = vmatmul.mubr.bf16.gmra.mrb[0].mxu0 %v3021
        %v4079 = vpop.f32.mrb[0].mxu0
        %v4080 = vadd.f32 0.0, %v4079
        %v4081 = vpop.f32.mrb[0].mxu0
        %v4082 = vpop.f32.mrb[0].mxu0
        %v4083 = vadd.f32 0.0, %v4082
        %v4084 = vpop.f32.mrb[0].mxu0
        %4085 = vmatprep.mubr.bf16.mxu0 %v3030
        %4086 = vmatmul.mubr.bf16.gmra.mrb[0].mxu0 %v3029
        %v4087 = vpop.f32.mrb[0].mxu0
        %v4088 = vadd.f32 0.0, %v4087
        %v4089 = vpop.f32.mrb[0].mxu0
        %v4090 = vpop.f32.mrb[0].mxu0
        %v4091 = vadd.f32 0.0, %v4090
        %v4092 = vpop.f32.mrb[0].mxu0
        %4093 = vmatprep.mubr.bf16.mxu0 %v3038
        %4094 = vmatmul.mubr.bf16.gmra.mrb[0].mxu0 %v3037
        %v4095 = vpop.f32.mrb[0].mxu0
        %v4096 = vadd.f32 0.0, %v4095
        %v4097 = vpop.f32.mrb[0].mxu0
        %v4098 = vpop.f32.mrb[0].mxu0
        %v4099 = vadd.f32 0.0, %v4098
        %v4100 = vpop.f32.mrb[0].mxu0
        %4101 = vmatprep.mubr.bf16.mxu0 %v3046
        %4102 = vmatmul.mubr.bf16.gmra.mrb[0].mxu0 %v3045
        %v4103 = vpop.f32.mrb[0].mxu0
        %v4104 = vadd.f32 0.0, %v4103
        %v4105 = vpop.f32.mrb[0].mxu0
        %v4106 = vpop.f32.mrb[0].mxu0
        %v4107 = vadd.f32 0.0, %v4106
        %v4108 = vpop.f32.mrb[0].mxu0
        %4109 = vmatprep.mubr.bf16.mxu0 %v3054
        %4110 = vmatmul.mubr.bf16.gmra.mrb[0].mxu0 %v3053
        %v4111 = vpop.f32.mrb[0].mxu0
        %v4112 = vadd.f32 0.0, %v4111
        %v4113 = vpop.f32.mrb[0].mxu0
        %v4114 = vpop.f32.mrb[0].mxu0
        %v4115 = vadd.f32 0.0, %v4114
        %v4116 = vpop.f32.mrb[0].mxu0
        %4117 = vdwg.mxu0
        %4118 = vmatprep.subr.bf16.mxu0 0
        %4119 = vmatpush1.bf16.msra.mxu0 %v453
        %4120 = vmatprep.subr.bf16.mxu0 0
        %4121 = vmatpush1.bf16.msra.mxu0 %v454
        %4122 = vmatprep.subr.bf16.mxu0 0
        %4123 = vmatpush1.bf16.msra.mxu0 %v455
        %4124 = vmatprep.subr.bf16.mxu0 0
        %4125 = vmatpush1.bf16.msra.mxu0 %v456
        %4126 = vmatprep.subr.bf16.mxu0 0
        %4127 = vmatpush1.bf16.msra.mxu0 %v457
        %4128 = vmatprep.subr.bf16.mxu0 0
        %4129 = vmatpush1.bf16.msra.mxu0 %v458
        %4130 = vmatprep.subr.bf16.mxu0 0
        %4131 = vmatpush1.bf16.msra.mxu0 %v459
        %4132 = vmatprep.subr.bf16.mxu0 0
        %4133 = vmatpush1.bf16.msra.mxu0 %v460
        %4134 = vmatprep.subr.bf16.mxu0 0
        %4135 = vmatpush1.bf16.msra.mxu0 %v461
        %4136 = vmatprep.subr.bf16.mxu0 0
        %4137 = vmatpush1.bf16.msra.mxu0 %v462
        %4138 = vmatprep.subr.bf16.mxu0 0
        %4139 = vmatpush1.bf16.msra.mxu0 %v463
        %4140 = vmatprep.subr.bf16.mxu0 0
        %4141 = vmatpush1.bf16.msra.mxu0 %v464
        %4142 = vmatprep.subr.bf16.mxu0 0
        %4143 = vmatpush1.bf16.msra.mxu0 %v465
        %4144 = vmatprep.subr.bf16.mxu0 0
        %4145 = vmatpush1.bf16.msra.mxu0 %v466
        %4146 = vmatprep.subr.bf16.mxu0 0
        %4147 = vmatpush1.bf16.msra.mxu0 %v467
        %4148 = vmatprep.subr.bf16.mxu0 0
        %4149 = vmatpush1.bf16.msra.mxu0 %v468
        %4150 = vmatprep.mubr.bf16.mxu0 %v2552
        %4151 = vmatmul.mubr.bf16.gmra.mrb[0].mxu0 %v2551
        %v4152 = vpop.f32.mrb[0].mxu0
        %v4153 = vadd.f32 %v3608, %v4152
        %v4154 = vpop.f32.mrb[0].mxu0
        %v4155 = vpop.f32.mrb[0].mxu0
        %v4156 = vadd.f32 %v3611, %v4155
        %v4157 = vpop.f32.mrb[0].mxu0
        %4158 = vmatprep.mubr.bf16.mxu0 %v2560
        %4159 = vmatmul.mubr.bf16.gmra.mrb[0].mxu0 %v2559
        %v4160 = vpop.f32.mrb[0].mxu0
        %v4161 = vadd.f32 %v3616, %v4160
        %v4162 = vpop.f32.mrb[0].mxu0
        %v4163 = vpop.f32.mrb[0].mxu0
        %v4164 = vadd.f32 %v3619, %v4163
        %v4165 = vpop.f32.mrb[0].mxu0
        %4166 = vmatprep.mubr.bf16.mxu0 %v2568
        %4167 = vmatmul.mubr.bf16.gmra.mrb[0].mxu0 %v2567
        %v4168 = vpop.f32.mrb[0].mxu0
        %v4169 = vadd.f32 %v3624, %v4168
        %v4170 = vpop.f32.mrb[0].mxu0
        %v4171 = vpop.f32.mrb[0].mxu0
        %v4172 = vadd.f32 %v3627, %v4171
        %v4173 = vpop.f32.mrb[0].mxu0
        %4174 = vmatprep.mubr.bf16.mxu0 %v2576
        %4175 = vmatmul.mubr.bf16.gmra.mrb[0].mxu0 %v2575
        %v4176 = vpop.f32.mrb[0].mxu0
        %v4177 = vadd.f32 %v3632, %v4176
        %v4178 = vpop.f32.mrb[0].mxu0
        %v4179 = vpop.f32.mrb[0].mxu0
        %v4180 = vadd.f32 %v3635, %v4179
        %v4181 = vpop.f32.mrb[0].mxu0
        %4182 = vmatprep.mubr.bf16.mxu0 %v2584
        %4183 = vmatmul.mubr.bf16.gmra.mrb[0].mxu0 %v2583
        %v4184 = vpop.f32.mrb[0].mxu0
        %v4185 = vadd.f32 %v3640, %v4184
        %v4186 = vpop.f32.mrb[0].mxu0
        %v4187 = vpop.f32.mrb[0].mxu0
        %v4188 = vadd.f32 %v3643, %v4187
        %v4189 = vpop.f32.mrb[0].mxu0
        %4190 = vmatprep.mubr.bf16.mxu0 %v2592
        %4191 = vmatmul.mubr.bf16.gmra.mrb[0].mxu0 %v2591
        %v4192 = vpop.f32.mrb[0].mxu0
        %v4193 = vadd.f32 %v3648, %v4192
        %v4194 = vpop.f32.mrb[0].mxu0
        %v4195 = vpop.f32.mrb[0].mxu0
        %v4196 = vadd.f32 %v3651, %v4195
        %v4197 = vpop.f32.mrb[0].mxu0
        %4198 = vmatprep.mubr.bf16.mxu0 %v2600
        %4199 = vmatmul.mubr.bf16.gmra.mrb[0].mxu0 %v2599
        %v4200 = vpop.f32.mrb[0].mxu0
        %v4201 = vadd.f32 %v3656, %v4200
        %v4202 = vpop.f32.mrb[0].mxu0
        %v4203 = vpop.f32.mrb[0].mxu0
        %v4204 = vadd.f32 %v3659, %v4203
        %v4205 = vpop.f32.mrb[0].mxu0
        %4206 = vmatprep.mubr.bf16.mxu0 %v2608
        %4207 = vmatmul.mubr.bf16.gmra.mrb[0].mxu0 %v2607
        %v4208 = vpop.f32.mrb[0].mxu0
        %v4209 = vadd.f32 %v3664, %v4208
        %v4210 = vpop.f32.mrb[0].mxu0
        %v4211 = vpop.f32.mrb[0].mxu0
        %v4212 = vadd.f32 %v3667, %v4211
        %v4213 = vpop.f32.mrb[0].mxu0
        %4214 = vmatprep.mubr.bf16.mxu0 %v2616
        %4215 = vmatmul.mubr.bf16.gmra.mrb[0].mxu0 %v2615
        %v4216 = vpop.f32.mrb[0].mxu0
        %v4217 = vadd.f32 %v3672, %v4216
        %v4218 = vpop.f32.mrb[0].mxu0
        %v4219 = vpop.f32.mrb[0].mxu0
        %v4220 = vadd.f32 %v3675, %v4219
        %v4221 = vpop.f32.mrb[0].mxu0
        %4222 = vmatprep.mubr.bf16.mxu0 %v2624
        %4223 = vmatmul.mubr.bf16.gmra.mrb[0].mxu0 %v2623
        %v4224 = vpop.f32.mrb[0].mxu0
        %v4225 = vadd.f32 %v3680, %v4224
        %v4226 = vpop.f32.mrb[0].mxu0
        %v4227 = vpop.f32.mrb[0].mxu0
        %v4228 = vadd.f32 %v3683, %v4227
        %v4229 = vpop.f32.mrb[0].mxu0
        %4230 = vmatprep.mubr.bf16.mxu0 %v2632
        %4231 = vmatmul.mubr.bf16.gmra.mrb[0].mxu0 %v2631
        %v4232 = vpop.f32.mrb[0].mxu0
        %v4233 = vadd.f32 %v3688, %v4232
        %v4234 = vpop.f32.mrb[0].mxu0
        %v4235 = vpop.f32.mrb[0].mxu0
        %v4236 = vadd.f32 %v3691, %v4235
        %v4237 = vpop.f32.mrb[0].mxu0
        %4238 = vmatprep.mubr.bf16.mxu0 %v2640
        %4239 = vmatmul.mubr.bf16.gmra.mrb[0].mxu0 %v2639
        %v4240 = vpop.f32.mrb[0].mxu0
        %v4241 = vadd.f32 %v3696, %v4240
        %v4242 = vpop.f32.mrb[0].mxu0
        %v4243 = vpop.f32.mrb[0].mxu0
        %v4244 = vadd.f32 %v3699, %v4243
        %v4245 = vpop.f32.mrb[0].mxu0
        %4246 = vmatprep.mubr.bf16.mxu0 %v2648
        %4247 = vmatmul.mubr.bf16.gmra.mrb[0].mxu0 %v2647
        %v4248 = vpop.f32.mrb[0].mxu0
        %v4249 = vadd.f32 %v3704, %v4248
        %v4250 = vpop.f32.mrb[0].mxu0
        %v4251 = vpop.f32.mrb[0].mxu0
        %v4252 = vadd.f32 %v3707, %v4251
        %v4253 = vpop.f32.mrb[0].mxu0
        %4254 = vmatprep.mubr.bf16.mxu0 %v2656
        %4255 = vmatmul.mubr.bf16.gmra.mrb[0].mxu0 %v2655
        %v4256 = vpop.f32.mrb[0].mxu0
        %v4257 = vadd.f32 %v3712, %v4256
        %v4258 = vpop.f32.mrb[0].mxu0
        %v4259 = vpop.f32.mrb[0].mxu0
        %v4260 = vadd.f32 %v3715, %v4259
        %v4261 = vpop.f32.mrb[0].mxu0
        %4262 = vmatprep.mubr.bf16.mxu0 %v2664
        %4263 = vmatmul.mubr.bf16.gmra.mrb[0].mxu0 %v2663
        %v4264 = vpop.f32.mrb[0].mxu0
        %v4265 = vadd.f32 %v3720, %v4264
        %v4266 = vpop.f32.mrb[0].mxu0
        %v4267 = vpop.f32.mrb[0].mxu0
        %v4268 = vadd.f32 %v3723, %v4267
        %v4269 = vpop.f32.mrb[0].mxu0
        %4270 = vmatprep.mubr.bf16.mxu0 %v2672
        %4271 = vmatmul.mubr.bf16.gmra.mrb[0].mxu0 %v2671
        %v4272 = vpop.f32.mrb[0].mxu0
        %v4273 = vadd.f32 %v3728, %v4272
        %v4274 = vpop.f32.mrb[0].mxu0
        %v4275 = vpop.f32.mrb[0].mxu0
        %v4276 = vadd.f32 %v3731, %v4275
        %v4277 = vpop.f32.mrb[0].mxu0
        %4278 = vmatprep.mubr.bf16.mxu0 %v2680
        %4279 = vmatmul.mubr.bf16.gmra.mrb[0].mxu0 %v2679
        %v4280 = vpop.f32.mrb[0].mxu0
        %v4281 = vadd.f32 %v3736, %v4280
        %v4282 = vpop.f32.mrb[0].mxu0
        %v4283 = vpop.f32.mrb[0].mxu0
        %v4284 = vadd.f32 %v3739, %v4283
        %v4285 = vpop.f32.mrb[0].mxu0
        %4286 = vmatprep.mubr.bf16.mxu0 %v2688
        %4287 = vmatmul.mubr.bf16.gmra.mrb[0].mxu0 %v2687
        %v4288 = vpop.f32.mrb[0].mxu0
        %v4289 = vadd.f32 %v3744, %v4288
        %v4290 = vpop.f32.mrb[0].mxu0
        %v4291 = vpop.f32.mrb[0].mxu0
        %v4292 = vadd.f32 %v3747, %v4291
        %v4293 = vpop.f32.mrb[0].mxu0
        %4294 = vmatprep.mubr.bf16.mxu0 %v2696
        %4295 = vmatmul.mubr.bf16.gmra.mrb[0].mxu0 %v2695
        %v4296 = vpop.f32.mrb[0].mxu0
        %v4297 = vadd.f32 %v3752, %v4296
        %v4298 = vpop.f32.mrb[0].mxu0
        %v4299 = vpop.f32.mrb[0].mxu0
        %v4300 = vadd.f32 %v3755, %v4299
        %v4301 = vpop.f32.mrb[0].mxu0
        %4302 = vmatprep.mubr.bf16.mxu0 %v2704
        %4303 = vmatmul.mubr.bf16.gmra.mrb[0].mxu0 %v2703
        %v4304 = vpop.f32.mrb[0].mxu0
        %v4305 = vadd.f32 %v3760, %v4304
        %v4306 = vpop.f32.mrb[0].mxu0
        %v4307 = vpop.f32.mrb[0].mxu0
        %v4308 = vadd.f32 %v3763, %v4307
        %v4309 = vpop.f32.mrb[0].mxu0
        %4310 = vmatprep.mubr.bf16.mxu0 %v2712
        %4311 = vmatmul.mubr.bf16.gmra.mrb[0].mxu0 %v2711
        %v4312 = vpop.f32.mrb[0].mxu0
        %v4313 = vadd.f32 %v3768, %v4312
        %v4314 = vpop.f32.mrb[0].mxu0
        %v4315 = vpop.f32.mrb[0].mxu0
        %v4316 = vadd.f32 %v3771, %v4315
        %v4317 = vpop.f32.mrb[0].mxu0
        %4318 = vmatprep.mubr.bf16.mxu0 %v2720
        %4319 = vmatmul.mubr.bf16.gmra.mrb[0].mxu0 %v2719
        %v4320 = vpop.f32.mrb[0].mxu0
        %v4321 = vadd.f32 %v3776, %v4320
        %v4322 = vpop.f32.mrb[0].mxu0
        %v4323 = vpop.f32.mrb[0].mxu0
        %v4324 = vadd.f32 %v3779, %v4323
        %v4325 = vpop.f32.mrb[0].mxu0
        %4326 = vmatprep.mubr.bf16.mxu0 %v2728
        %4327 = vmatmul.mubr.bf16.gmra.mrb[0].mxu0 %v2727
        %v4328 = vpop.f32.mrb[0].mxu0
        %v4329 = vadd.f32 %v3784, %v4328
        %v4330 = vpop.f32.mrb[0].mxu0
        %v4331 = vpop.f32.mrb[0].mxu0
        %v4332 = vadd.f32 %v3787, %v4331
        %v4333 = vpop.f32.mrb[0].mxu0
        %4334 = vmatprep.mubr.bf16.mxu0 %v2736
        %4335 = vmatmul.mubr.bf16.gmra.mrb[0].mxu0 %v2735
        %v4336 = vpop.f32.mrb[0].mxu0
        %v4337 = vadd.f32 %v3792, %v4336
        %v4338 = vpop.f32.mrb[0].mxu0
        %v4339 = vpop.f32.mrb[0].mxu0
        %v4340 = vadd.f32 %v3795, %v4339
        %v4341 = vpop.f32.mrb[0].mxu0
        %4342 = vmatprep.mubr.bf16.mxu0 %v2744
        %4343 = vmatmul.mubr.bf16.gmra.mrb[0].mxu0 %v2743
        %v4344 = vpop.f32.mrb[0].mxu0
        %v4345 = vadd.f32 %v3800, %v4344
        %v4346 = vpop.f32.mrb[0].mxu0
        %v4347 = vpop.f32.mrb[0].mxu0
        %v4348 = vadd.f32 %v3803, %v4347
        %v4349 = vpop.f32.mrb[0].mxu0
        %4350 = vmatprep.mubr.bf16.mxu0 %v2752
        %4351 = vmatmul.mubr.bf16.gmra.mrb[0].mxu0 %v2751
        %v4352 = vpop.f32.mrb[0].mxu0
        %v4353 = vadd.f32 %v3808, %v4352
        %v4354 = vpop.f32.mrb[0].mxu0
        %v4355 = vpop.f32.mrb[0].mxu0
        %v4356 = vadd.f32 %v3811, %v4355
        %v4357 = vpop.f32.mrb[0].mxu0
        %4358 = vmatprep.mubr.bf16.mxu0 %v2760
        %4359 = vmatmul.mubr.bf16.gmra.mrb[0].mxu0 %v2759
        %v4360 = vpop.f32.mrb[0].mxu0
        %v4361 = vadd.f32 %v3816, %v4360
        %v4362 = vpop.f32.mrb[0].mxu0
        %v4363 = vpop.f32.mrb[0].mxu0
        %v4364 = vadd.f32 %v3819, %v4363
        %v4365 = vpop.f32.mrb[0].mxu0
        %4366 = vmatprep.mubr.bf16.mxu0 %v2768
        %4367 = vmatmul.mubr.bf16.gmra.mrb[0].mxu0 %v2767
        %v4368 = vpop.f32.mrb[0].mxu0
        %v4369 = vadd.f32 %v3824, %v4368
        %v4370 = vpop.f32.mrb[0].mxu0
        %v4371 = vpop.f32.mrb[0].mxu0
        %v4372 = vadd.f32 %v3827, %v4371
        %v4373 = vpop.f32.mrb[0].mxu0
        %4374 = vmatprep.mubr.bf16.mxu0 %v2776
        %4375 = vmatmul.mubr.bf16.gmra.mrb[0].mxu0 %v2775
        %v4376 = vpop.f32.mrb[0].mxu0
        %v4377 = vadd.f32 %v3832, %v4376
        %v4378 = vpop.f32.mrb[0].mxu0
        %v4379 = vpop.f32.mrb[0].mxu0
        %v4380 = vadd.f32 %v3835, %v4379
        %v4381 = vpop.f32.mrb[0].mxu0
        %4382 = vmatprep.mubr.bf16.mxu0 %v2784
        %4383 = vmatmul.mubr.bf16.gmra.mrb[0].mxu0 %v2783
        %v4384 = vpop.f32.mrb[0].mxu0
        %v4385 = vadd.f32 %v3840, %v4384
        %v4386 = vpop.f32.mrb[0].mxu0
        %v4387 = vpop.f32.mrb[0].mxu0
        %v4388 = vadd.f32 %v3843, %v4387
        %v4389 = vpop.f32.mrb[0].mxu0
        %4390 = vmatprep.mubr.bf16.mxu0 %v2792
        %4391 = vmatmul.mubr.bf16.gmra.mrb[0].mxu0 %v2791
        %v4392 = vpop.f32.mrb[0].mxu0
        %v4393 = vadd.f32 %v3848, %v4392
        %v4394 = vpop.f32.mrb[0].mxu0
        %v4395 = vpop.f32.mrb[0].mxu0
        %v4396 = vadd.f32 %v3851, %v4395
        %v4397 = vpop.f32.mrb[0].mxu0
        %4398 = vmatprep.mubr.bf16.mxu0 %v2800
        %4399 = vmatmul.mubr.bf16.gmra.mrb[0].mxu0 %v2799
        %v4400 = vpop.f32.mrb[0].mxu0
        %v4401 = vadd.f32 %v3856, %v4400
        %v4402 = vpop.f32.mrb[0].mxu0
        %v4403 = vpop.f32.mrb[0].mxu0
        %v4404 = vadd.f32 %v3859, %v4403
        %v4405 = vpop.f32.mrb[0].mxu0
        %4406 = vmatprep.mubr.bf16.mxu0 %v2808
        %4407 = vmatmul.mubr.bf16.gmra.mrb[0].mxu0 %v2807
        %v4408 = vpop.f32.mrb[0].mxu0
        %v4409 = vadd.f32 %v3864, %v4408
        %v4410 = vpop.f32.mrb[0].mxu0
        %v4411 = vpop.f32.mrb[0].mxu0
        %v4412 = vadd.f32 %v3867, %v4411
        %v4413 = vpop.f32.mrb[0].mxu0
        %4414 = vmatprep.mubr.bf16.mxu0 %v2816
        %4415 = vmatmul.mubr.bf16.gmra.mrb[0].mxu0 %v2815
        %v4416 = vpop.f32.mrb[0].mxu0
        %v4417 = vadd.f32 %v3872, %v4416
        %v4418 = vpop.f32.mrb[0].mxu0
        %v4419 = vpop.f32.mrb[0].mxu0
        %v4420 = vadd.f32 %v3875, %v4419
        %v4421 = vpop.f32.mrb[0].mxu0
        %4422 = vmatprep.mubr.bf16.mxu0 %v2824
        %4423 = vmatmul.mubr.bf16.gmra.mrb[0].mxu0 %v2823
        %v4424 = vpop.f32.mrb[0].mxu0
        %v4425 = vadd.f32 %v3880, %v4424
        %v4426 = vpop.f32.mrb[0].mxu0
        %v4427 = vpop.f32.mrb[0].mxu0
        %v4428 = vadd.f32 %v3883, %v4427
        %v4429 = vpop.f32.mrb[0].mxu0
        %4430 = vmatprep.mubr.bf16.mxu0 %v2832
        %4431 = vmatmul.mubr.bf16.gmra.mrb[0].mxu0 %v2831
        %v4432 = vpop.f32.mrb[0].mxu0
        %v4433 = vadd.f32 %v3888, %v4432
        %v4434 = vpop.f32.mrb[0].mxu0
        %v4435 = vpop.f32.mrb[0].mxu0
        %v4436 = vadd.f32 %v3891, %v4435
        %v4437 = vpop.f32.mrb[0].mxu0
        %4438 = vmatprep.mubr.bf16.mxu0 %v2840
        %4439 = vmatmul.mubr.bf16.gmra.mrb[0].mxu0 %v2839
        %v4440 = vpop.f32.mrb[0].mxu0
        %v4441 = vadd.f32 %v3896, %v4440
        %v4442 = vpop.f32.mrb[0].mxu0
        %v4443 = vpop.f32.mrb[0].mxu0
        %v4444 = vadd.f32 %v3899, %v4443
        %v4445 = vpop.f32.mrb[0].mxu0
        %4446 = vmatprep.mubr.bf16.mxu0 %v2848
        %4447 = vmatmul.mubr.bf16.gmra.mrb[0].mxu0 %v2847
        %v4448 = vpop.f32.mrb[0].mxu0
        %v4449 = vadd.f32 %v3904, %v4448
        %v4450 = vpop.f32.mrb[0].mxu0
        %v4451 = vpop.f32.mrb[0].mxu0
        %v4452 = vadd.f32 %v3907, %v4451
        %v4453 = vpop.f32.mrb[0].mxu0
        %4454 = vmatprep.mubr.bf16.mxu0 %v2856
        %4455 = vmatmul.mubr.bf16.gmra.mrb[0].mxu0 %v2855
        %v4456 = vpop.f32.mrb[0].mxu0
        %v4457 = vadd.f32 %v3912, %v4456
        %v4458 = vpop.f32.mrb[0].mxu0
        %v4459 = vpop.f32.mrb[0].mxu0
        %v4460 = vadd.f32 %v3915, %v4459
        %v4461 = vpop.f32.mrb[0].mxu0
        %4462 = vmatprep.mubr.bf16.mxu0 %v2864
        %4463 = vmatmul.mubr.bf16.gmra.mrb[0].mxu0 %v2863
        %v4464 = vpop.f32.mrb[0].mxu0
        %v4465 = vadd.f32 %v3920, %v4464
        %v4466 = vpop.f32.mrb[0].mxu0
        %v4467 = vpop.f32.mrb[0].mxu0
        %v4468 = vadd.f32 %v3923, %v4467
        %v4469 = vpop.f32.mrb[0].mxu0
        %4470 = vmatprep.mubr.bf16.mxu0 %v2872
        %4471 = vmatmul.mubr.bf16.gmra.mrb[0].mxu0 %v2871
        %v4472 = vpop.f32.mrb[0].mxu0
        %v4473 = vadd.f32 %v3928, %v4472
        %v4474 = vpop.f32.mrb[0].mxu0
        %v4475 = vpop.f32.mrb[0].mxu0
        %v4476 = vadd.f32 %v3931, %v4475
        %v4477 = vpop.f32.mrb[0].mxu0
        %4478 = vmatprep.mubr.bf16.mxu0 %v2880
        %4479 = vmatmul.mubr.bf16.gmra.mrb[0].mxu0 %v2879
        %v4480 = vpop.f32.mrb[0].mxu0
        %v4481 = vadd.f32 %v3936, %v4480
        %v4482 = vpop.f32.mrb[0].mxu0
        %v4483 = vpop.f32.mrb[0].mxu0
        %v4484 = vadd.f32 %v3939, %v4483
        %v4485 = vpop.f32.mrb[0].mxu0
        %4486 = vmatprep.mubr.bf16.mxu0 %v2888
        %4487 = vmatmul.mubr.bf16.gmra.mrb[0].mxu0 %v2887
        %v4488 = vpop.f32.mrb[0].mxu0
        %v4489 = vadd.f32 %v3944, %v4488
        %v4490 = vpop.f32.mrb[0].mxu0
        %v4491 = vpop.f32.mrb[0].mxu0
        %v4492 = vadd.f32 %v3947, %v4491
        %v4493 = vpop.f32.mrb[0].mxu0
        %4494 = vmatprep.mubr.bf16.mxu0 %v2896
        %4495 = vmatmul.mubr.bf16.gmra.mrb[0].mxu0 %v2895
        %v4496 = vpop.f32.mrb[0].mxu0
        %v4497 = vadd.f32 %v3952, %v4496
        %v4498 = vpop.f32.mrb[0].mxu0
        %v4499 = vpop.f32.mrb[0].mxu0
        %v4500 = vadd.f32 %v3955, %v4499
        %v4501 = vpop.f32.mrb[0].mxu0
        %4502 = vmatprep.mubr.bf16.mxu0 %v2904
        %4503 = vmatmul.mubr.bf16.gmra.mrb[0].mxu0 %v2903
        %v4504 = vpop.f32.mrb[0].mxu0
        %v4505 = vadd.f32 %v3960, %v4504
        %v4506 = vpop.f32.mrb[0].mxu0
        %v4507 = vpop.f32.mrb[0].mxu0
        %v4508 = vadd.f32 %v3963, %v4507
        %v4509 = vpop.f32.mrb[0].mxu0
        %4510 = vmatprep.mubr.bf16.mxu0 %v2912
        %4511 = vmatmul.mubr.bf16.gmra.mrb[0].mxu0 %v2911
        %v4512 = vpop.f32.mrb[0].mxu0
        %v4513 = vadd.f32 %v3968, %v4512
        %v4514 = vpop.f32.mrb[0].mxu0
        %v4515 = vpop.f32.mrb[0].mxu0
        %v4516 = vadd.f32 %v3971, %v4515
        %v4517 = vpop.f32.mrb[0].mxu0
        %4518 = vmatprep.mubr.bf16.mxu0 %v2920
        %4519 = vmatmul.mubr.bf16.gmra.mrb[0].mxu0 %v2919
        %v4520 = vpop.f32.mrb[0].mxu0
        %v4521 = vadd.f32 %v3976, %v4520
        %v4522 = vpop.f32.mrb[0].mxu0
        %v4523 = vpop.f32.mrb[0].mxu0
        %v4524 = vadd.f32 %v3979, %v4523
        %v4525 = vpop.f32.mrb[0].mxu0
        %4526 = vmatprep.mubr.bf16.mxu0 %v2928
        %4527 = vmatmul.mubr.bf16.gmra.mrb[0].mxu0 %v2927
        %v4528 = vpop.f32.mrb[0].mxu0
        %v4529 = vadd.f32 %v3984, %v4528
        %v4530 = vpop.f32.mrb[0].mxu0
        %v4531 = vpop.f32.mrb[0].mxu0
        %v4532 = vadd.f32 %v3987, %v4531
        %v4533 = vpop.f32.mrb[0].mxu0
        %4534 = vmatprep.mubr.bf16.mxu0 %v2936
        %4535 = vmatmul.mubr.bf16.gmra.mrb[0].mxu0 %v2935
        %v4536 = vpop.f32.mrb[0].mxu0
        %v4537 = vadd.f32 %v3992, %v4536
        %v4538 = vpop.f32.mrb[0].mxu0
        %v4539 = vpop.f32.mrb[0].mxu0
        %v4540 = vadd.f32 %v3995, %v4539
        %v4541 = vpop.f32.mrb[0].mxu0
        %4542 = vmatprep.mubr.bf16.mxu0 %v2944
        %4543 = vmatmul.mubr.bf16.gmra.mrb[0].mxu0 %v2943
        %v4544 = vpop.f32.mrb[0].mxu0
        %v4545 = vadd.f32 %v4000, %v4544
        %v4546 = vpop.f32.mrb[0].mxu0
        %v4547 = vpop.f32.mrb[0].mxu0
        %v4548 = vadd.f32 %v4003, %v4547
        %v4549 = vpop.f32.mrb[0].mxu0
        %4550 = vmatprep.mubr.bf16.mxu0 %v2952
        %4551 = vmatmul.mubr.bf16.gmra.mrb[0].mxu0 %v2951
        %v4552 = vpop.f32.mrb[0].mxu0
        %v4553 = vadd.f32 %v4008, %v4552
        %v4554 = vpop.f32.mrb[0].mxu0
        %v4555 = vpop.f32.mrb[0].mxu0
        %v4556 = vadd.f32 %v4011, %v4555
        %v4557 = vpop.f32.mrb[0].mxu0
        %4558 = vmatprep.mubr.bf16.mxu0 %v2960
        %4559 = vmatmul.mubr.bf16.gmra.mrb[0].mxu0 %v2959
        %v4560 = vpop.f32.mrb[0].mxu0
        %v4561 = vadd.f32 %v4016, %v4560
        %v4562 = vpop.f32.mrb[0].mxu0
        %v4563 = vpop.f32.mrb[0].mxu0
        %v4564 = vadd.f32 %v4019, %v4563
        %v4565 = vpop.f32.mrb[0].mxu0
        %4566 = vmatprep.mubr.bf16.mxu0 %v2968
        %4567 = vmatmul.mubr.bf16.gmra.mrb[0].mxu0 %v2967
        %v4568 = vpop.f32.mrb[0].mxu0
        %v4569 = vadd.f32 %v4024, %v4568
        %v4570 = vpop.f32.mrb[0].mxu0
        %v4571 = vpop.f32.mrb[0].mxu0
        %v4572 = vadd.f32 %v4027, %v4571
        %v4573 = vpop.f32.mrb[0].mxu0
        %4574 = vmatprep.mubr.bf16.mxu0 %v2976
        %4575 = vmatmul.mubr.bf16.gmra.mrb[0].mxu0 %v2975
        %v4576 = vpop.f32.mrb[0].mxu0
        %v4577 = vadd.f32 %v4032, %v4576
        %v4578 = vpop.f32.mrb[0].mxu0
        %v4579 = vpop.f32.mrb[0].mxu0
        %v4580 = vadd.f32 %v4035, %v4579
        %v4581 = vpop.f32.mrb[0].mxu0
        %4582 = vmatprep.mubr.bf16.mxu0 %v2984
        %4583 = vmatmul.mubr.bf16.gmra.mrb[0].mxu0 %v2983
        %v4584 = vpop.f32.mrb[0].mxu0
        %v4585 = vadd.f32 %v4040, %v4584
        %v4586 = vpop.f32.mrb[0].mxu0
        %v4587 = vpop.f32.mrb[0].mxu0
        %v4588 = vadd.f32 %v4043, %v4587
        %v4589 = vpop.f32.mrb[0].mxu0
        %4590 = vmatprep.mubr.bf16.mxu0 %v2992
        %4591 = vmatmul.mubr.bf16.gmra.mrb[0].mxu0 %v2991
        %v4592 = vpop.f32.mrb[0].mxu0
        %v4593 = vadd.f32 %v4048, %v4592
        %v4594 = vpop.f32.mrb[0].mxu0
        %v4595 = vpop.f32.mrb[0].mxu0
        %v4596 = vadd.f32 %v4051, %v4595
        %v4597 = vpop.f32.mrb[0].mxu0
        %4598 = vmatprep.mubr.bf16.mxu0 %v3000
        %4599 = vmatmul.mubr.bf16.gmra.mrb[0].mxu0 %v2999
        %v4600 = vpop.f32.mrb[0].mxu0
        %v4601 = vadd.f32 %v4056, %v4600
        %v4602 = vpop.f32.mrb[0].mxu0
        %v4603 = vpop.f32.mrb[0].mxu0
        %v4604 = vadd.f32 %v4059, %v4603
        %v4605 = vpop.f32.mrb[0].mxu0
        %4606 = vmatprep.mubr.bf16.mxu0 %v3008
        %4607 = vmatmul.mubr.bf16.gmra.mrb[0].mxu0 %v3007
        %v4608 = vpop.f32.mrb[0].mxu0
        %v4609 = vadd.f32 %v4064, %v4608
        %v4610 = vpop.f32.mrb[0].mxu0
        %v4611 = vpop.f32.mrb[0].mxu0
        %v4612 = vadd.f32 %v4067, %v4611
        %v4613 = vpop.f32.mrb[0].mxu0
        %4614 = vmatprep.mubr.bf16.mxu0 %v3016
        %4615 = vmatmul.mubr.bf16.gmra.mrb[0].mxu0 %v3015
        %v4616 = vpop.f32.mrb[0].mxu0
        %v4617 = vadd.f32 %v4072, %v4616
        %v4618 = vpop.f32.mrb[0].mxu0
        %v4619 = vpop.f32.mrb[0].mxu0
        %v4620 = vadd.f32 %v4075, %v4619
        %v4621 = vpop.f32.mrb[0].mxu0
        %4622 = vmatprep.mubr.bf16.mxu0 %v3024
        %4623 = vmatmul.mubr.bf16.gmra.mrb[0].mxu0 %v3023
        %v4624 = vpop.f32.mrb[0].mxu0
        %v4625 = vadd.f32 %v4080, %v4624
        %v4626 = vpop.f32.mrb[0].mxu0
        %v4627 = vpop.f32.mrb[0].mxu0
        %v4628 = vadd.f32 %v4083, %v4627
        %v4629 = vpop.f32.mrb[0].mxu0
        %4630 = vmatprep.mubr.bf16.mxu0 %v3032
        %4631 = vmatmul.mubr.bf16.gmra.mrb[0].mxu0 %v3031
        %v4632 = vpop.f32.mrb[0].mxu0
        %v4633 = vadd.f32 %v4088, %v4632
        %v4634 = vpop.f32.mrb[0].mxu0
        %v4635 = vpop.f32.mrb[0].mxu0
        %v4636 = vadd.f32 %v4091, %v4635
        %v4637 = vpop.f32.mrb[0].mxu0
        %4638 = vmatprep.mubr.bf16.mxu0 %v3040
        %4639 = vmatmul.mubr.bf16.gmra.mrb[0].mxu0 %v3039
        %v4640 = vpop.f32.mrb[0].mxu0
        %v4641 = vadd.f32 %v4096, %v4640
        %v4642 = vpop.f32.mrb[0].mxu0
        %v4643 = vpop.f32.mrb[0].mxu0
        %v4644 = vadd.f32 %v4099, %v4643
        %v4645 = vpop.f32.mrb[0].mxu0
        %4646 = vmatprep.mubr.bf16.mxu0 %v3048
        %4647 = vmatmul.mubr.bf16.gmra.mrb[0].mxu0 %v3047
        %v4648 = vpop.f32.mrb[0].mxu0
        %v4649 = vadd.f32 %v4104, %v4648
        %v4650 = vpop.f32.mrb[0].mxu0
        %v4651 = vpop.f32.mrb[0].mxu0
        %v4652 = vadd.f32 %v4107, %v4651
        %v4653 = vpop.f32.mrb[0].mxu0
        %4654 = vmatprep.mubr.bf16.mxu0 %v3056
        %4655 = vmatmul.mubr.bf16.gmra.mrb[0].mxu0 %v3055
        %v4656 = vpop.f32.mrb[0].mxu0
        %v4657 = vadd.f32 %v4112, %v4656
        %v4658 = vpop.f32.mrb[0].mxu0
        %v4659 = vpop.f32.mrb[0].mxu0
        %v4660 = vadd.f32 %v4115, %v4659
        %v4661 = vpop.f32.mrb[0].mxu0
        %4662 = vdwg.mxu0
        %4663 = vmatprep.subr.bf16.mxu0 0
        %4664 = vmatpush1.bf16.msra.mxu0 %v469
        %4665 = vmatprep.subr.bf16.mxu0 0
        %4666 = vmatpush1.bf16.msra.mxu0 %v470
        %4667 = vmatprep.subr.bf16.mxu0 0
        %4668 = vmatpush1.bf16.msra.mxu0 %v471
        %4669 = vmatprep.subr.bf16.mxu0 0
        %4670 = vmatpush1.bf16.msra.mxu0 %v472
        %4671 = vmatprep.subr.bf16.mxu0 0
        %4672 = vmatpush1.bf16.msra.mxu0 %v473
        %4673 = vmatprep.subr.bf16.mxu0 0
        %4674 = vmatpush1.bf16.msra.mxu0 %v474
        %4675 = vmatprep.subr.bf16.mxu0 0
        %4676 = vmatpush1.bf16.msra.mxu0 %v475
        %4677 = vmatprep.subr.bf16.mxu0 0
        %4678 = vmatpush1.bf16.msra.mxu0 %v476
        %4679 = vmatprep.subr.bf16.mxu0 0
        %4680 = vmatpush1.bf16.msra.mxu0 %v477
        %4681 = vmatprep.subr.bf16.mxu0 0
        %4682 = vmatpush1.bf16.msra.mxu0 %v478
        %4683 = vmatprep.subr.bf16.mxu0 0
        %4684 = vmatpush1.bf16.msra.mxu0 %v479
        %4685 = vmatprep.subr.bf16.mxu0 0
        %4686 = vmatpush1.bf16.msra.mxu0 %v480
        %4687 = vmatprep.subr.bf16.mxu0 0
        %4688 = vmatpush1.bf16.msra.mxu0 %v481
        %4689 = vmatprep.subr.bf16.mxu0 0
        %4690 = vmatpush1.bf16.msra.mxu0 %v482
        %4691 = vmatprep.subr.bf16.mxu0 0
        %4692 = vmatpush1.bf16.msra.mxu0 %v483
        %4693 = vmatprep.subr.bf16.mxu0 0
        %4694 = vmatpush1.bf16.msra.mxu0 %v484
        %4695 = vmatprep.mubr.bf16.mxu0 %v2554
        %4696 = vmatmul.mubr.bf16.gmra.mrb[0].mxu0 %v2553
        %v4697 = vpop.f32.mrb[0].mxu0
        %v4698 = vadd.f32 %v4153, %v4697
        %v4699 = vpop.f32.mrb[0].mxu0
        %v4700 = vpop.f32.mrb[0].mxu0
        %v4701 = vadd.f32 %v4156, %v4700
        %v4702 = vpop.f32.mrb[0].mxu0
        %4703 = vmatprep.mubr.bf16.mxu0 %v2562
        %4704 = vmatmul.mubr.bf16.gmra.mrb[0].mxu0 %v2561
        %v4705 = vpop.f32.mrb[0].mxu0
        %v4706 = vadd.f32 %v4161, %v4705
        %v4707 = vpop.f32.mrb[0].mxu0
        %v4708 = vpop.f32.mrb[0].mxu0
        %v4709 = vadd.f32 %v4164, %v4708
        %v4710 = vpop.f32.mrb[0].mxu0
        %4711 = vmatprep.mubr.bf16.mxu0 %v2570
        %4712 = vmatmul.mubr.bf16.gmra.mrb[0].mxu0 %v2569
        %v4713 = vpop.f32.mrb[0].mxu0
        %v4714 = vadd.f32 %v4169, %v4713
        %v4715 = vpop.f32.mrb[0].mxu0
        %v4716 = vpop.f32.mrb[0].mxu0
        %v4717 = vadd.f32 %v4172, %v4716
        %v4718 = vpop.f32.mrb[0].mxu0
        %4719 = vmatprep.mubr.bf16.mxu0 %v2578
        %4720 = vmatmul.mubr.bf16.gmra.mrb[0].mxu0 %v2577
        %v4721 = vpop.f32.mrb[0].mxu0
        %v4722 = vadd.f32 %v4177, %v4721
        %v4723 = vpop.f32.mrb[0].mxu0
        %v4724 = vpop.f32.mrb[0].mxu0
        %v4725 = vadd.f32 %v4180, %v4724
        %v4726 = vpop.f32.mrb[0].mxu0
        %4727 = vmatprep.mubr.bf16.mxu0 %v2586
        %4728 = vmatmul.mubr.bf16.gmra.mrb[0].mxu0 %v2585
        %v4729 = vpop.f32.mrb[0].mxu0
        %v4730 = vadd.f32 %v4185, %v4729
        %v4731 = vpop.f32.mrb[0].mxu0
        %v4732 = vpop.f32.mrb[0].mxu0
        %v4733 = vadd.f32 %v4188, %v4732
        %v4734 = vpop.f32.mrb[0].mxu0
        %4735 = vmatprep.mubr.bf16.mxu0 %v2594
        %4736 = vmatmul.mubr.bf16.gmra.mrb[0].mxu0 %v2593
        %v4737 = vpop.f32.mrb[0].mxu0
        %v4738 = vadd.f32 %v4193, %v4737
        %v4739 = vpop.f32.mrb[0].mxu0
        %v4740 = vpop.f32.mrb[0].mxu0
        %v4741 = vadd.f32 %v4196, %v4740
        %v4742 = vpop.f32.mrb[0].mxu0
        %4743 = vmatprep.mubr.bf16.mxu0 %v2602
        %4744 = vmatmul.mubr.bf16.gmra.mrb[0].mxu0 %v2601
        %v4745 = vpop.f32.mrb[0].mxu0
        %v4746 = vadd.f32 %v4201, %v4745
        %v4747 = vpop.f32.mrb[0].mxu0
        %v4748 = vpop.f32.mrb[0].mxu0
        %v4749 = vadd.f32 %v4204, %v4748
        %v4750 = vpop.f32.mrb[0].mxu0
        %4751 = vmatprep.mubr.bf16.mxu0 %v2610
        %4752 = vmatmul.mubr.bf16.gmra.mrb[0].mxu0 %v2609
        %v4753 = vpop.f32.mrb[0].mxu0
        %v4754 = vadd.f32 %v4209, %v4753
        %v4755 = vpop.f32.mrb[0].mxu0
        %v4756 = vpop.f32.mrb[0].mxu0
        %v4757 = vadd.f32 %v4212, %v4756
        %v4758 = vpop.f32.mrb[0].mxu0
        %4759 = vmatprep.mubr.bf16.mxu0 %v2618
        %4760 = vmatmul.mubr.bf16.gmra.mrb[0].mxu0 %v2617
        %v4761 = vpop.f32.mrb[0].mxu0
        %v4762 = vadd.f32 %v4217, %v4761
        %v4763 = vpop.f32.mrb[0].mxu0
        %v4764 = vpop.f32.mrb[0].mxu0
        %v4765 = vadd.f32 %v4220, %v4764
        %v4766 = vpop.f32.mrb[0].mxu0
        %4767 = vmatprep.mubr.bf16.mxu0 %v2626
        %4768 = vmatmul.mubr.bf16.gmra.mrb[0].mxu0 %v2625
        %v4769 = vpop.f32.mrb[0].mxu0
        %v4770 = vadd.f32 %v4225, %v4769
        %v4771 = vpop.f32.mrb[0].mxu0
        %v4772 = vpop.f32.mrb[0].mxu0
        %v4773 = vadd.f32 %v4228, %v4772
        %v4774 = vpop.f32.mrb[0].mxu0
        %4775 = vmatprep.mubr.bf16.mxu0 %v2634
        %4776 = vmatmul.mubr.bf16.gmra.mrb[0].mxu0 %v2633
        %v4777 = vpop.f32.mrb[0].mxu0
        %v4778 = vadd.f32 %v4233, %v4777
        %v4779 = vpop.f32.mrb[0].mxu0
        %v4780 = vpop.f32.mrb[0].mxu0
        %v4781 = vadd.f32 %v4236, %v4780
        %v4782 = vpop.f32.mrb[0].mxu0
        %4783 = vmatprep.mubr.bf16.mxu0 %v2642
        %4784 = vmatmul.mubr.bf16.gmra.mrb[0].mxu0 %v2641
        %v4785 = vpop.f32.mrb[0].mxu0
        %v4786 = vadd.f32 %v4241, %v4785
        %v4787 = vpop.f32.mrb[0].mxu0
        %v4788 = vpop.f32.mrb[0].mxu0
        %v4789 = vadd.f32 %v4244, %v4788
        %v4790 = vpop.f32.mrb[0].mxu0
        %4791 = vmatprep.mubr.bf16.mxu0 %v2650
        %4792 = vmatmul.mubr.bf16.gmra.mrb[0].mxu0 %v2649
        %v4793 = vpop.f32.mrb[0].mxu0
        %v4794 = vadd.f32 %v4249, %v4793
        %v4795 = vpop.f32.mrb[0].mxu0
        %v4796 = vpop.f32.mrb[0].mxu0
        %v4797 = vadd.f32 %v4252, %v4796
        %v4798 = vpop.f32.mrb[0].mxu0
        %4799 = vmatprep.mubr.bf16.mxu0 %v2658
        %4800 = vmatmul.mubr.bf16.gmra.mrb[0].mxu0 %v2657
        %v4801 = vpop.f32.mrb[0].mxu0
        %v4802 = vadd.f32 %v4257, %v4801
        %v4803 = vpop.f32.mrb[0].mxu0
        %v4804 = vpop.f32.mrb[0].mxu0
        %v4805 = vadd.f32 %v4260, %v4804
        %v4806 = vpop.f32.mrb[0].mxu0
        %4807 = vmatprep.mubr.bf16.mxu0 %v2666
        %4808 = vmatmul.mubr.bf16.gmra.mrb[0].mxu0 %v2665
        %v4809 = vpop.f32.mrb[0].mxu0
        %v4810 = vadd.f32 %v4265, %v4809
        %v4811 = vpop.f32.mrb[0].mxu0
        %v4812 = vpop.f32.mrb[0].mxu0
        %v4813 = vadd.f32 %v4268, %v4812
        %v4814 = vpop.f32.mrb[0].mxu0
        %4815 = vmatprep.mubr.bf16.mxu0 %v2674
        %4816 = vmatmul.mubr.bf16.gmra.mrb[0].mxu0 %v2673
        %v4817 = vpop.f32.mrb[0].mxu0
        %v4818 = vadd.f32 %v4273, %v4817
        %v4819 = vpop.f32.mrb[0].mxu0
        %v4820 = vpop.f32.mrb[0].mxu0
        %v4821 = vadd.f32 %v4276, %v4820
        %v4822 = vpop.f32.mrb[0].mxu0
        %4823 = vmatprep.mubr.bf16.mxu0 %v2682
        %4824 = vmatmul.mubr.bf16.gmra.mrb[0].mxu0 %v2681
        %v4825 = vpop.f32.mrb[0].mxu0
        %v4826 = vadd.f32 %v4281, %v4825
        %v4827 = vpop.f32.mrb[0].mxu0
        %v4828 = vpop.f32.mrb[0].mxu0
        %v4829 = vadd.f32 %v4284, %v4828
        %v4830 = vpop.f32.mrb[0].mxu0
        %4831 = vmatprep.mubr.bf16.mxu0 %v2690
        %4832 = vmatmul.mubr.bf16.gmra.mrb[0].mxu0 %v2689
        %v4833 = vpop.f32.mrb[0].mxu0
        %v4834 = vadd.f32 %v4289, %v4833
        %v4835 = vpop.f32.mrb[0].mxu0
        %v4836 = vpop.f32.mrb[0].mxu0
        %v4837 = vadd.f32 %v4292, %v4836
        %v4838 = vpop.f32.mrb[0].mxu0
        %4839 = vmatprep.mubr.bf16.mxu0 %v2698
        %4840 = vmatmul.mubr.bf16.gmra.mrb[0].mxu0 %v2697
        %v4841 = vpop.f32.mrb[0].mxu0
        %v4842 = vadd.f32 %v4297, %v4841
        %v4843 = vpop.f32.mrb[0].mxu0
        %v4844 = vpop.f32.mrb[0].mxu0
        %v4845 = vadd.f32 %v4300, %v4844
        %v4846 = vpop.f32.mrb[0].mxu0
        %4847 = vmatprep.mubr.bf16.mxu0 %v2706
        %4848 = vmatmul.mubr.bf16.gmra.mrb[0].mxu0 %v2705
        %v4849 = vpop.f32.mrb[0].mxu0
        %v4850 = vadd.f32 %v4305, %v4849
        %v4851 = vpop.f32.mrb[0].mxu0
        %v4852 = vpop.f32.mrb[0].mxu0
        %v4853 = vadd.f32 %v4308, %v4852
        %v4854 = vpop.f32.mrb[0].mxu0
        %4855 = vmatprep.mubr.bf16.mxu0 %v2714
        %4856 = vmatmul.mubr.bf16.gmra.mrb[0].mxu0 %v2713
        %v4857 = vpop.f32.mrb[0].mxu0
        %v4858 = vadd.f32 %v4313, %v4857
        %v4859 = vpop.f32.mrb[0].mxu0
        %v4860 = vpop.f32.mrb[0].mxu0
        %v4861 = vadd.f32 %v4316, %v4860
        %v4862 = vpop.f32.mrb[0].mxu0
        %4863 = vmatprep.mubr.bf16.mxu0 %v2722
        %4864 = vmatmul.mubr.bf16.gmra.mrb[0].mxu0 %v2721
        %v4865 = vpop.f32.mrb[0].mxu0
        %v4866 = vadd.f32 %v4321, %v4865
        %v4867 = vpop.f32.mrb[0].mxu0
        %v4868 = vpop.f32.mrb[0].mxu0
        %v4869 = vadd.f32 %v4324, %v4868
        %v4870 = vpop.f32.mrb[0].mxu0
        %4871 = vmatprep.mubr.bf16.mxu0 %v2730
        %4872 = vmatmul.mubr.bf16.gmra.mrb[0].mxu0 %v2729
        %v4873 = vpop.f32.mrb[0].mxu0
        %v4874 = vadd.f32 %v4329, %v4873
        %v4875 = vpop.f32.mrb[0].mxu0
        %v4876 = vpop.f32.mrb[0].mxu0
        %v4877 = vadd.f32 %v4332, %v4876
        %v4878 = vpop.f32.mrb[0].mxu0
        %4879 = vmatprep.mubr.bf16.mxu0 %v2738
        %4880 = vmatmul.mubr.bf16.gmra.mrb[0].mxu0 %v2737
        %v4881 = vpop.f32.mrb[0].mxu0
        %v4882 = vadd.f32 %v4337, %v4881
        %v4883 = vpop.f32.mrb[0].mxu0
        %v4884 = vpop.f32.mrb[0].mxu0
        %v4885 = vadd.f32 %v4340, %v4884
        %v4886 = vpop.f32.mrb[0].mxu0
        %4887 = vmatprep.mubr.bf16.mxu0 %v2746
        %4888 = vmatmul.mubr.bf16.gmra.mrb[0].mxu0 %v2745
        %v4889 = vpop.f32.mrb[0].mxu0
        %v4890 = vadd.f32 %v4345, %v4889
        %v4891 = vpop.f32.mrb[0].mxu0
        %v4892 = vpop.f32.mrb[0].mxu0
        %v4893 = vadd.f32 %v4348, %v4892
        %v4894 = vpop.f32.mrb[0].mxu0
        %4895 = vmatprep.mubr.bf16.mxu0 %v2754
        %4896 = vmatmul.mubr.bf16.gmra.mrb[0].mxu0 %v2753
        %v4897 = vpop.f32.mrb[0].mxu0
        %v4898 = vadd.f32 %v4353, %v4897
        %v4899 = vpop.f32.mrb[0].mxu0
        %v4900 = vpop.f32.mrb[0].mxu0
        %v4901 = vadd.f32 %v4356, %v4900
        %v4902 = vpop.f32.mrb[0].mxu0
        %4903 = vmatprep.mubr.bf16.mxu0 %v2762
        %4904 = vmatmul.mubr.bf16.gmra.mrb[0].mxu0 %v2761
        %v4905 = vpop.f32.mrb[0].mxu0
        %v4906 = vadd.f32 %v4361, %v4905
        %v4907 = vpop.f32.mrb[0].mxu0
        %v4908 = vpop.f32.mrb[0].mxu0
        %v4909 = vadd.f32 %v4364, %v4908
        %v4910 = vpop.f32.mrb[0].mxu0
        %4911 = vmatprep.mubr.bf16.mxu0 %v2770
        %4912 = vmatmul.mubr.bf16.gmra.mrb[0].mxu0 %v2769
        %v4913 = vpop.f32.mrb[0].mxu0
        %v4914 = vadd.f32 %v4369, %v4913
        %v4915 = vpop.f32.mrb[0].mxu0
        %v4916 = vpop.f32.mrb[0].mxu0
        %v4917 = vadd.f32 %v4372, %v4916
        %v4918 = vpop.f32.mrb[0].mxu0
        %4919 = vmatprep.mubr.bf16.mxu0 %v2778
        %4920 = vmatmul.mubr.bf16.gmra.mrb[0].mxu0 %v2777
        %v4921 = vpop.f32.mrb[0].mxu0
        %v4922 = vadd.f32 %v4377, %v4921
        %v4923 = vpop.f32.mrb[0].mxu0
        %v4924 = vpop.f32.mrb[0].mxu0
        %v4925 = vadd.f32 %v4380, %v4924
        %v4926 = vpop.f32.mrb[0].mxu0
        %4927 = vmatprep.mubr.bf16.mxu0 %v2786
        %4928 = vmatmul.mubr.bf16.gmra.mrb[0].mxu0 %v2785
        %v4929 = vpop.f32.mrb[0].mxu0
        %v4930 = vadd.f32 %v4385, %v4929
        %v4931 = vpop.f32.mrb[0].mxu0
        %v4932 = vpop.f32.mrb[0].mxu0
        %v4933 = vadd.f32 %v4388, %v4932
        %v4934 = vpop.f32.mrb[0].mxu0
        %4935 = vmatprep.mubr.bf16.mxu0 %v2794
        %4936 = vmatmul.mubr.bf16.gmra.mrb[0].mxu0 %v2793
        %v4937 = vpop.f32.mrb[0].mxu0
        %v4938 = vadd.f32 %v4393, %v4937
        %v4939 = vpop.f32.mrb[0].mxu0
        %v4940 = vpop.f32.mrb[0].mxu0
        %v4941 = vadd.f32 %v4396, %v4940
        %v4942 = vpop.f32.mrb[0].mxu0
        %4943 = vmatprep.mubr.bf16.mxu0 %v2802
        %4944 = vmatmul.mubr.bf16.gmra.mrb[0].mxu0 %v2801
        %v4945 = vpop.f32.mrb[0].mxu0
        %v4946 = vadd.f32 %v4401, %v4945
        %v4947 = vpop.f32.mrb[0].mxu0
        %v4948 = vpop.f32.mrb[0].mxu0
        %v4949 = vadd.f32 %v4404, %v4948
        %v4950 = vpop.f32.mrb[0].mxu0
        %4951 = vmatprep.mubr.bf16.mxu0 %v2810
        %4952 = vmatmul.mubr.bf16.gmra.mrb[0].mxu0 %v2809
        %v4953 = vpop.f32.mrb[0].mxu0
        %v4954 = vadd.f32 %v4409, %v4953
        %v4955 = vpop.f32.mrb[0].mxu0
        %v4956 = vpop.f32.mrb[0].mxu0
        %v4957 = vadd.f32 %v4412, %v4956
        %v4958 = vpop.f32.mrb[0].mxu0
        %4959 = vmatprep.mubr.bf16.mxu0 %v2818
        %4960 = vmatmul.mubr.bf16.gmra.mrb[0].mxu0 %v2817
        %v4961 = vpop.f32.mrb[0].mxu0
        %v4962 = vadd.f32 %v4417, %v4961
        %v4963 = vpop.f32.mrb[0].mxu0
        %v4964 = vpop.f32.mrb[0].mxu0
        %v4965 = vadd.f32 %v4420, %v4964
        %v4966 = vpop.f32.mrb[0].mxu0
        %4967 = vmatprep.mubr.bf16.mxu0 %v2826
        %4968 = vmatmul.mubr.bf16.gmra.mrb[0].mxu0 %v2825
        %v4969 = vpop.f32.mrb[0].mxu0
        %v4970 = vadd.f32 %v4425, %v4969
        %v4971 = vpop.f32.mrb[0].mxu0
        %v4972 = vpop.f32.mrb[0].mxu0
        %v4973 = vadd.f32 %v4428, %v4972
        %v4974 = vpop.f32.mrb[0].mxu0
        %4975 = vmatprep.mubr.bf16.mxu0 %v2834
        %4976 = vmatmul.mubr.bf16.gmra.mrb[0].mxu0 %v2833
        %v4977 = vpop.f32.mrb[0].mxu0
        %v4978 = vadd.f32 %v4433, %v4977
        %v4979 = vpop.f32.mrb[0].mxu0
        %v4980 = vpop.f32.mrb[0].mxu0
        %v4981 = vadd.f32 %v4436, %v4980
        %v4982 = vpop.f32.mrb[0].mxu0
        %4983 = vmatprep.mubr.bf16.mxu0 %v2842
        %4984 = vmatmul.mubr.bf16.gmra.mrb[0].mxu0 %v2841
        %v4985 = vpop.f32.mrb[0].mxu0
        %v4986 = vadd.f32 %v4441, %v4985
        %v4987 = vpop.f32.mrb[0].mxu0
        %v4988 = vpop.f32.mrb[0].mxu0
        %v4989 = vadd.f32 %v4444, %v4988
        %v4990 = vpop.f32.mrb[0].mxu0
        %4991 = vmatprep.mubr.bf16.mxu0 %v2850
        %4992 = vmatmul.mubr.bf16.gmra.mrb[0].mxu0 %v2849
        %v4993 = vpop.f32.mrb[0].mxu0
        %v4994 = vadd.f32 %v4449, %v4993
        %v4995 = vpop.f32.mrb[0].mxu0
        %v4996 = vpop.f32.mrb[0].mxu0
        %v4997 = vadd.f32 %v4452, %v4996
        %v4998 = vpop.f32.mrb[0].mxu0
        %4999 = vmatprep.mubr.bf16.mxu0 %v2858
        %5000 = vmatmul.mubr.bf16.gmra.mrb[0].mxu0 %v2857
        %v5001 = vpop.f32.mrb[0].mxu0
        %v5002 = vadd.f32 %v4457, %v5001
        %v5003 = vpop.f32.mrb[0].mxu0
        %v5004 = vpop.f32.mrb[0].mxu0
        %v5005 = vadd.f32 %v4460, %v5004
        %v5006 = vpop.f32.mrb[0].mxu0
        %5007 = vmatprep.mubr.bf16.mxu0 %v2866
        %5008 = vmatmul.mubr.bf16.gmra.mrb[0].mxu0 %v2865
        %v5009 = vpop.f32.mrb[0].mxu0
        %v5010 = vadd.f32 %v4465, %v5009
        %v5011 = vpop.f32.mrb[0].mxu0
        %v5012 = vpop.f32.mrb[0].mxu0
        %v5013 = vadd.f32 %v4468, %v5012
        %v5014 = vpop.f32.mrb[0].mxu0
        %5015 = vmatprep.mubr.bf16.mxu0 %v2874
        %5016 = vmatmul.mubr.bf16.gmra.mrb[0].mxu0 %v2873
        %v5017 = vpop.f32.mrb[0].mxu0
        %v5018 = vadd.f32 %v4473, %v5017
        %v5019 = vpop.f32.mrb[0].mxu0
        %v5020 = vpop.f32.mrb[0].mxu0
        %v5021 = vadd.f32 %v4476, %v5020
        %v5022 = vpop.f32.mrb[0].mxu0
        %5023 = vmatprep.mubr.bf16.mxu0 %v2882
        %5024 = vmatmul.mubr.bf16.gmra.mrb[0].mxu0 %v2881
        %v5025 = vpop.f32.mrb[0].mxu0
        %v5026 = vadd.f32 %v4481, %v5025
        %v5027 = vpop.f32.mrb[0].mxu0
        %v5028 = vpop.f32.mrb[0].mxu0
        %v5029 = vadd.f32 %v4484, %v5028
        %v5030 = vpop.f32.mrb[0].mxu0
        %5031 = vmatprep.mubr.bf16.mxu0 %v2890
        %5032 = vmatmul.mubr.bf16.gmra.mrb[0].mxu0 %v2889
        %v5033 = vpop.f32.mrb[0].mxu0
        %v5034 = vadd.f32 %v4489, %v5033
        %v5035 = vpop.f32.mrb[0].mxu0
        %v5036 = vpop.f32.mrb[0].mxu0
        %v5037 = vadd.f32 %v4492, %v5036
        %v5038 = vpop.f32.mrb[0].mxu0
        %5039 = vmatprep.mubr.bf16.mxu0 %v2898
        %5040 = vmatmul.mubr.bf16.gmra.mrb[0].mxu0 %v2897
        %v5041 = vpop.f32.mrb[0].mxu0
        %v5042 = vadd.f32 %v4497, %v5041
        %v5043 = vpop.f32.mrb[0].mxu0
        %v5044 = vpop.f32.mrb[0].mxu0
        %v5045 = vadd.f32 %v4500, %v5044
        %v5046 = vpop.f32.mrb[0].mxu0
        %5047 = vmatprep.mubr.bf16.mxu0 %v2906
        %5048 = vmatmul.mubr.bf16.gmra.mrb[0].mxu0 %v2905
        %v5049 = vpop.f32.mrb[0].mxu0
        %v5050 = vadd.f32 %v4505, %v5049
        %v5051 = vpop.f32.mrb[0].mxu0
        %v5052 = vpop.f32.mrb[0].mxu0
        %v5053 = vadd.f32 %v4508, %v5052
        %v5054 = vpop.f32.mrb[0].mxu0
        %5055 = vmatprep.mubr.bf16.mxu0 %v2914
        %5056 = vmatmul.mubr.bf16.gmra.mrb[0].mxu0 %v2913
        %v5057 = vpop.f32.mrb[0].mxu0
        %v5058 = vadd.f32 %v4513, %v5057
        %v5059 = vpop.f32.mrb[0].mxu0
        %v5060 = vpop.f32.mrb[0].mxu0
        %v5061 = vadd.f32 %v4516, %v5060
        %v5062 = vpop.f32.mrb[0].mxu0
        %5063 = vmatprep.mubr.bf16.mxu0 %v2922
        %5064 = vmatmul.mubr.bf16.gmra.mrb[0].mxu0 %v2921
        %v5065 = vpop.f32.mrb[0].mxu0
        %v5066 = vadd.f32 %v4521, %v5065
        %v5067 = vpop.f32.mrb[0].mxu0
        %v5068 = vpop.f32.mrb[0].mxu0
        %v5069 = vadd.f32 %v4524, %v5068
        %v5070 = vpop.f32.mrb[0].mxu0
        %5071 = vmatprep.mubr.bf16.mxu0 %v2930
        %5072 = vmatmul.mubr.bf16.gmra.mrb[0].mxu0 %v2929
        %v5073 = vpop.f32.mrb[0].mxu0
        %v5074 = vadd.f32 %v4529, %v5073
        %v5075 = vpop.f32.mrb[0].mxu0
        %v5076 = vpop.f32.mrb[0].mxu0
        %v5077 = vadd.f32 %v4532, %v5076
        %v5078 = vpop.f32.mrb[0].mxu0
        %5079 = vmatprep.mubr.bf16.mxu0 %v2938
        %5080 = vmatmul.mubr.bf16.gmra.mrb[0].mxu0 %v2937
        %v5081 = vpop.f32.mrb[0].mxu0
        %v5082 = vadd.f32 %v4537, %v5081
        %v5083 = vpop.f32.mrb[0].mxu0
        %v5084 = vpop.f32.mrb[0].mxu0
        %v5085 = vadd.f32 %v4540, %v5084
        %v5086 = vpop.f32.mrb[0].mxu0
        %5087 = vmatprep.mubr.bf16.mxu0 %v2946
        %5088 = vmatmul.mubr.bf16.gmra.mrb[0].mxu0 %v2945
        %v5089 = vpop.f32.mrb[0].mxu0
        %v5090 = vadd.f32 %v4545, %v5089
        %v5091 = vpop.f32.mrb[0].mxu0
        %v5092 = vpop.f32.mrb[0].mxu0
        %v5093 = vadd.f32 %v4548, %v5092
        %v5094 = vpop.f32.mrb[0].mxu0
        %5095 = vmatprep.mubr.bf16.mxu0 %v2954
        %5096 = vmatmul.mubr.bf16.gmra.mrb[0].mxu0 %v2953
        %v5097 = vpop.f32.mrb[0].mxu0
        %v5098 = vadd.f32 %v4553, %v5097
        %v5099 = vpop.f32.mrb[0].mxu0
        %v5100 = vpop.f32.mrb[0].mxu0
        %v5101 = vadd.f32 %v4556, %v5100
        %v5102 = vpop.f32.mrb[0].mxu0
        %5103 = vmatprep.mubr.bf16.mxu0 %v2962
        %5104 = vmatmul.mubr.bf16.gmra.mrb[0].mxu0 %v2961
        %v5105 = vpop.f32.mrb[0].mxu0
        %v5106 = vadd.f32 %v4561, %v5105
        %v5107 = vpop.f32.mrb[0].mxu0
        %v5108 = vpop.f32.mrb[0].mxu0
        %v5109 = vadd.f32 %v4564, %v5108
        %v5110 = vpop.f32.mrb[0].mxu0
        %5111 = vmatprep.mubr.bf16.mxu0 %v2970
        %5112 = vmatmul.mubr.bf16.gmra.mrb[0].mxu0 %v2969
        %v5113 = vpop.f32.mrb[0].mxu0
        %v5114 = vadd.f32 %v4569, %v5113
        %v5115 = vpop.f32.mrb[0].mxu0
        %v5116 = vpop.f32.mrb[0].mxu0
        %v5117 = vadd.f32 %v4572, %v5116
        %v5118 = vpop.f32.mrb[0].mxu0
        %5119 = vmatprep.mubr.bf16.mxu0 %v2978
        %5120 = vmatmul.mubr.bf16.gmra.mrb[0].mxu0 %v2977
        %v5121 = vpop.f32.mrb[0].mxu0
        %v5122 = vadd.f32 %v4577, %v5121
        %v5123 = vpop.f32.mrb[0].mxu0
        %v5124 = vpop.f32.mrb[0].mxu0
        %v5125 = vadd.f32 %v4580, %v5124
        %v5126 = vpop.f32.mrb[0].mxu0
        %5127 = vmatprep.mubr.bf16.mxu0 %v2986
        %5128 = vmatmul.mubr.bf16.gmra.mrb[0].mxu0 %v2985
        %v5129 = vpop.f32.mrb[0].mxu0
        %v5130 = vadd.f32 %v4585, %v5129
        %v5131 = vpop.f32.mrb[0].mxu0
        %v5132 = vpop.f32.mrb[0].mxu0
        %v5133 = vadd.f32 %v4588, %v5132
        %v5134 = vpop.f32.mrb[0].mxu0
        %5135 = vmatprep.mubr.bf16.mxu0 %v2994
        %5136 = vmatmul.mubr.bf16.gmra.mrb[0].mxu0 %v2993
        %v5137 = vpop.f32.mrb[0].mxu0
        %v5138 = vadd.f32 %v4593, %v5137
        %v5139 = vpop.f32.mrb[0].mxu0
        %v5140 = vpop.f32.mrb[0].mxu0
        %v5141 = vadd.f32 %v4596, %v5140
        %v5142 = vpop.f32.mrb[0].mxu0
        %5143 = vmatprep.mubr.bf16.mxu0 %v3002
        %5144 = vmatmul.mubr.bf16.gmra.mrb[0].mxu0 %v3001
        %v5145 = vpop.f32.mrb[0].mxu0
        %v5146 = vadd.f32 %v4601, %v5145
        %v5147 = vpop.f32.mrb[0].mxu0
        %v5148 = vpop.f32.mrb[0].mxu0
        %v5149 = vadd.f32 %v4604, %v5148
        %v5150 = vpop.f32.mrb[0].mxu0
        %5151 = vmatprep.mubr.bf16.mxu0 %v3010
        %5152 = vmatmul.mubr.bf16.gmra.mrb[0].mxu0 %v3009
        %v5153 = vpop.f32.mrb[0].mxu0
        %v5154 = vadd.f32 %v4609, %v5153
        %v5155 = vpop.f32.mrb[0].mxu0
        %v5156 = vpop.f32.mrb[0].mxu0
        %v5157 = vadd.f32 %v4612, %v5156
        %v5158 = vpop.f32.mrb[0].mxu0
        %5159 = vmatprep.mubr.bf16.mxu0 %v3018
        %5160 = vmatmul.mubr.bf16.gmra.mrb[0].mxu0 %v3017
        %v5161 = vpop.f32.mrb[0].mxu0
        %v5162 = vadd.f32 %v4617, %v5161
        %v5163 = vpop.f32.mrb[0].mxu0
        %v5164 = vpop.f32.mrb[0].mxu0
        %v5165 = vadd.f32 %v4620, %v5164
        %v5166 = vpop.f32.mrb[0].mxu0
        %5167 = vmatprep.mubr.bf16.mxu0 %v3026
        %5168 = vmatmul.mubr.bf16.gmra.mrb[0].mxu0 %v3025
        %v5169 = vpop.f32.mrb[0].mxu0
        %v5170 = vadd.f32 %v4625, %v5169
        %v5171 = vpop.f32.mrb[0].mxu0
        %v5172 = vpop.f32.mrb[0].mxu0
        %v5173 = vadd.f32 %v4628, %v5172
        %v5174 = vpop.f32.mrb[0].mxu0
        %5175 = vmatprep.mubr.bf16.mxu0 %v3034
        %5176 = vmatmul.mubr.bf16.gmra.mrb[0].mxu0 %v3033
        %v5177 = vpop.f32.mrb[0].mxu0
        %v5178 = vadd.f32 %v4633, %v5177
        %v5179 = vpop.f32.mrb[0].mxu0
        %v5180 = vpop.f32.mrb[0].mxu0
        %v5181 = vadd.f32 %v4636, %v5180
        %v5182 = vpop.f32.mrb[0].mxu0
        %5183 = vmatprep.mubr.bf16.mxu0 %v3042
        %5184 = vmatmul.mubr.bf16.gmra.mrb[0].mxu0 %v3041
        %v5185 = vpop.f32.mrb[0].mxu0
        %v5186 = vadd.f32 %v4641, %v5185
        %v5187 = vpop.f32.mrb[0].mxu0
        %v5188 = vpop.f32.mrb[0].mxu0
        %v5189 = vadd.f32 %v4644, %v5188
        %v5190 = vpop.f32.mrb[0].mxu0
        %5191 = vmatprep.mubr.bf16.mxu0 %v3050
        %5192 = vmatmul.mubr.bf16.gmra.mrb[0].mxu0 %v3049
        %v5193 = vpop.f32.mrb[0].mxu0
        %v5194 = vadd.f32 %v4649, %v5193
        %v5195 = vpop.f32.mrb[0].mxu0
        %v5196 = vpop.f32.mrb[0].mxu0
        %v5197 = vadd.f32 %v4652, %v5196
        %v5198 = vpop.f32.mrb[0].mxu0
        %5199 = vmatprep.mubr.bf16.mxu0 %v3058
        %5200 = vmatmul.mubr.bf16.gmra.mrb[0].mxu0 %v3057
        %v5201 = vpop.f32.mrb[0].mxu0
        %v5202 = vadd.f32 %v4657, %v5201
        %v5203 = vpop.f32.mrb[0].mxu0
        %v5204 = vpop.f32.mrb[0].mxu0
        %v5205 = vadd.f32 %v4660, %v5204
        %v5206 = vpop.f32.mrb[0].mxu0
        %5207 = vdwg.mxu0
        %5208 = vmatprep.subr.bf16.mxu0 0
        %5209 = vmatpush1.bf16.msra.mxu0 %v485
        %5210 = vmatprep.subr.bf16.mxu0 0
        %5211 = vmatpush1.bf16.msra.mxu0 %v486
        %5212 = vmatprep.subr.bf16.mxu0 0
        %5213 = vmatpush1.bf16.msra.mxu0 %v487
        %5214 = vmatprep.subr.bf16.mxu0 0
        %5215 = vmatpush1.bf16.msra.mxu0 %v488
        %5216 = vmatprep.subr.bf16.mxu0 0
        %5217 = vmatpush1.bf16.msra.mxu0 %v489
        %5218 = vmatprep.subr.bf16.mxu0 0
        %5219 = vmatpush1.bf16.msra.mxu0 %v490
        %5220 = vmatprep.subr.bf16.mxu0 0
        %5221 = vmatpush1.bf16.msra.mxu0 %v491
        %5222 = vmatprep.subr.bf16.mxu0 0
        %5223 = vmatpush1.bf16.msra.mxu0 %v492
        %5224 = vmatprep.subr.bf16.mxu0 0
        %5225 = vmatpush1.bf16.msra.mxu0 %v493
        %5226 = vmatprep.subr.bf16.mxu0 0
        %5227 = vmatpush1.bf16.msra.mxu0 %v494
        %5228 = vmatprep.subr.bf16.mxu0 0
        %5229 = vmatpush1.bf16.msra.mxu0 %v495
        %5230 = vmatprep.subr.bf16.mxu0 0
        %5231 = vmatpush1.bf16.msra.mxu0 %v496
        %5232 = vmatprep.subr.bf16.mxu0 0
        %5233 = vmatpush1.bf16.msra.mxu0 %v497
        %5234 = vmatprep.subr.bf16.mxu0 0
        %5235 = vmatpush1.bf16.msra.mxu0 %v498
        %5236 = vmatprep.subr.bf16.mxu0 0
        %5237 = vmatpush1.bf16.msra.mxu0 %v499
        %5238 = vmatprep.subr.bf16.mxu0 0
        %5239 = vmatpush1.bf16.msra.mxu0 %v500
        %5240 = vmatprep.mubr.bf16.mxu0 %v2556
        %5241 = vmatmul.mubr.bf16.gmra.mrb[0].mxu0 %v2555
        %v5242 = vpop.f32.mrb[0].mxu0
        %v5243 = vadd.f32 %v4698, %v5242
        %v5244 = vpop.f32.mrb[0].mxu0
        %v5245 = vpop.f32.mrb[0].mxu0
        %v5246 = vadd.f32 %v4701, %v5245
        %v5247 = vpop.f32.mrb[0].mxu0
        %5248 = vmatprep.mubr.bf16.mxu0 %v2564
        %5249 = vmatmul.mubr.bf16.gmra.mrb[0].mxu0 %v2563
        %v5250 = vpop.f32.mrb[0].mxu0
        %v5251 = vadd.f32 %v4706, %v5250
        %v5252 = vpop.f32.mrb[0].mxu0
        %v5253 = vpop.f32.mrb[0].mxu0
        %v5254 = vadd.f32 %v4709, %v5253
        %v5255 = vpop.f32.mrb[0].mxu0
        %5256 = vmatprep.mubr.bf16.mxu0 %v2572
        %5257 = vmatmul.mubr.bf16.gmra.mrb[0].mxu0 %v2571
        %v5258 = vpop.f32.mrb[0].mxu0
        %v5259 = vadd.f32 %v4714, %v5258
        %v5260 = vpop.f32.mrb[0].mxu0
        %v5261 = vpop.f32.mrb[0].mxu0
        %v5262 = vadd.f32 %v4717, %v5261
        %v5263 = vpop.f32.mrb[0].mxu0
        %5264 = vmatprep.mubr.bf16.mxu0 %v2580
        %5265 = vmatmul.mubr.bf16.gmra.mrb[0].mxu0 %v2579
        %v5266 = vpop.f32.mrb[0].mxu0
        %v5267 = vadd.f32 %v4722, %v5266
        %v5268 = vpop.f32.mrb[0].mxu0
        %v5269 = vpop.f32.mrb[0].mxu0
        %v5270 = vadd.f32 %v4725, %v5269
        %v5271 = vpop.f32.mrb[0].mxu0
        %5272 = vmatprep.mubr.bf16.mxu0 %v2588
        %5273 = vmatmul.mubr.bf16.gmra.mrb[0].mxu0 %v2587
        %v5274 = vpop.f32.mrb[0].mxu0
        %v5275 = vadd.f32 %v4730, %v5274
        %v5276 = vpop.f32.mrb[0].mxu0
        %v5277 = vpop.f32.mrb[0].mxu0
        %v5278 = vadd.f32 %v4733, %v5277
        %v5279 = vpop.f32.mrb[0].mxu0
        %5280 = vmatprep.mubr.bf16.mxu0 %v2596
        %5281 = vmatmul.mubr.bf16.gmra.mrb[0].mxu0 %v2595
        %v5282 = vpop.f32.mrb[0].mxu0
        %v5283 = vadd.f32 %v4738, %v5282
        %v5284 = vpop.f32.mrb[0].mxu0
        %v5285 = vpop.f32.mrb[0].mxu0
        %v5286 = vadd.f32 %v4741, %v5285
        %v5287 = vpop.f32.mrb[0].mxu0
        %5288 = vmatprep.mubr.bf16.mxu0 %v2604
        %5289 = vmatmul.mubr.bf16.gmra.mrb[0].mxu0 %v2603
        %v5290 = vpop.f32.mrb[0].mxu0
        %v5291 = vadd.f32 %v4746, %v5290
        %v5292 = vpop.f32.mrb[0].mxu0
        %v5293 = vpop.f32.mrb[0].mxu0
        %v5294 = vadd.f32 %v4749, %v5293
        %v5295 = vpop.f32.mrb[0].mxu0
        %5296 = vmatprep.mubr.bf16.mxu0 %v2612
        %5297 = vmatmul.mubr.bf16.gmra.mrb[0].mxu0 %v2611
        %v5298 = vpop.f32.mrb[0].mxu0
        %v5299 = vadd.f32 %v4754, %v5298
        %v5300 = vpop.f32.mrb[0].mxu0
        %v5301 = vpop.f32.mrb[0].mxu0
        %v5302 = vadd.f32 %v4757, %v5301
        %v5303 = vpop.f32.mrb[0].mxu0
        %5304 = vmatprep.mubr.bf16.mxu0 %v2620
        %5305 = vmatmul.mubr.bf16.gmra.mrb[0].mxu0 %v2619
        %v5306 = vpop.f32.mrb[0].mxu0
        %v5307 = vadd.f32 %v4762, %v5306
        %v5308 = vpop.f32.mrb[0].mxu0
        %v5309 = vpop.f32.mrb[0].mxu0
        %v5310 = vadd.f32 %v4765, %v5309
        %v5311 = vpop.f32.mrb[0].mxu0
        %5312 = vmatprep.mubr.bf16.mxu0 %v2628
        %5313 = vmatmul.mubr.bf16.gmra.mrb[0].mxu0 %v2627
        %v5314 = vpop.f32.mrb[0].mxu0
        %v5315 = vadd.f32 %v4770, %v5314
        %v5316 = vpop.f32.mrb[0].mxu0
        %v5317 = vpop.f32.mrb[0].mxu0
        %v5318 = vadd.f32 %v4773, %v5317
        %v5319 = vpop.f32.mrb[0].mxu0
        %5320 = vmatprep.mubr.bf16.mxu0 %v2636
        %5321 = vmatmul.mubr.bf16.gmra.mrb[0].mxu0 %v2635
        %v5322 = vpop.f32.mrb[0].mxu0
        %v5323 = vadd.f32 %v4778, %v5322
        %v5324 = vpop.f32.mrb[0].mxu0
        %v5325 = vpop.f32.mrb[0].mxu0
        %v5326 = vadd.f32 %v4781, %v5325
        %v5327 = vpop.f32.mrb[0].mxu0
        %5328 = vmatprep.mubr.bf16.mxu0 %v2644
        %5329 = vmatmul.mubr.bf16.gmra.mrb[0].mxu0 %v2643
        %v5330 = vpop.f32.mrb[0].mxu0
        %v5331 = vadd.f32 %v4786, %v5330
        %v5332 = vpop.f32.mrb[0].mxu0
        %v5333 = vpop.f32.mrb[0].mxu0
        %v5334 = vadd.f32 %v4789, %v5333
        %v5335 = vpop.f32.mrb[0].mxu0
        %5336 = vmatprep.mubr.bf16.mxu0 %v2652
        %5337 = vmatmul.mubr.bf16.gmra.mrb[0].mxu0 %v2651
        %v5338 = vpop.f32.mrb[0].mxu0
        %v5339 = vadd.f32 %v4794, %v5338
        %v5340 = vpop.f32.mrb[0].mxu0
        %v5341 = vpop.f32.mrb[0].mxu0
        %v5342 = vadd.f32 %v4797, %v5341
        %v5343 = vpop.f32.mrb[0].mxu0
        %5344 = vmatprep.mubr.bf16.mxu0 %v2660
        %5345 = vmatmul.mubr.bf16.gmra.mrb[0].mxu0 %v2659
        %v5346 = vpop.f32.mrb[0].mxu0
        %v5347 = vadd.f32 %v4802, %v5346
        %v5348 = vpop.f32.mrb[0].mxu0
        %v5349 = vpop.f32.mrb[0].mxu0
        %v5350 = vadd.f32 %v4805, %v5349
        %v5351 = vpop.f32.mrb[0].mxu0
        %5352 = vmatprep.mubr.bf16.mxu0 %v2668
        %5353 = vmatmul.mubr.bf16.gmra.mrb[0].mxu0 %v2667
        %v5354 = vpop.f32.mrb[0].mxu0
        %v5355 = vadd.f32 %v4810, %v5354
        %v5356 = vpop.f32.mrb[0].mxu0
        %v5357 = vpop.f32.mrb[0].mxu0
        %v5358 = vadd.f32 %v4813, %v5357
        %v5359 = vpop.f32.mrb[0].mxu0
        %5360 = vmatprep.mubr.bf16.mxu0 %v2676
        %5361 = vmatmul.mubr.bf16.gmra.mrb[0].mxu0 %v2675
        %v5362 = vpop.f32.mrb[0].mxu0
        %v5363 = vadd.f32 %v4818, %v5362
        %v5364 = vpop.f32.mrb[0].mxu0
        %v5365 = vpop.f32.mrb[0].mxu0
        %v5366 = vadd.f32 %v4821, %v5365
        %v5367 = vpop.f32.mrb[0].mxu0
        %5368 = vmatprep.mubr.bf16.mxu0 %v2684
        %5369 = vmatmul.mubr.bf16.gmra.mrb[0].mxu0 %v2683
        %v5370 = vpop.f32.mrb[0].mxu0
        %v5371 = vadd.f32 %v4826, %v5370
        %v5372 = vpop.f32.mrb[0].mxu0
        %v5373 = vpop.f32.mrb[0].mxu0
        %v5374 = vadd.f32 %v4829, %v5373
        %v5375 = vpop.f32.mrb[0].mxu0
        %5376 = vmatprep.mubr.bf16.mxu0 %v2692
        %5377 = vmatmul.mubr.bf16.gmra.mrb[0].mxu0 %v2691
        %v5378 = vpop.f32.mrb[0].mxu0
        %v5379 = vadd.f32 %v4834, %v5378
        %v5380 = vpop.f32.mrb[0].mxu0
        %v5381 = vpop.f32.mrb[0].mxu0
        %v5382 = vadd.f32 %v4837, %v5381
        %v5383 = vpop.f32.mrb[0].mxu0
        %5384 = vmatprep.mubr.bf16.mxu0 %v2700
        %5385 = vmatmul.mubr.bf16.gmra.mrb[0].mxu0 %v2699
        %v5386 = vpop.f32.mrb[0].mxu0
        %v5387 = vadd.f32 %v4842, %v5386
        %v5388 = vpop.f32.mrb[0].mxu0
        %v5389 = vpop.f32.mrb[0].mxu0
        %v5390 = vadd.f32 %v4845, %v5389
        %v5391 = vpop.f32.mrb[0].mxu0
        %5392 = vmatprep.mubr.bf16.mxu0 %v2708
        %5393 = vmatmul.mubr.bf16.gmra.mrb[0].mxu0 %v2707
        %v5394 = vpop.f32.mrb[0].mxu0
        %v5395 = vadd.f32 %v4850, %v5394
        %v5396 = vpop.f32.mrb[0].mxu0
        %v5397 = vpop.f32.mrb[0].mxu0
        %v5398 = vadd.f32 %v4853, %v5397
        %v5399 = vpop.f32.mrb[0].mxu0
        %5400 = vmatprep.mubr.bf16.mxu0 %v2716
        %5401 = vmatmul.mubr.bf16.gmra.mrb[0].mxu0 %v2715
        %v5402 = vpop.f32.mrb[0].mxu0
        %v5403 = vadd.f32 %v4858, %v5402
        %v5404 = vpop.f32.mrb[0].mxu0
        %v5405 = vpop.f32.mrb[0].mxu0
        %v5406 = vadd.f32 %v4861, %v5405
        %v5407 = vpop.f32.mrb[0].mxu0
        %5408 = vmatprep.mubr.bf16.mxu0 %v2724
        %5409 = vmatmul.mubr.bf16.gmra.mrb[0].mxu0 %v2723
        %v5410 = vpop.f32.mrb[0].mxu0
        %v5411 = vadd.f32 %v4866, %v5410
        %v5412 = vpop.f32.mrb[0].mxu0
        %v5413 = vpop.f32.mrb[0].mxu0
        %v5414 = vadd.f32 %v4869, %v5413
        %v5415 = vpop.f32.mrb[0].mxu0
        %5416 = vmatprep.mubr.bf16.mxu0 %v2732
        %5417 = vmatmul.mubr.bf16.gmra.mrb[0].mxu0 %v2731
        %v5418 = vpop.f32.mrb[0].mxu0
        %v5419 = vadd.f32 %v4874, %v5418
        %v5420 = vpop.f32.mrb[0].mxu0
        %v5421 = vpop.f32.mrb[0].mxu0
        %v5422 = vadd.f32 %v4877, %v5421
        %v5423 = vpop.f32.mrb[0].mxu0
        %5424 = vmatprep.mubr.bf16.mxu0 %v2740
        %5425 = vmatmul.mubr.bf16.gmra.mrb[0].mxu0 %v2739
        %v5426 = vpop.f32.mrb[0].mxu0
        %v5427 = vadd.f32 %v4882, %v5426
        %v5428 = vpop.f32.mrb[0].mxu0
        %v5429 = vpop.f32.mrb[0].mxu0
        %v5430 = vadd.f32 %v4885, %v5429
        %v5431 = vpop.f32.mrb[0].mxu0
        %5432 = vmatprep.mubr.bf16.mxu0 %v2748
        %5433 = vmatmul.mubr.bf16.gmra.mrb[0].mxu0 %v2747
        %v5434 = vpop.f32.mrb[0].mxu0
        %v5435 = vadd.f32 %v4890, %v5434
        %v5436 = vpop.f32.mrb[0].mxu0
        %v5437 = vpop.f32.mrb[0].mxu0
        %v5438 = vadd.f32 %v4893, %v5437
        %v5439 = vpop.f32.mrb[0].mxu0
        %5440 = vmatprep.mubr.bf16.mxu0 %v2756
        %5441 = vmatmul.mubr.bf16.gmra.mrb[0].mxu0 %v2755
        %v5442 = vpop.f32.mrb[0].mxu0
        %v5443 = vadd.f32 %v4898, %v5442
        %v5444 = vpop.f32.mrb[0].mxu0
        %v5445 = vpop.f32.mrb[0].mxu0
        %v5446 = vadd.f32 %v4901, %v5445
        %v5447 = vpop.f32.mrb[0].mxu0
        %5448 = vmatprep.mubr.bf16.mxu0 %v2764
        %5449 = vmatmul.mubr.bf16.gmra.mrb[0].mxu0 %v2763
        %v5450 = vpop.f32.mrb[0].mxu0
        %v5451 = vadd.f32 %v4906, %v5450
        %v5452 = vpop.f32.mrb[0].mxu0
        %v5453 = vpop.f32.mrb[0].mxu0
        %v5454 = vadd.f32 %v4909, %v5453
        %v5455 = vpop.f32.mrb[0].mxu0
        %5456 = vmatprep.mubr.bf16.mxu0 %v2772
        %5457 = vmatmul.mubr.bf16.gmra.mrb[0].mxu0 %v2771
        %v5458 = vpop.f32.mrb[0].mxu0
        %v5459 = vadd.f32 %v4914, %v5458
        %v5460 = vpop.f32.mrb[0].mxu0
        %v5461 = vpop.f32.mrb[0].mxu0
        %v5462 = vadd.f32 %v4917, %v5461
        %v5463 = vpop.f32.mrb[0].mxu0
        %5464 = vmatprep.mubr.bf16.mxu0 %v2780
        %5465 = vmatmul.mubr.bf16.gmra.mrb[0].mxu0 %v2779
        %v5466 = vpop.f32.mrb[0].mxu0
        %v5467 = vadd.f32 %v4922, %v5466
        %v5468 = vpop.f32.mrb[0].mxu0
        %v5469 = vpop.f32.mrb[0].mxu0
        %v5470 = vadd.f32 %v4925, %v5469
        %v5471 = vpop.f32.mrb[0].mxu0
        %5472 = vmatprep.mubr.bf16.mxu0 %v2788
        %5473 = vmatmul.mubr.bf16.gmra.mrb[0].mxu0 %v2787
        %v5474 = vpop.f32.mrb[0].mxu0
        %v5475 = vadd.f32 %v4930, %v5474
        %v5476 = vpop.f32.mrb[0].mxu0
        %v5477 = vpop.f32.mrb[0].mxu0
        %v5478 = vadd.f32 %v4933, %v5477
        %v5479 = vpop.f32.mrb[0].mxu0
        %5480 = vmatprep.mubr.bf16.mxu0 %v2796
        %5481 = vmatmul.mubr.bf16.gmra.mrb[0].mxu0 %v2795
        %v5482 = vpop.f32.mrb[0].mxu0
        %v5483 = vadd.f32 %v4938, %v5482
        %v5484 = vpop.f32.mrb[0].mxu0
        %v5485 = vpop.f32.mrb[0].mxu0
        %v5486 = vadd.f32 %v4941, %v5485
        %v5487 = vpop.f32.mrb[0].mxu0
        %5488 = vmatprep.mubr.bf16.mxu0 %v2804
        %5489 = vmatmul.mubr.bf16.gmra.mrb[0].mxu0 %v2803
        %v5490 = vpop.f32.mrb[0].mxu0
        %v5491 = vadd.f32 %v4946, %v5490
        %v5492 = vpop.f32.mrb[0].mxu0
        %v5493 = vpop.f32.mrb[0].mxu0
        %v5494 = vadd.f32 %v4949, %v5493
        %v5495 = vpop.f32.mrb[0].mxu0
        %5496 = vmatprep.mubr.bf16.mxu0 %v2812
        %5497 = vmatmul.mubr.bf16.gmra.mrb[0].mxu0 %v2811
        %v5498 = vpop.f32.mrb[0].mxu0
        %v5499 = vadd.f32 %v4954, %v5498
        %v5500 = vpop.f32.mrb[0].mxu0
        %v5501 = vpop.f32.mrb[0].mxu0
        %v5502 = vadd.f32 %v4957, %v5501
        %v5503 = vpop.f32.mrb[0].mxu0
        %5504 = vmatprep.mubr.bf16.mxu0 %v2820
        %5505 = vmatmul.mubr.bf16.gmra.mrb[0].mxu0 %v2819
        %v5506 = vpop.f32.mrb[0].mxu0
        %v5507 = vadd.f32 %v4962, %v5506
        %v5508 = vpop.f32.mrb[0].mxu0
        %v5509 = vpop.f32.mrb[0].mxu0
        %v5510 = vadd.f32 %v4965, %v5509
        %v5511 = vpop.f32.mrb[0].mxu0
        %5512 = vmatprep.mubr.bf16.mxu0 %v2828
        %5513 = vmatmul.mubr.bf16.gmra.mrb[0].mxu0 %v2827
        %v5514 = vpop.f32.mrb[0].mxu0
        %v5515 = vadd.f32 %v4970, %v5514
        %v5516 = vpop.f32.mrb[0].mxu0
        %v5517 = vpop.f32.mrb[0].mxu0
        %v5518 = vadd.f32 %v4973, %v5517
        %v5519 = vpop.f32.mrb[0].mxu0
        %5520 = vmatprep.mubr.bf16.mxu0 %v2836
        %5521 = vmatmul.mubr.bf16.gmra.mrb[0].mxu0 %v2835
        %v5522 = vpop.f32.mrb[0].mxu0
        %v5523 = vadd.f32 %v4978, %v5522
        %v5524 = vpop.f32.mrb[0].mxu0
        %v5525 = vpop.f32.mrb[0].mxu0
        %v5526 = vadd.f32 %v4981, %v5525
        %v5527 = vpop.f32.mrb[0].mxu0
        %5528 = vmatprep.mubr.bf16.mxu0 %v2844
        %5529 = vmatmul.mubr.bf16.gmra.mrb[0].mxu0 %v2843
        %v5530 = vpop.f32.mrb[0].mxu0
        %v5531 = vadd.f32 %v4986, %v5530
        %v5532 = vpop.f32.mrb[0].mxu0
        %v5533 = vpop.f32.mrb[0].mxu0
        %v5534 = vadd.f32 %v4989, %v5533
        %v5535 = vpop.f32.mrb[0].mxu0
        %5536 = vmatprep.mubr.bf16.mxu0 %v2852
        %5537 = vmatmul.mubr.bf16.gmra.mrb[0].mxu0 %v2851
        %v5538 = vpop.f32.mrb[0].mxu0
        %v5539 = vadd.f32 %v4994, %v5538
        %v5540 = vpop.f32.mrb[0].mxu0
        %v5541 = vpop.f32.mrb[0].mxu0
        %v5542 = vadd.f32 %v4997, %v5541
        %v5543 = vpop.f32.mrb[0].mxu0
        %5544 = vmatprep.mubr.bf16.mxu0 %v2860
        %5545 = vmatmul.mubr.bf16.gmra.mrb[0].mxu0 %v2859
        %v5546 = vpop.f32.mrb[0].mxu0
        %v5547 = vadd.f32 %v5002, %v5546
        %v5548 = vpop.f32.mrb[0].mxu0
        %v5549 = vpop.f32.mrb[0].mxu0
        %v5550 = vadd.f32 %v5005, %v5549
        %v5551 = vpop.f32.mrb[0].mxu0
        %5552 = vmatprep.mubr.bf16.mxu0 %v2868
        %5553 = vmatmul.mubr.bf16.gmra.mrb[0].mxu0 %v2867
        %v5554 = vpop.f32.mrb[0].mxu0
        %v5555 = vadd.f32 %v5010, %v5554
        %v5556 = vpop.f32.mrb[0].mxu0
        %v5557 = vpop.f32.mrb[0].mxu0
        %v5558 = vadd.f32 %v5013, %v5557
        %v5559 = vpop.f32.mrb[0].mxu0
        %5560 = vmatprep.mubr.bf16.mxu0 %v2876
        %5561 = vmatmul.mubr.bf16.gmra.mrb[0].mxu0 %v2875
        %v5562 = vpop.f32.mrb[0].mxu0
        %v5563 = vadd.f32 %v5018, %v5562
        %v5564 = vpop.f32.mrb[0].mxu0
        %v5565 = vpop.f32.mrb[0].mxu0
        %v5566 = vadd.f32 %v5021, %v5565
        %v5567 = vpop.f32.mrb[0].mxu0
        %5568 = vmatprep.mubr.bf16.mxu0 %v2884
        %5569 = vmatmul.mubr.bf16.gmra.mrb[0].mxu0 %v2883
        %v5570 = vpop.f32.mrb[0].mxu0
        %v5571 = vadd.f32 %v5026, %v5570
        %v5572 = vpop.f32.mrb[0].mxu0
        %v5573 = vpop.f32.mrb[0].mxu0
        %v5574 = vadd.f32 %v5029, %v5573
        %v5575 = vpop.f32.mrb[0].mxu0
        %5576 = vmatprep.mubr.bf16.mxu0 %v2892
        %5577 = vmatmul.mubr.bf16.gmra.mrb[0].mxu0 %v2891
        %v5578 = vpop.f32.mrb[0].mxu0
        %v5579 = vadd.f32 %v5034, %v5578
        %v5580 = vpop.f32.mrb[0].mxu0
        %v5581 = vpop.f32.mrb[0].mxu0
        %v5582 = vadd.f32 %v5037, %v5581
        %v5583 = vpop.f32.mrb[0].mxu0
        %5584 = vmatprep.mubr.bf16.mxu0 %v2900
        %5585 = vmatmul.mubr.bf16.gmra.mrb[0].mxu0 %v2899
        %v5586 = vpop.f32.mrb[0].mxu0
        %v5587 = vadd.f32 %v5042, %v5586
        %v5588 = vpop.f32.mrb[0].mxu0
        %v5589 = vpop.f32.mrb[0].mxu0
        %v5590 = vadd.f32 %v5045, %v5589
        %v5591 = vpop.f32.mrb[0].mxu0
        %5592 = vmatprep.mubr.bf16.mxu0 %v2908
        %5593 = vmatmul.mubr.bf16.gmra.mrb[0].mxu0 %v2907
        %v5594 = vpop.f32.mrb[0].mxu0
        %v5595 = vadd.f32 %v5050, %v5594
        %v5596 = vpop.f32.mrb[0].mxu0
        %v5597 = vpop.f32.mrb[0].mxu0
        %v5598 = vadd.f32 %v5053, %v5597
        %v5599 = vpop.f32.mrb[0].mxu0
        %5600 = vmatprep.mubr.bf16.mxu0 %v2916
        %5601 = vmatmul.mubr.bf16.gmra.mrb[0].mxu0 %v2915
        %v5602 = vpop.f32.mrb[0].mxu0
        %v5603 = vadd.f32 %v5058, %v5602
        %v5604 = vpop.f32.mrb[0].mxu0
        %v5605 = vpop.f32.mrb[0].mxu0
        %v5606 = vadd.f32 %v5061, %v5605
        %v5607 = vpop.f32.mrb[0].mxu0
        %5608 = vmatprep.mubr.bf16.mxu0 %v2924
        %5609 = vmatmul.mubr.bf16.gmra.mrb[0].mxu0 %v2923
        %v5610 = vpop.f32.mrb[0].mxu0
        %v5611 = vadd.f32 %v5066, %v5610
        %v5612 = vpop.f32.mrb[0].mxu0
        %v5613 = vpop.f32.mrb[0].mxu0
        %v5614 = vadd.f32 %v5069, %v5613
        %v5615 = vpop.f32.mrb[0].mxu0
        %5616 = vmatprep.mubr.bf16.mxu0 %v2932
        %5617 = vmatmul.mubr.bf16.gmra.mrb[0].mxu0 %v2931
        %v5618 = vpop.f32.mrb[0].mxu0
        %v5619 = vadd.f32 %v5074, %v5618
        %v5620 = vpop.f32.mrb[0].mxu0
        %v5621 = vpop.f32.mrb[0].mxu0
        %v5622 = vadd.f32 %v5077, %v5621
        %v5623 = vpop.f32.mrb[0].mxu0
        %5624 = vmatprep.mubr.bf16.mxu0 %v2940
        %5625 = vmatmul.mubr.bf16.gmra.mrb[0].mxu0 %v2939
        %v5626 = vpop.f32.mrb[0].mxu0
        %v5627 = vadd.f32 %v5082, %v5626
        %v5628 = vpop.f32.mrb[0].mxu0
        %v5629 = vpop.f32.mrb[0].mxu0
        %v5630 = vadd.f32 %v5085, %v5629
        %v5631 = vpop.f32.mrb[0].mxu0
        %5632 = vmatprep.mubr.bf16.mxu0 %v2948
        %5633 = vmatmul.mubr.bf16.gmra.mrb[0].mxu0 %v2947
        %v5634 = vpop.f32.mrb[0].mxu0
        %v5635 = vadd.f32 %v5090, %v5634
        %v5636 = vpop.f32.mrb[0].mxu0
        %v5637 = vpop.f32.mrb[0].mxu0
        %v5638 = vadd.f32 %v5093, %v5637
        %v5639 = vpop.f32.mrb[0].mxu0
        %5640 = vmatprep.mubr.bf16.mxu0 %v2956
        %5641 = vmatmul.mubr.bf16.gmra.mrb[0].mxu0 %v2955
        %v5642 = vpop.f32.mrb[0].mxu0
        %v5643 = vadd.f32 %v5098, %v5642
        %v5644 = vpop.f32.mrb[0].mxu0
        %v5645 = vpop.f32.mrb[0].mxu0
        %v5646 = vadd.f32 %v5101, %v5645
        %v5647 = vpop.f32.mrb[0].mxu0
        %5648 = vmatprep.mubr.bf16.mxu0 %v2964
        %5649 = vmatmul.mubr.bf16.gmra.mrb[0].mxu0 %v2963
        %v5650 = vpop.f32.mrb[0].mxu0
        %v5651 = vadd.f32 %v5106, %v5650
        %v5652 = vpop.f32.mrb[0].mxu0
        %v5653 = vpop.f32.mrb[0].mxu0
        %v5654 = vadd.f32 %v5109, %v5653
        %v5655 = vpop.f32.mrb[0].mxu0
        %5656 = vmatprep.mubr.bf16.mxu0 %v2972
        %5657 = vmatmul.mubr.bf16.gmra.mrb[0].mxu0 %v2971
        %v5658 = vpop.f32.mrb[0].mxu0
        %v5659 = vadd.f32 %v5114, %v5658
        %v5660 = vpop.f32.mrb[0].mxu0
        %v5661 = vpop.f32.mrb[0].mxu0
        %v5662 = vadd.f32 %v5117, %v5661
        %v5663 = vpop.f32.mrb[0].mxu0
        %5664 = vmatprep.mubr.bf16.mxu0 %v2980
        %5665 = vmatmul.mubr.bf16.gmra.mrb[0].mxu0 %v2979
        %v5666 = vpop.f32.mrb[0].mxu0
        %v5667 = vadd.f32 %v5122, %v5666
        %v5668 = vpop.f32.mrb[0].mxu0
        %v5669 = vpop.f32.mrb[0].mxu0
        %v5670 = vadd.f32 %v5125, %v5669
        %v5671 = vpop.f32.mrb[0].mxu0
        %5672 = vmatprep.mubr.bf16.mxu0 %v2988
        %5673 = vmatmul.mubr.bf16.gmra.mrb[0].mxu0 %v2987
        %v5674 = vpop.f32.mrb[0].mxu0
        %v5675 = vadd.f32 %v5130, %v5674
        %v5676 = vpop.f32.mrb[0].mxu0
        %v5677 = vpop.f32.mrb[0].mxu0
        %v5678 = vadd.f32 %v5133, %v5677
        %v5679 = vpop.f32.mrb[0].mxu0
        %5680 = vmatprep.mubr.bf16.mxu0 %v2996
        %5681 = vmatmul.mubr.bf16.gmra.mrb[0].mxu0 %v2995
        %v5682 = vpop.f32.mrb[0].mxu0
        %v5683 = vadd.f32 %v5138, %v5682
        %v5684 = vpop.f32.mrb[0].mxu0
        %v5685 = vpop.f32.mrb[0].mxu0
        %v5686 = vadd.f32 %v5141, %v5685
        %v5687 = vpop.f32.mrb[0].mxu0
        %5688 = vmatprep.mubr.bf16.mxu0 %v3004
        %5689 = vmatmul.mubr.bf16.gmra.mrb[0].mxu0 %v3003
        %v5690 = vpop.f32.mrb[0].mxu0
        %v5691 = vadd.f32 %v5146, %v5690
        %v5692 = vpop.f32.mrb[0].mxu0
        %v5693 = vpop.f32.mrb[0].mxu0
        %v5694 = vadd.f32 %v5149, %v5693
        %v5695 = vpop.f32.mrb[0].mxu0
        %5696 = vmatprep.mubr.bf16.mxu0 %v3012
        %5697 = vmatmul.mubr.bf16.gmra.mrb[0].mxu0 %v3011
        %v5698 = vpop.f32.mrb[0].mxu0
        %v5699 = vadd.f32 %v5154, %v5698
        %v5700 = vpop.f32.mrb[0].mxu0
        %v5701 = vpop.f32.mrb[0].mxu0
        %v5702 = vadd.f32 %v5157, %v5701
        %v5703 = vpop.f32.mrb[0].mxu0
        %5704 = vmatprep.mubr.bf16.mxu0 %v3020
        %5705 = vmatmul.mubr.bf16.gmra.mrb[0].mxu0 %v3019
        %v5706 = vpop.f32.mrb[0].mxu0
        %v5707 = vadd.f32 %v5162, %v5706
        %v5708 = vpop.f32.mrb[0].mxu0
        %v5709 = vpop.f32.mrb[0].mxu0
        %v5710 = vadd.f32 %v5165, %v5709
        %v5711 = vpop.f32.mrb[0].mxu0
        %5712 = vmatprep.mubr.bf16.mxu0 %v3028
        %5713 = vmatmul.mubr.bf16.gmra.mrb[0].mxu0 %v3027
        %v5714 = vpop.f32.mrb[0].mxu0
        %v5715 = vadd.f32 %v5170, %v5714
        %v5716 = vpop.f32.mrb[0].mxu0
        %v5717 = vpop.f32.mrb[0].mxu0
        %v5718 = vadd.f32 %v5173, %v5717
        %v5719 = vpop.f32.mrb[0].mxu0
        %5720 = vmatprep.mubr.bf16.mxu0 %v3036
        %5721 = vmatmul.mubr.bf16.gmra.mrb[0].mxu0 %v3035
        %v5722 = vpop.f32.mrb[0].mxu0
        %v5723 = vadd.f32 %v5178, %v5722
        %v5724 = vpop.f32.mrb[0].mxu0
        %v5725 = vpop.f32.mrb[0].mxu0
        %v5726 = vadd.f32 %v5181, %v5725
        %v5727 = vpop.f32.mrb[0].mxu0
        %5728 = vmatprep.mubr.bf16.mxu0 %v3044
        %5729 = vmatmul.mubr.bf16.gmra.mrb[0].mxu0 %v3043
        %v5730 = vpop.f32.mrb[0].mxu0
        %v5731 = vadd.f32 %v5186, %v5730
        %v5732 = vpop.f32.mrb[0].mxu0
        %v5733 = vpop.f32.mrb[0].mxu0
        %v5734 = vadd.f32 %v5189, %v5733
        %v5735 = vpop.f32.mrb[0].mxu0
        %5736 = vmatprep.mubr.bf16.mxu0 %v3052
        %5737 = vmatmul.mubr.bf16.gmra.mrb[0].mxu0 %v3051
        %v5738 = vpop.f32.mrb[0].mxu0
        %v5739 = vadd.f32 %v5194, %v5738
        %v5740 = vpop.f32.mrb[0].mxu0
        %v5741 = vpop.f32.mrb[0].mxu0
        %v5742 = vadd.f32 %v5197, %v5741
        %v5743 = vpop.f32.mrb[0].mxu0
        %5744 = vmatprep.mubr.bf16.mxu0 %v3060
        %5745 = vmatmul.mubr.bf16.gmra.mrb[0].mxu0 %v3059
        %v5746 = vpop.f32.mrb[0].mxu0
        %v5747 = vadd.f32 %v5202, %v5746
        %v5748 = vpop.f32.mrb[0].mxu0
        %v5749 = vpop.f32.mrb[0].mxu0
        %v5750 = vadd.f32 %v5205, %v5749
        %v5751 = vpop.f32.mrb[0].mxu0
        %5752 = vdwg.mxu0
        %5753 = vst [vmem:[%s177] sm:$0xff] %v5243
        %5754 = vst [vmem:[%s177 + $0x8] sm:$0xff] %v5246
        %5755 = vst [vmem:[%s177 + $0x10] sm:$0xff] %v5251
        %5756 = vst [vmem:[%s177 + $0x18] sm:$0xff] %v5254
        %5757 = vst [vmem:[%s177 + $0x20] sm:$0xff] %v5259
        %5758 = vst [vmem:[%s177 + $0x28] sm:$0xff] %v5262
        %5759 = vst [vmem:[%s177 + $0x30] sm:$0xff] %v5267
        %5760 = vst [vmem:[%s177 + $0x38] sm:$0xff] %v5270
        %5761 = vst [vmem:[%s177 + $0x40] sm:$0xff] %v5275
        %5762 = vst [vmem:[%s177 + $0x48] sm:$0xff] %v5278
        %5763 = vst [vmem:[%s177 + $0x50] sm:$0xff] %v5283
        %5764 = vst [vmem:[%s177 + $0x58] sm:$0xff] %v5286
        %5765 = vst [vmem:[%s177 + $0x60] sm:$0xff] %v5291
        %5766 = vst [vmem:[%s177 + $0x68] sm:$0xff] %v5294
        %5767 = vst [vmem:[%s177 + $0x70] sm:$0xff] %v5299
        %5768 = vst [vmem:[%s177 + $0x78] sm:$0xff] %v5302
        %5769 = vst [vmem:[%s177 + $0x80] sm:$0xff] %v5307
        %5770 = vst [vmem:[%s177 + $0x88] sm:$0xff] %v5310
        %5771 = vst [vmem:[%s177 + $0x90] sm:$0xff] %v5315
        %5772 = vst [vmem:[%s177 + $0x98] sm:$0xff] %v5318
        %5773 = vst [vmem:[%s177 + $0xa0] sm:$0xff] %v5323
        %5774 = vst [vmem:[%s177 + $0xa8] sm:$0xff] %v5326
        %5775 = vst [vmem:[%s177 + $0xb0] sm:$0xff] %v5331
        %5776 = vst [vmem:[%s177 + $0xb8] sm:$0xff] %v5334
        %5777 = vst [vmem:[%s177 + $0xc0] sm:$0xff] %v5339
        %5778 = vst [vmem:[%s177 + $0xc8] sm:$0xff] %v5342
        %5779 = vst [vmem:[%s177 + $0xd0] sm:$0xff] %v5347
        %5780 = vst [vmem:[%s177 + $0xd8] sm:$0xff] %v5350
        %5781 = vst [vmem:[%s177 + $0xe0] sm:$0xff] %v5355
        %5782 = vst [vmem:[%s177 + $0xe8] sm:$0xff] %v5358
        %5783 = vst [vmem:[%s177 + $0xf0] sm:$0xff] %v5363
        %5784 = vst [vmem:[%s177 + $0xf8] sm:$0xff] %v5366
        %5785 = vst [vmem:[%s177 + $0x100] sm:$0xff] %v5371
        %5786 = vst [vmem:[%s177 + $0x108] sm:$0xff] %v5374
        %5787 = vst [vmem:[%s177 + $0x110] sm:$0xff] %v5379
        %5788 = vst [vmem:[%s177 + $0x118] sm:$0xff] %v5382
        %5789 = vst [vmem:[%s177 + $0x120] sm:$0xff] %v5387
        %5790 = vst [vmem:[%s177 + $0x128] sm:$0xff] %v5390
        %5791 = vst [vmem:[%s177 + $0x130] sm:$0xff] %v5395
        %5792 = vst [vmem:[%s177 + $0x138] sm:$0xff] %v5398
        %5793 = vst [vmem:[%s177 + $0x140] sm:$0xff] %v5403
        %5794 = vst [vmem:[%s177 + $0x148] sm:$0xff] %v5406
        %5795 = vst [vmem:[%s177 + $0x150] sm:$0xff] %v5411
        %5796 = vst [vmem:[%s177 + $0x158] sm:$0xff] %v5414
        %5797 = vst [vmem:[%s177 + $0x160] sm:$0xff] %v5419
        %5798 = vst [vmem:[%s177 + $0x168] sm:$0xff] %v5422
        %5799 = vst [vmem:[%s177 + $0x170] sm:$0xff] %v5427
        %5800 = vst [vmem:[%s177 + $0x178] sm:$0xff] %v5430
        %5801 = vst [vmem:[%s177 + $0x180] sm:$0xff] %v5435
        %5802 = vst [vmem:[%s177 + $0x188] sm:$0xff] %v5438
        %5803 = vst [vmem:[%s177 + $0x190] sm:$0xff] %v5443
        %5804 = vst [vmem:[%s177 + $0x198] sm:$0xff] %v5446
        %5805 = vst [vmem:[%s177 + $0x1a0] sm:$0xff] %v5451
        %5806 = vst [vmem:[%s177 + $0x1a8] sm:$0xff] %v5454
        %5807 = vst [vmem:[%s177 + $0x1b0] sm:$0xff] %v5459
        %5808 = vst [vmem:[%s177 + $0x1b8] sm:$0xff] %v5462
        %5809 = vst [vmem:[%s177 + $0x1c0] sm:$0xff] %v5467
        %5810 = vst [vmem:[%s177 + $0x1c8] sm:$0xff] %v5470
        %5811 = vst [vmem:[%s177 + $0x1d0] sm:$0xff] %v5475
        %5812 = vst [vmem:[%s177 + $0x1d8] sm:$0xff] %v5478
        %5813 = vst [vmem:[%s177 + $0x1e0] sm:$0xff] %v5483
        %5814 = vst [vmem:[%s177 + $0x1e8] sm:$0xff] %v5486
        %5815 = vst [vmem:[%s177 + $0x1f0] sm:$0xff] %v5491
        %5816 = vst [vmem:[%s177 + $0x1f8] sm:$0xff] %v5494
        %5817 = vst [vmem:[%s177 + $0x200] sm:$0xff] %v5499
        %5818 = vst [vmem:[%s177 + $0x208] sm:$0xff] %v5502
        %5819 = vst [vmem:[%s177 + $0x210] sm:$0xff] %v5507
        %5820 = vst [vmem:[%s177 + $0x218] sm:$0xff] %v5510
        %5821 = vst [vmem:[%s177 + $0x220] sm:$0xff] %v5515
        %5822 = vst [vmem:[%s177 + $0x228] sm:$0xff] %v5518
        %5823 = vst [vmem:[%s177 + $0x230] sm:$0xff] %v5523
        %5824 = vst [vmem:[%s177 + $0x238] sm:$0xff] %v5526
        %5825 = vst [vmem:[%s177 + $0x240] sm:$0xff] %v5531
        %5826 = vst [vmem:[%s177 + $0x248] sm:$0xff] %v5534
        %5827 = vst [vmem:[%s177 + $0x250] sm:$0xff] %v5539
        %5828 = vst [vmem:[%s177 + $0x258] sm:$0xff] %v5542
        %5829 = vst [vmem:[%s177 + $0x260] sm:$0xff] %v5547
        %5830 = vst [vmem:[%s177 + $0x268] sm:$0xff] %v5550
        %5831 = vst [vmem:[%s177 + $0x270] sm:$0xff] %v5555
        %5832 = vst [vmem:[%s177 + $0x278] sm:$0xff] %v5558
        %5833 = vst [vmem:[%s177 + $0x280] sm:$0xff] %v5563
        %5834 = vst [vmem:[%s177 + $0x288] sm:$0xff] %v5566
        %5835 = vst [vmem:[%s177 + $0x290] sm:$0xff] %v5571
        %5836 = vst [vmem:[%s177 + $0x298] sm:$0xff] %v5574
        %5837 = vst [vmem:[%s177 + $0x2a0] sm:$0xff] %v5579
        %5838 = vst [vmem:[%s177 + $0x2a8] sm:$0xff] %v5582
        %5839 = vst [vmem:[%s177 + $0x2b0] sm:$0xff] %v5587
        %5840 = vst [vmem:[%s177 + $0x2b8] sm:$0xff] %v5590
        %5841 = vst [vmem:[%s177 + $0x2c0] sm:$0xff] %v5595
        %5842 = vst [vmem:[%s177 + $0x2c8] sm:$0xff] %v5598
        %5843 = vst [vmem:[%s177 + $0x2d0] sm:$0xff] %v5603
        %5844 = vst [vmem:[%s177 + $0x2d8] sm:$0xff] %v5606
        %5845 = vst [vmem:[%s177 + $0x2e0] sm:$0xff] %v5611
        %5846 = vst [vmem:[%s177 + $0x2e8] sm:$0xff] %v5614
        %5847 = vst [vmem:[%s177 + $0x2f0] sm:$0xff] %v5619
        %5848 = vst [vmem:[%s177 + $0x2f8] sm:$0xff] %v5622
        %5849 = vst [vmem:[%s177 + $0x300] sm:$0xff] %v5627
        %5850 = vst [vmem:[%s177 + $0x308] sm:$0xff] %v5630
        %5851 = vst [vmem:[%s177 + $0x310] sm:$0xff] %v5635
        %5852 = vst [vmem:[%s177 + $0x318] sm:$0xff] %v5638
        %5853 = vst [vmem:[%s177 + $0x320] sm:$0xff] %v5643
        %5854 = vst [vmem:[%s177 + $0x328] sm:$0xff] %v5646
        %5855 = vst [vmem:[%s177 + $0x330] sm:$0xff] %v5651
        %5856 = vst [vmem:[%s177 + $0x338] sm:$0xff] %v5654
        %5857 = vst [vmem:[%s177 + $0x340] sm:$0xff] %v5659
        %5858 = vst [vmem:[%s177 + $0x348] sm:$0xff] %v5662
        %5859 = vst [vmem:[%s177 + $0x350] sm:$0xff] %v5667
        %5860 = vst [vmem:[%s177 + $0x358] sm:$0xff] %v5670
        %5861 = vst [vmem:[%s177 + $0x360] sm:$0xff] %v5675
        %5862 = vst [vmem:[%s177 + $0x368] sm:$0xff] %v5678
        %5863 = vst [vmem:[%s177 + $0x370] sm:$0xff] %v5683
        %5864 = vst [vmem:[%s177 + $0x378] sm:$0xff] %v5686
        %5865 = vst [vmem:[%s177 + $0x380] sm:$0xff] %v5691
        %5866 = vst [vmem:[%s177 + $0x388] sm:$0xff] %v5694
        %5867 = vst [vmem:[%s177 + $0x390] sm:$0xff] %v5699
        %5868 = vst [vmem:[%s177 + $0x398] sm:$0xff] %v5702
        %5869 = vst [vmem:[%s177 + $0x3a0] sm:$0xff] %v5707
        %5870 = vst [vmem:[%s177 + $0x3a8] sm:$0xff] %v5710
        %5871 = vst [vmem:[%s177 + $0x3b0] sm:$0xff] %v5715
        %5872 = vst [vmem:[%s177 + $0x3b8] sm:$0xff] %v5718
        %5873 = vst [vmem:[%s177 + $0x3c0] sm:$0xff] %v5723
        %5874 = vst [vmem:[%s177 + $0x3c8] sm:$0xff] %v5726
        %5875 = vst [vmem:[%s177 + $0x3d0] sm:$0xff] %v5731
        %5876 = vst [vmem:[%s177 + $0x3d8] sm:$0xff] %v5734
        %5877 = vst [vmem:[%s177 + $0x3e0] sm:$0xff] %v5739
        %5878 = vst [vmem:[%s177 + $0x3e8] sm:$0xff] %v5742
        %5879 = vst [vmem:[%s177 + $0x3f0] sm:$0xff] %v5747
        %5880 = vst [vmem:[%s177 + $0x3f8] sm:$0xff] %v5750
        %s5881 = sand.u32 %s75, 1
        %s5882 = scalar_lea.sflag [#allocation4], %s5881
        %s5883 = sand.u32 %s75, 1
        %s5884 = smul.addr %s5883, 1024
        %s5885 = scalar_lea.vmem [#allocation7], %s5884
        // Predicated region
        $region37: #{tpu_custom_call.1} parent=27 // pred_check
          %p5886 = pneg %p85
        $region38: #{tpu_custom_call.1} parent=27 // pred_check_branch
          %5888 = sbr.rel (%p5886) target = $region40
        $region39: #{tpu_custom_call.1} parent=27 // pred_region
          %s5889 = smul.u32 128, %s20
          %s5891 = ssub.s32 16384, 16384
          %5892 = vsyncadd %s5882, %s5891
          %s5893 = smul.addr %s5889, 128
          %s5894 = scalar_lea.hbm %s2, %s5893
          %s5895 = sshll.u32 %s5885, 4
          %s5896 = int_to_ptr.vmem [resolvable:$true] %s5895
          %5901 = dma.vmem_to_hbm [thread:$0]  %s5896, 16384, %s5894, %s5882, 128, 128, 8
        $region40: #{tpu_custom_call.1} parent=27 // pred_fallthru
          _
      $region28: #{tpu_custom_call.1} parent=5 // pred_fallthru
        _
      %p5902 = scmp.le.s32.totalorder 2, %s15
      // Predicated region
      $region41: #{tpu_custom_call.1} parent=5 // pred_check
        %p5903 = pneg %p5902
      $region42: #{tpu_custom_call.1} parent=5 // pred_check_branch
        %5905 = sbr.rel (%p5903) target = $region44
      $region43: #{tpu_custom_call.1} parent=5 // pred_region
        %s5906 = ssub.s32 %s15, 2
        // Predicated region
        $region45: #{tpu_custom_call.1} parent=43 // pred_check
          %p5907 = pneg %p91
        $region46: #{tpu_custom_call.1} parent=43 // pred_check_branch
          %5909 = sbr.rel (%p5907) target = $region48
        $region47: #{tpu_custom_call.1} parent=43 // pred_region
          %s5910 = sand.u32 %s76, 1
          %s5911 = scalar_lea.sflag [#allocation4], %s5910
          %s5912 = sand.u32 %s76, 1
          %s5913 = smul.addr %s5912, 1024
          %s5914 = scalar_lea.vmem [#allocation7], %s5913
          %5915 = dma.done %s5911, 16384
        $region48: #{tpu_custom_call.1} parent=43 // pred_fallthru
          _
      $region44: #{tpu_custom_call.1} parent=5 // pred_fallthru
        _
    $region6: #{tpu_custom_call.1} parent=1 // loop_footer
      %s19 = sadd.s32 1, %s15
    $region7: #{tpu_custom_call.1} parent=1 // loop_footer_branch
      %14 = sbr.rel target = $region3
    $region8: #{tpu_custom_call.1} parent=1 // loop_exit
      _
    %5916 = vsyncpa [#allocation3], 1
    %s5917 = scalar_lea.sflag [#allocation3], 1
    %5918 = vsyncpa %s5917, 1
    %5919 = vsyncpa [#allocation6], 1
    %s5920 = scalar_lea.sflag [#allocation6], 1
    %5921 = vsyncpa %s5920, 1
    %5922 = vsyncpa [#allocation4], 1
    %s5923 = scalar_lea.sflag [#allocation4], 1
    %5924 = vsyncpa %s5923, 1

</llo_original>
